<compile_context>
chip_gen: v7x
topology: tpu7x:2x2x1
jax: 0.10.0
libtpu: 0.0.40
codegen_flags: <defaults>
</compile_context>

<pallas_src>
import math

import jax
import jax.numpy as jnp
from jax.experimental import pallas as pl
from jax.experimental.pallas import tpu as pltpu


# ----------------------------------------------------------------------------- #
# Pallas kernel: full decoder stack + final fc for one batch-block per grid step
# ----------------------------------------------------------------------------- #
def _make_decoder_kernel(num_layers, num_heads, d_model, block_b, seq_len):
    head_dim = d_model // num_heads
    T = seq_len
    D = d_model
    BT = block_b * T
    NEG = -1e30

    def layer_norm(v, w, b, eps=1e-5):
        # One-pass statistics: the two XLU reductions are independent.
        mu = jnp.mean(v, axis=-1, keepdims=True)
        msq = jnp.mean(v * v, axis=-1, keepdims=True)
        var = jnp.maximum(msq - mu * mu, 0.0)
        return (v - mu) * jax.lax.rsqrt(var + eps) * w + b

    def kernel(x_ref,
               qkvw_ref, qkvb_ref, soww_ref, abias_ref,
               n1w_ref, n1b_ref, n3w_ref, n3b_ref,
               l1w_ref, l1b_ref, l2w_ref, l2b_ref,
               fnw_ref, fnb_ref, fcw_ref, fcb_ref,
               out_ref):
        # Activations live as (Bblk*T, D) f32; attention temporarily goes (Bblk, T, ...).
        x = x_ref[...].astype(jnp.float32).reshape(BT, D)

        # Causal ("no-peek") mask built in-register — no HBM traffic; kept in f32.
        row = jax.lax.broadcasted_iota(jnp.int32, (T, T), 0)
        col = jax.lax.broadcasted_iota(jnp.int32, (T, T), 1)
        mask = jnp.where(col <= row, 0.0, NEG).astype(jnp.float32)

        for l in range(num_layers):                      # static, unrolled (small L)
            # ---------- masked multi-head self-attention (pre-norm) ----------
            t1 = layer_norm(x, n1w_ref[l], n1b_ref[l])
            qkv = (jnp.dot(t1.astype(jnp.bfloat16), qkvw_ref[l],
                           preferred_element_type=jnp.float32)
                   + qkvb_ref[l])                        # (BT, 3D); Q columns pre-scaled
            q = qkv[:, :D].reshape(block_b, T, D).astype(jnp.bfloat16)
            k = qkv[:, D:2 * D].reshape(block_b, T, D).astype(jnp.bfloat16)
            v = qkv[:, 2 * D:].reshape(block_b, T, D).astype(jnp.bfloat16)

            heads = []
            for h in range(num_heads):                   # static, unrolled
                sl = slice(h * head_dim, (h + 1) * head_dim)
                s = jnp.einsum("bqd,bkd->bqk", q[:, :, sl], k[:, :, sl],
                               preferred_element_type=jnp.float32) + mask
                s = s - jnp.max(s, axis=-1, keepdims=True)
                p = jnp.exp(s)
                p = p * pl.reciprocal(jnp.sum(p, axis=-1, keepdims=True), approx=True)
                heads.append(jnp.einsum("bqk,bkd->bqd", p.astype(jnp.bfloat16),
                                        v[:, :, sl],
                                        preferred_element_type=jnp.float32))
            # Lane-concat the heads and run ONE full-depth out-projection.
            o = jnp.concatenate(heads, axis=-1).reshape(BT, D)
            attn = jnp.dot(o.astype(jnp.bfloat16), soww_ref[l],
                           preferred_element_type=jnp.float32)       # (BT, D)

            # abias = out-proj bias + constant-folded zero-memory cross-attention
            # (softmax over a single key == 1 exactly), fused on the host.
            x = x + attn + abias_ref[l]

            # ---------- feed-forward ----------
            t1 = layer_norm(x, n3w_ref[l], n3b_ref[l])
            h1 = jnp.maximum(
                jnp.dot(t1.astype(jnp.bfloat16), l1w_ref[l],
                        preferred_element_type=jnp.float32) + l1b_ref[l], 0.0)
            x = x + (jnp.dot(h1.astype(jnp.bfloat16), l2w_ref[l],
                             preferred_element_type=jnp.float32) + l2b_ref[l])

        # final decoder LayerNorm + output projection (self.fc)
        x = layer_norm(x, fnw_ref[...], fnb_ref[...])
        logits = (jnp.dot(x.astype(jnp.bfloat16), fcw_ref[...],
                          preferred_element_type=jnp.float32) + fcb_ref[...])
        out_ref[...] = logits.reshape(block_b, T, -1).astype(out_ref.dtype)

    return kernel


# ----------------------------------------------------------------------------- #
# Host-side glue: embedding lookup, context token, positional encoding, packing
# ----------------------------------------------------------------------------- #
def _prepare_inputs(params, code):
    B, S = code.shape
    d_model = params["embed"].shape[1]
    T = S + 1
    emb = jnp.take(params["embed"], code, axis=0)                    # (B, S, D)
    ctx = jnp.zeros((B, 1, d_model), jnp.float32)                    # context token
    dec_in = jnp.concatenate([ctx, emb], axis=1)                     # (B, T, D)
    dec_in = dec_in + params["pos_embed"][:T][None, :, :]            # positional encoding
    # bf16 on the wire: halves the activation input DMA; the kernel upcasts once.
    return dec_in.astype(jnp.bfloat16)


_PACKED_ORDER = ["qkvw", "qkvb", "sow", "abias", "n1w", "n1b", "n3w", "n3b",
                 "l1w", "l1b", "l2w", "l2b", "fnw", "fnb", "fcw", "fcb"]


def pack_params(params, *, num_heads):
    """QKV fusion (with 1/sqrt(hd) folded into Q), fused per-layer attention bias
    (out-proj bias + constant-folded zero-memory cross-attention), bf16 casts of
    matmul weights (LayerNorm params and biases stay f32)."""
    L, D, _ = params["swq"].shape
    H = num_heads
    hd = D // H
    scale = 1.0 / math.sqrt(hd)
    bf16 = jnp.bfloat16

    qkvw = jnp.concatenate([params["swq"] * scale, params["swk"], params["swv"]], axis=-1)
    qkvb = jnp.concatenate([params["sbq"] * scale, params["sbk"], params["sbv"]], axis=-1)
    # cross-attn with zero memory: value = b_v  ->  out = b_v @ Wo + b_o   (exact)
    xbias = jnp.einsum("lod,lde->loe", params["cbv"], params["cow"]) + params["cob"]
    abias = params["sob"] + xbias                      # fused per-layer bias (L,1,D)

    return dict(
        qkvw=qkvw.astype(bf16),
        qkvb=qkvb.astype(jnp.float32),
        sow=params["sow"].astype(bf16),
        abias=abias.astype(jnp.float32),
        n1w=params["n1w"].astype(jnp.float32), n1b=params["n1b"].astype(jnp.float32),
        n3w=params["n3w"].astype(jnp.float32), n3b=params["n3b"].astype(jnp.float32),
        l1w=params["l1w"].astype(bf16), l1b=params["l1b"].astype(jnp.float32),
        l2w=params["l2w"].astype(bf16), l2b=params["l2b"].astype(jnp.float32),
        fnw=params["fnw"].astype(jnp.float32), fnb=params["fnb"].astype(jnp.float32),
        fcw=params["fcw"].astype(bf16), fcb=params["fcb"].astype(jnp.float32),
    )


def _pick_block_b(B, T, target_rows=512):
    """Largest divisor of B whose block gives ~target_rows matmul rows, but with
    at least 2 grid steps when B >= 2 so v7x's two TensorCores both get work."""
    cap = max(1, min(B, target_rows // max(T, 1)))
    if B >= 2:
        cap = min(cap, B // 2)
    bb = max(1, cap)
    while B % bb:
        bb -= 1
    return max(bb, 1)


def code_model_forward(params, code, *, num_heads, num_layers, block_b=None):
    """Pallas implementation of CodeModel.forward for a non-empty code tensor."""
    d_model, classes = params["fcw"].shape
    d_ff = params["l1w"].shape[-1]
    B, S = code.shape
    T = S + 1
    H = num_heads
    hd = d_model // H

    dec_in = _prepare_inputs(params, code)
    packed = pack_params(params, num_heads=num_heads)
    weight_args = [packed[name] for name in _PACKED_ORDER]

    if block_b is None:
        block_b = _pick_block_b(B, T)

    def _const_spec(a):
        nd = a.ndim
        return pl.BlockSpec(a.shape, lambda b, _nd=nd: (0,) * _nd)

    in_specs = [pl.BlockSpec((block_b, T, d_model), lambda b: (b, 0, 0))] + \
               [_const_spec(a) for a in weight_args]

    kernel = _make_decoder_kernel(num_layers, num_heads, d_model, block_b, T)

    # Advisory cost estimate so XLA schedules the embedding gather / concat /
    # positional add around the custom call.
    rows = B * T
    flops = num_layers * (2 * rows * d_model * 3 * d_model        # QKV
                          + 2 * B * H * T * T * hd                # scores
                          + 2 * B * H * T * T * hd                # P @ V
                          + 2 * rows * d_model * d_model          # out-proj
                          + 2 * rows * d_model * d_ff             # FFN up
                          + 2 * rows * d_ff * d_model)            # FFN down
    flops += 2 * rows * d_model * classes                         # final fc
    trans = num_layers * (B * H * T * T + 3 * rows) + rows        # exp + rsqrt/recip
    weight_bytes = sum(int(a.size) * a.dtype.itemsize for a in weight_args)
    bytes_accessed = int(dec_in.size) * dec_in.dtype.itemsize + weight_bytes \
        + rows * classes * 4
    cost = pl.CostEstimate(flops=int(flops), transcendentals=int(trans),
                           bytes_accessed=int(bytes_accessed))

    out = pl.pallas_call(
        kernel,
        out_shape=jax.ShapeDtypeStruct((B, T, classes), jnp.float32),
        grid_spec=pltpu.PrefetchScalarGridSpec(
            num_scalar_prefetch=0,
            grid=(B // block_b,),
            in_specs=in_specs,
            out_specs=pl.BlockSpec((block_b, T, classes), lambda b: (b, 0, 0)),
        ),
        # batch blocks are independent -> "parallel" lets v7x shard across both TCs
        compiler_params=pltpu.CompilerParams(dimension_semantics=("parallel",)),
        cost_estimate=cost,
    )(dec_in, *weight_args)
    return out


# ----------------------------------------------------------------------------- #
# Pure-JAX reference with identical math/numerics (bf16 MXU inputs, f32 accumulate)
# ----------------------------------------------------------------------------- #
def reference_forward(params, code, *, num_heads, num_layers):
    dec_in = _prepare_inputs(params, code)
    packed = pack_params(params, num_heads=num_heads)
    B, T, D = dec_in.shape
    hd = D // num_heads
    bf16 = jnp.bfloat16

    def ln(v, w, b, eps=1e-5):
        mu = jnp.mean(v, -1, keepdims=True)
        msq = jnp.mean(v * v, -1, keepdims=True)
        var = jnp.maximum(msq - mu * mu, 0.0)
        return (v - mu) * jax.lax.rsqrt(var + eps) * w + b

    row = jnp.arange(T)[:, None]
    col = jnp.arange(T)[None, :]
    mask = jnp.where(col <= row, 0.0, -1e30).astype(jnp.float32)

    x = dec_in.astype(jnp.float32).reshape(B * T, D)
    for l in range(num_layers):
        t1 = ln(x, packed["n1w"][l], packed["n1b"][l])
        qkv = jnp.dot(t1.astype(bf16), packed["qkvw"][l],
                      preferred_element_type=jnp.float32) + packed["qkvb"][l]
        q = qkv[:, :D].reshape(B, T, D).astype(bf16)
        k = qkv[:, D:2 * D].reshape(B, T, D).astype(bf16)
        v = qkv[:, 2 * D:].reshape(B, T, D).astype(bf16)
        heads = []
        for h in range(num_heads):
            sl = slice(h * hd, (h + 1) * hd)
            s = jnp.einsum("bqd,bkd->bqk", q[:, :, sl], k[:, :, sl],
                           preferred_element_type=jnp.float32) + mask
            p = jax.nn.softmax(s, axis=-1)
            heads.append(jnp.einsum("bqk,bkd->bqd", p.astype(bf16), v[:, :, sl],
                                    preferred_element_type=jnp.float32))
        o = jnp.concatenate(heads, axis=-1).reshape(B * T, D)
        attn = jnp.dot(o.astype(bf16), packed["sow"][l],
                       preferred_element_type=jnp.float32)
        x = x + attn + packed["abias"][l]
        t1 = ln(x, packed["n3w"][l], packed["n3b"][l])
        h1 = jnp.maximum(jnp.dot(t1.astype(bf16), packed["l1w"][l],
                                 preferred_element_type=jnp.float32) + packed["l1b"][l], 0.0)
        x = x + jnp.dot(h1.astype(bf16), packed["l2w"][l],
                        preferred_element_type=jnp.float32) + packed["l2b"][l]
    x = ln(x, packed["fnw"], packed["fnb"])
    logits = jnp.dot(x.astype(bf16), packed["fcw"],
                     preferred_element_type=jnp.float32) + packed["fcb"]
    return logits.reshape(B, T, -1)


# ----------------------------------------------------------------------------- #
# Deterministic parameter construction (shapes from CodeModel.__init__)
# ----------------------------------------------------------------------------- #
def init_params(key, *, classes, d_model, d_ff, num_layers, max_len):
    L = num_layers
    ks = iter(jax.random.split(key, 32))

    def nrm(shape, s=0.02):
        return jax.random.normal(next(ks), shape, jnp.float32) * s

    return dict(
        embed=nrm((classes, d_model), 1.0),          # Embedder
        pos_embed=nrm((max_len, d_model), 1.0),      # PositionalEncoding
        n1w=jnp.ones((L, 1, d_model), jnp.float32), n1b=jnp.zeros((L, 1, d_model), jnp.float32),
        swq=nrm((L, d_model, d_model)), swk=nrm((L, d_model, d_model)), swv=nrm((L, d_model, d_model)),
        sbq=nrm((L, 1, d_model)), sbk=nrm((L, 1, d_model)), sbv=nrm((L, 1, d_model)),
        sow=nrm((L, d_model, d_model)), sob=nrm((L, 1, d_model)),
        # cross-attention params: only cbv/cow/cob can influence the output
        # (zero memory); cwv and the n2 LayerNorm are math-dead and unused below.
        n2w=jnp.ones((L, 1, d_model), jnp.float32), n2b=jnp.zeros((L, 1, d_model), jnp.float32),
        cwv=nrm((L, d_model, d_model)), cbv=nrm((L, 1, d_model)),
        cow=nrm((L, d_model, d_model)), cob=nrm((L, 1, d_model)),
        n3w=jnp.ones((L, 1, d_model), jnp.float32), n3b=jnp.zeros((L, 1, d_model), jnp.float32),
        l1w=nrm((L, d_model, d_ff)), l1b=nrm((L, 1, d_ff)),
        l2w=nrm((L, d_ff, d_model)), l2b=nrm((L, 1, d_model)),
        fnw=jnp.ones((1, d_model), jnp.float32), fnb=jnp.zeros((1, d_model), jnp.float32),
        fcw=nrm((d_model, classes)), fcb=nrm((1, classes)),
    )


if __name__ == "__main__":
    config = dict(embed_dim=64, hidden_dim=128, num_heads=4, num_layers=2, dropout_rate=0.1)
    MAX_LEN = 8        # CodeModel(max_len=8)
    CLASSES = 512      # CodeModel(classes=512)
    B, S = 2, 7        # seq_len = 7 -> T = S + 1 = 8 (= max_len)

    key = jax.random.PRNGKey(0)
    pkey, ckey = jax.random.split(key)
    params = init_params(pkey, classes=CLASSES, d_model=config["embed_dim"],
                         d_ff=config["hidden_dim"], num_layers=config["num_layers"],
                         max_len=MAX_LEN)
    code = jax.random.randint(ckey, (B, S), 0, CLASSES, dtype=jnp.int32)

    logits = code_model_forward(params, code,
                                num_heads=config["num_heads"],
                                num_layers=config["num_layers"])
    logits = jax.block_until_ready(logits)
    assert logits.shape == (B, S + 1, CLASSES), logits.shape

    ref = reference_forward(params, code,
                            num_heads=config["num_heads"],
                            num_layers=config["num_layers"])
    err = float(jnp.max(jnp.abs(logits - ref)))
    assert err < 1e-2, f"kernel/reference mismatch, max abs err = {err}"

    print("KERNEL_OK")
</pallas_src>

<mosaic_0001>
module attributes {stable_mosaic.version = 11 : i64} {
  func.func @kernel(%arg0: i32, %arg1: memref<1x8x64xbf16, #tpu.memory_space<vmem>>, %arg2: memref<2x64x192xbf16, #tpu.memory_space<vmem>>, %arg3: memref<2x1x192xf32, #tpu.memory_space<vmem>>, %arg4: memref<2x64x64xbf16, #tpu.memory_space<vmem>>, %arg5: memref<2x1x64xf32, #tpu.memory_space<vmem>>, %arg6: memref<2x1x64xf32, #tpu.memory_space<vmem>>, %arg7: memref<2x1x64xf32, #tpu.memory_space<vmem>>, %arg8: memref<2x1x64xf32, #tpu.memory_space<vmem>>, %arg9: memref<2x1x64xf32, #tpu.memory_space<vmem>>, %arg10: memref<2x64x128xbf16, #tpu.memory_space<vmem>>, %arg11: memref<2x1x128xf32, #tpu.memory_space<vmem>>, %arg12: memref<2x128x64xbf16, #tpu.memory_space<vmem>>, %arg13: memref<2x1x64xf32, #tpu.memory_space<vmem>>, %arg14: memref<1x64xf32, #tpu.memory_space<vmem>>, %arg15: memref<1x64xf32, #tpu.memory_space<vmem>>, %arg16: memref<64x512xbf16, #tpu.memory_space<vmem>>, %arg17: memref<1x512xf32, #tpu.memory_space<vmem>>, %arg18: memref<1x8x512xf32, #tpu.memory_space<vmem>>) attributes {dimension_semantics = [#tpu.dimension_semantics<parallel>], iteration_bounds = array<i64: 2>, scalar_prefetch = 0 : i64, scratch_operands = 0 : i64, tpu.core_type = #tpu.core_type<tc>, window_params = [{transform_indices = @transform_0, window_bounds = array<i64: 1, 8, 64>}, {pipeline_mode = #tpu.pipeline_mode<synchronous>, transform_indices = @transform_1, window_bounds = array<i64: 2, 64, 192>}, {pipeline_mode = #tpu.pipeline_mode<synchronous>, transform_indices = @transform_2, window_bounds = array<i64: 2, 1, 192>}, {pipeline_mode = #tpu.pipeline_mode<synchronous>, transform_indices = @transform_3, window_bounds = array<i64: 2, 64, 64>}, {pipeline_mode = #tpu.pipeline_mode<synchronous>, transform_indices = @transform_4, window_bounds = array<i64: 2, 1, 64>}, {pipeline_mode = #tpu.pipeline_mode<synchronous>, transform_indices = @transform_5, window_bounds = array<i64: 2, 1, 64>}, {pipeline_mode = #tpu.pipeline_mode<synchronous>, transform_indices = @transform_6, window_bounds = array<i64: 2, 1, 64>}, {pipeline_mode = #tpu.pipeline_mode<synchronous>, transform_indices = @transform_7, window_bounds = array<i64: 2, 1, 64>}, {pipeline_mode = #tpu.pipeline_mode<synchronous>, transform_indices = @transform_8, window_bounds = array<i64: 2, 1, 64>}, {pipeline_mode = #tpu.pipeline_mode<synchronous>, transform_indices = @transform_9, window_bounds = array<i64: 2, 64, 128>}, {pipeline_mode = #tpu.pipeline_mode<synchronous>, transform_indices = @transform_10, window_bounds = array<i64: 2, 1, 128>}, {pipeline_mode = #tpu.pipeline_mode<synchronous>, transform_indices = @transform_11, window_bounds = array<i64: 2, 128, 64>}, {pipeline_mode = #tpu.pipeline_mode<synchronous>, transform_indices = @transform_12, window_bounds = array<i64: 2, 1, 64>}, {pipeline_mode = #tpu.pipeline_mode<synchronous>, transform_indices = @transform_13, window_bounds = array<i64: 1, 64>}, {pipeline_mode = #tpu.pipeline_mode<synchronous>, transform_indices = @transform_14, window_bounds = array<i64: 1, 64>}, {pipeline_mode = #tpu.pipeline_mode<synchronous>, transform_indices = @transform_15, window_bounds = array<i64: 64, 512>}, {pipeline_mode = #tpu.pipeline_mode<synchronous>, transform_indices = @transform_16, window_bounds = array<i64: 1, 512>}, {transform_indices = @transform_17, window_bounds = array<i64: 1, 8, 512>}]} {
    %c0 = arith.constant 0 : index
    %c0_0 = arith.constant 0 : index
    %c0_1 = arith.constant 0 : index
    %0 = vector.load %arg1[%c0, %c0_0, %c0_1] : memref<1x8x64xbf16, #tpu.memory_space<vmem>>, vector<1x8x64xbf16>
    %1 = arith.extf %0 : vector<1x8x64xbf16> to vector<1x8x64xf32>
    %2 = vector.shape_cast %1 : vector<1x8x64xf32> to vector<8x64xf32>
    %3 = tpu.iota {dimensions = array<i32: 0>} : vector<8x8xi32>
    %4 = tpu.iota {dimensions = array<i32: 1>} : vector<8x8xi32>
    %5 = arith.cmpi sle, %4, %3 : vector<8x8xi32>
    %cst = arith.constant 0.000000e+00 : f32
    %cst_2 = arith.constant -1.000000e+30 : f32
    %6 = vector.broadcast %cst : f32 to vector<8x8xf32>
    %7 = vector.broadcast %cst_2 : f32 to vector<8x8xf32>
    %8 = arith.select %5, %6, %7 : vector<8x8xi1>, vector<8x8xf32>
    %c0_3 = arith.constant 0 : index
    %c0_4 = arith.constant 0 : index
    %c0_5 = arith.constant 0 : index
    %9 = vector.load %arg6[%c0_3, %c0_4, %c0_5] : memref<2x1x64xf32, #tpu.memory_space<vmem>>, vector<1x1x64xf32>
    %10 = vector.shape_cast %9 : vector<1x1x64xf32> to vector<1x64xf32>
    %c0_6 = arith.constant 0 : index
    %c0_7 = arith.constant 0 : index
    %c0_8 = arith.constant 0 : index
    %11 = vector.load %arg7[%c0_6, %c0_7, %c0_8] : memref<2x1x64xf32, #tpu.memory_space<vmem>>, vector<1x1x64xf32>
    %12 = vector.shape_cast %11 : vector<1x1x64xf32> to vector<1x64xf32>
    %cst_9 = arith.constant dense<0.000000e+00> : vector<8xf32>
    %13 = vector.multi_reduction <add>, %2, %cst_9 [1] : vector<8x64xf32> to vector<8xf32>
    %14 = vector.shape_cast %13 : vector<8xf32> to vector<8x1xf32>
    %cst_10 = arith.constant 6.400000e+01 : f32
    %15 = vector.broadcast %cst_10 : f32 to vector<8x1xf32>
    %16 = arith.divf %14, %15 : vector<8x1xf32>
    %17 = arith.mulf %2, %2 : vector<8x64xf32>
    %cst_11 = arith.constant dense<0.000000e+00> : vector<8xf32>
    %18 = vector.multi_reduction <add>, %17, %cst_11 [1] : vector<8x64xf32> to vector<8xf32>
    %19 = vector.shape_cast %18 : vector<8xf32> to vector<8x1xf32>
    %cst_12 = arith.constant 6.400000e+01 : f32
    %20 = vector.broadcast %cst_12 : f32 to vector<8x1xf32>
    %21 = arith.divf %19, %20 : vector<8x1xf32>
    %22 = arith.mulf %16, %16 : vector<8x1xf32>
    %23 = arith.subf %21, %22 : vector<8x1xf32>
    %cst_13 = arith.constant 0.000000e+00 : f32
    %24 = vector.broadcast %cst_13 : f32 to vector<8x1xf32>
    %25 = arith.maximumf %23, %24 : vector<8x1xf32>
    %26 = vector.broadcast %16 : vector<8x1xf32> to vector<8x64xf32>
    %27 = arith.subf %2, %26 : vector<8x64xf32>
    %cst_14 = arith.constant 9.99999974E-6 : f32
    %28 = vector.broadcast %cst_14 : f32 to vector<8x1xf32>
    %29 = arith.addf %25, %28 : vector<8x1xf32>
    %30 = math.rsqrt %29 : vector<8x1xf32>
    %31 = vector.broadcast %30 : vector<8x1xf32> to vector<8x64xf32>
    %32 = arith.mulf %27, %31 : vector<8x64xf32>
    %33 = vector.broadcast %10 : vector<1x64xf32> to vector<8x64xf32>
    %34 = arith.mulf %32, %33 : vector<8x64xf32>
    %35 = vector.broadcast %12 : vector<1x64xf32> to vector<8x64xf32>
    %36 = arith.addf %34, %35 : vector<8x64xf32>
    %37 = arith.truncf %36 : vector<8x64xf32> to vector<8x64xbf16>
    %c0_15 = arith.constant 0 : index
    %c0_16 = arith.constant 0 : index
    %c0_17 = arith.constant 0 : index
    %38 = vector.load %arg2[%c0_15, %c0_16, %c0_17] : memref<2x64x192xbf16, #tpu.memory_space<vmem>>, vector<1x64x192xbf16>
    %39 = vector.shape_cast %38 : vector<1x64x192xbf16> to vector<64x192xbf16>
    %cst_18 = arith.constant dense<0.000000e+00> : vector<8x192xf32>
    %40 = tpu.matmul %37, %39, %cst_18 {dimension_numbers = #tpu.dot_dimension_numbers<[1], [0], [0], [1], [0, 0, 1, 1], [], []>} : vector<8x64xbf16>, vector<64x192xbf16>, vector<8x192xf32> -> vector<8x192xf32>
    %c0_19 = arith.constant 0 : index
    %c0_20 = arith.constant 0 : index
    %c0_21 = arith.constant 0 : index
    %41 = vector.load %arg3[%c0_19, %c0_20, %c0_21] : memref<2x1x192xf32, #tpu.memory_space<vmem>>, vector<1x1x192xf32>
    %42 = vector.shape_cast %41 : vector<1x1x192xf32> to vector<1x192xf32>
    %43 = vector.broadcast %42 : vector<1x192xf32> to vector<8x192xf32>
    %44 = arith.addf %40, %43 : vector<8x192xf32>
    %45 = vector.extract_strided_slice %44 {offsets = [0, 0], sizes = [8, 64], strides = [1, 1]} : vector<8x192xf32> to vector<8x64xf32>
    %46 = vector.shape_cast %45 : vector<8x64xf32> to vector<1x8x64xf32>
    %47 = arith.truncf %46 : vector<1x8x64xf32> to vector<1x8x64xbf16>
    %48 = vector.extract_strided_slice %44 {offsets = [0, 64], sizes = [8, 64], strides = [1, 1]} : vector<8x192xf32> to vector<8x64xf32>
    %49 = vector.shape_cast %48 : vector<8x64xf32> to vector<1x8x64xf32>
    %50 = arith.truncf %49 : vector<1x8x64xf32> to vector<1x8x64xbf16>
    %51 = vector.extract_strided_slice %44 {offsets = [0, 128], sizes = [8, 64], strides = [1, 1]} : vector<8x192xf32> to vector<8x64xf32>
    %52 = vector.shape_cast %51 : vector<8x64xf32> to vector<1x8x64xf32>
    %53 = arith.truncf %52 : vector<1x8x64xf32> to vector<1x8x64xbf16>
    %54 = vector.extract_strided_slice %47 {offsets = [0, 0, 0], sizes = [1, 8, 16], strides = [1, 1, 1]} : vector<1x8x64xbf16> to vector<1x8x16xbf16>
    %55 = vector.extract_strided_slice %50 {offsets = [0, 0, 0], sizes = [1, 8, 16], strides = [1, 1, 1]} : vector<1x8x64xbf16> to vector<1x8x16xbf16>
    "tpu.trace_start"() <{level = 10 : i32, message = "bqd,bkd->bqk"}> : () -> ()
    %cst_22 = arith.constant dense<0.000000e+00> : vector<1x8x8xf32>
    %56 = tpu.matmul %54, %55, %cst_22 {dimension_numbers = #tpu.dot_dimension_numbers<[2], [2], [1], [1], [0, 0, 0, 1, 1, 1], [0], [0]>} : vector<1x8x16xbf16>, vector<1x8x16xbf16>, vector<1x8x8xf32> -> vector<1x8x8xf32>
    "tpu.trace_stop"() : () -> ()
    %57 = vector.shape_cast %8 : vector<8x8xf32> to vector<1x8x8xf32>
    %58 = arith.addf %56, %57 : vector<1x8x8xf32>
    %cst_23 = arith.constant dense<0xFF800000> : vector<1x8xf32>
    %59 = vector.multi_reduction <maximumf>, %58, %cst_23 [2] : vector<1x8x8xf32> to vector<1x8xf32>
    %60 = vector.shape_cast %59 : vector<1x8xf32> to vector<1x8x1xf32>
    %61 = vector.broadcast %60 : vector<1x8x1xf32> to vector<1x8x8xf32>
    %62 = arith.subf %58, %61 : vector<1x8x8xf32>
    %63 = math.exp %62 : vector<1x8x8xf32>
    %cst_24 = arith.constant dense<0.000000e+00> : vector<1x8xf32>
    %64 = vector.multi_reduction <add>, %63, %cst_24 [2] : vector<1x8x8xf32> to vector<1x8xf32>
    %65 = vector.shape_cast %64 : vector<1x8xf32> to vector<1x8x1xf32>
    %66 = tpu.reciprocal %65 {approx = true} : vector<1x8x1xf32> -> vector<1x8x1xf32>
    %67 = vector.broadcast %66 : vector<1x8x1xf32> to vector<1x8x8xf32>
    %68 = arith.mulf %63, %67 : vector<1x8x8xf32>
    %69 = arith.truncf %68 : vector<1x8x8xf32> to vector<1x8x8xbf16>
    %70 = vector.extract_strided_slice %53 {offsets = [0, 0, 0], sizes = [1, 8, 16], strides = [1, 1, 1]} : vector<1x8x64xbf16> to vector<1x8x16xbf16>
    "tpu.trace_start"() <{level = 10 : i32, message = "bqk,bkd->bqd"}> : () -> ()
    %cst_25 = arith.constant dense<0.000000e+00> : vector<1x8x16xf32>
    %71 = tpu.matmul %69, %70, %cst_25 {dimension_numbers = #tpu.dot_dimension_numbers<[2], [1], [1], [2], [0, 0, 0, 1, 1, 2], [0], [0]>} : vector<1x8x8xbf16>, vector<1x8x16xbf16>, vector<1x8x16xf32> -> vector<1x8x16xf32>
    "tpu.trace_stop"() : () -> ()
    %72 = vector.extract_strided_slice %47 {offsets = [0, 0, 16], sizes = [1, 8, 16], strides = [1, 1, 1]} : vector<1x8x64xbf16> to vector<1x8x16xbf16>
    %73 = vector.extract_strided_slice %50 {offsets = [0, 0, 16], sizes = [1, 8, 16], strides = [1, 1, 1]} : vector<1x8x64xbf16> to vector<1x8x16xbf16>
    "tpu.trace_start"() <{level = 10 : i32, message = "bqd,bkd->bqk"}> : () -> ()
    %cst_26 = arith.constant dense<0.000000e+00> : vector<1x8x8xf32>
    %74 = tpu.matmul %72, %73, %cst_26 {dimension_numbers = #tpu.dot_dimension_numbers<[2], [2], [1], [1], [0, 0, 0, 1, 1, 1], [0], [0]>} : vector<1x8x16xbf16>, vector<1x8x16xbf16>, vector<1x8x8xf32> -> vector<1x8x8xf32>
    "tpu.trace_stop"() : () -> ()
    %75 = vector.shape_cast %8 : vector<8x8xf32> to vector<1x8x8xf32>
    %76 = arith.addf %74, %75 : vector<1x8x8xf32>
    %cst_27 = arith.constant dense<0xFF800000> : vector<1x8xf32>
    %77 = vector.multi_reduction <maximumf>, %76, %cst_27 [2] : vector<1x8x8xf32> to vector<1x8xf32>
    %78 = vector.shape_cast %77 : vector<1x8xf32> to vector<1x8x1xf32>
    %79 = vector.broadcast %78 : vector<1x8x1xf32> to vector<1x8x8xf32>
    %80 = arith.subf %76, %79 : vector<1x8x8xf32>
    %81 = math.exp %80 : vector<1x8x8xf32>
    %cst_28 = arith.constant dense<0.000000e+00> : vector<1x8xf32>
    %82 = vector.multi_reduction <add>, %81, %cst_28 [2] : vector<1x8x8xf32> to vector<1x8xf32>
    %83 = vector.shape_cast %82 : vector<1x8xf32> to vector<1x8x1xf32>
    %84 = tpu.reciprocal %83 {approx = true} : vector<1x8x1xf32> -> vector<1x8x1xf32>
    %85 = vector.broadcast %84 : vector<1x8x1xf32> to vector<1x8x8xf32>
    %86 = arith.mulf %81, %85 : vector<1x8x8xf32>
    %87 = arith.truncf %86 : vector<1x8x8xf32> to vector<1x8x8xbf16>
    %88 = vector.extract_strided_slice %53 {offsets = [0, 0, 16], sizes = [1, 8, 16], strides = [1, 1, 1]} : vector<1x8x64xbf16> to vector<1x8x16xbf16>
    "tpu.trace_start"() <{level = 10 : i32, message = "bqk,bkd->bqd"}> : () -> ()
    %cst_29 = arith.constant dense<0.000000e+00> : vector<1x8x16xf32>
    %89 = tpu.matmul %87, %88, %cst_29 {dimension_numbers = #tpu.dot_dimension_numbers<[2], [1], [1], [2], [0, 0, 0, 1, 1, 2], [0], [0]>} : vector<1x8x8xbf16>, vector<1x8x16xbf16>, vector<1x8x16xf32> -> vector<1x8x16xf32>
    "tpu.trace_stop"() : () -> ()
    %90 = vector.extract_strided_slice %47 {offsets = [0, 0, 32], sizes = [1, 8, 16], strides = [1, 1, 1]} : vector<1x8x64xbf16> to vector<1x8x16xbf16>
    %91 = vector.extract_strided_slice %50 {offsets = [0, 0, 32], sizes = [1, 8, 16], strides = [1, 1, 1]} : vector<1x8x64xbf16> to vector<1x8x16xbf16>
    "tpu.trace_start"() <{level = 10 : i32, message = "bqd,bkd->bqk"}> : () -> ()
    %cst_30 = arith.constant dense<0.000000e+00> : vector<1x8x8xf32>
    %92 = tpu.matmul %90, %91, %cst_30 {dimension_numbers = #tpu.dot_dimension_numbers<[2], [2], [1], [1], [0, 0, 0, 1, 1, 1], [0], [0]>} : vector<1x8x16xbf16>, vector<1x8x16xbf16>, vector<1x8x8xf32> -> vector<1x8x8xf32>
    "tpu.trace_stop"() : () -> ()
    %93 = vector.shape_cast %8 : vector<8x8xf32> to vector<1x8x8xf32>
    %94 = arith.addf %92, %93 : vector<1x8x8xf32>
    %cst_31 = arith.constant dense<0xFF800000> : vector<1x8xf32>
    %95 = vector.multi_reduction <maximumf>, %94, %cst_31 [2] : vector<1x8x8xf32> to vector<1x8xf32>
    %96 = vector.shape_cast %95 : vector<1x8xf32> to vector<1x8x1xf32>
    %97 = vector.broadcast %96 : vector<1x8x1xf32> to vector<1x8x8xf32>
    %98 = arith.subf %94, %97 : vector<1x8x8xf32>
    %99 = math.exp %98 : vector<1x8x8xf32>
    %cst_32 = arith.constant dense<0.000000e+00> : vector<1x8xf32>
    %100 = vector.multi_reduction <add>, %99, %cst_32 [2] : vector<1x8x8xf32> to vector<1x8xf32>
    %101 = vector.shape_cast %100 : vector<1x8xf32> to vector<1x8x1xf32>
    %102 = tpu.reciprocal %101 {approx = true} : vector<1x8x1xf32> -> vector<1x8x1xf32>
    %103 = vector.broadcast %102 : vector<1x8x1xf32> to vector<1x8x8xf32>
    %104 = arith.mulf %99, %103 : vector<1x8x8xf32>
    %105 = arith.truncf %104 : vector<1x8x8xf32> to vector<1x8x8xbf16>
    %106 = vector.extract_strided_slice %53 {offsets = [0, 0, 32], sizes = [1, 8, 16], strides = [1, 1, 1]} : vector<1x8x64xbf16> to vector<1x8x16xbf16>
    "tpu.trace_start"() <{level = 10 : i32, message = "bqk,bkd->bqd"}> : () -> ()
    %cst_33 = arith.constant dense<0.000000e+00> : vector<1x8x16xf32>
    %107 = tpu.matmul %105, %106, %cst_33 {dimension_numbers = #tpu.dot_dimension_numbers<[2], [1], [1], [2], [0, 0, 0, 1, 1, 2], [0], [0]>} : vector<1x8x8xbf16>, vector<1x8x16xbf16>, vector<1x8x16xf32> -> vector<1x8x16xf32>
    "tpu.trace_stop"() : () -> ()
    %108 = vector.extract_strided_slice %47 {offsets = [0, 0, 48], sizes = [1, 8, 16], strides = [1, 1, 1]} : vector<1x8x64xbf16> to vector<1x8x16xbf16>
    %109 = vector.extract_strided_slice %50 {offsets = [0, 0, 48], sizes = [1, 8, 16], strides = [1, 1, 1]} : vector<1x8x64xbf16> to vector<1x8x16xbf16>
    "tpu.trace_start"() <{level = 10 : i32, message = "bqd,bkd->bqk"}> : () -> ()
    %cst_34 = arith.constant dense<0.000000e+00> : vector<1x8x8xf32>
    %110 = tpu.matmul %108, %109, %cst_34 {dimension_numbers = #tpu.dot_dimension_numbers<[2], [2], [1], [1], [0, 0, 0, 1, 1, 1], [0], [0]>} : vector<1x8x16xbf16>, vector<1x8x16xbf16>, vector<1x8x8xf32> -> vector<1x8x8xf32>
    "tpu.trace_stop"() : () -> ()
    %111 = vector.shape_cast %8 : vector<8x8xf32> to vector<1x8x8xf32>
    %112 = arith.addf %110, %111 : vector<1x8x8xf32>
    %cst_35 = arith.constant dense<0xFF800000> : vector<1x8xf32>
    %113 = vector.multi_reduction <maximumf>, %112, %cst_35 [2] : vector<1x8x8xf32> to vector<1x8xf32>
    %114 = vector.shape_cast %113 : vector<1x8xf32> to vector<1x8x1xf32>
    %115 = vector.broadcast %114 : vector<1x8x1xf32> to vector<1x8x8xf32>
    %116 = arith.subf %112, %115 : vector<1x8x8xf32>
    %117 = math.exp %116 : vector<1x8x8xf32>
    %cst_36 = arith.constant dense<0.000000e+00> : vector<1x8xf32>
    %118 = vector.multi_reduction <add>, %117, %cst_36 [2] : vector<1x8x8xf32> to vector<1x8xf32>
    %119 = vector.shape_cast %118 : vector<1x8xf32> to vector<1x8x1xf32>
    %120 = tpu.reciprocal %119 {approx = true} : vector<1x8x1xf32> -> vector<1x8x1xf32>
    %121 = vector.broadcast %120 : vector<1x8x1xf32> to vector<1x8x8xf32>
    %122 = arith.mulf %117, %121 : vector<1x8x8xf32>
    %123 = arith.truncf %122 : vector<1x8x8xf32> to vector<1x8x8xbf16>
    %124 = vector.extract_strided_slice %53 {offsets = [0, 0, 48], sizes = [1, 8, 16], strides = [1, 1, 1]} : vector<1x8x64xbf16> to vector<1x8x16xbf16>
    "tpu.trace_start"() <{level = 10 : i32, message = "bqk,bkd->bqd"}> : () -> ()
    %cst_37 = arith.constant dense<0.000000e+00> : vector<1x8x16xf32>
    %125 = tpu.matmul %123, %124, %cst_37 {dimension_numbers = #tpu.dot_dimension_numbers<[2], [1], [1], [2], [0, 0, 0, 1, 1, 2], [0], [0]>} : vector<1x8x8xbf16>, vector<1x8x16xbf16>, vector<1x8x16xf32> -> vector<1x8x16xf32>
    "tpu.trace_stop"() : () -> ()
    %126 = tpu.concatenate %71, %89, %107, %125 in 2 : vector<1x8x16xf32>, vector<1x8x16xf32>, vector<1x8x16xf32>, vector<1x8x16xf32> -> vector<1x8x64xf32>
    %127 = vector.shape_cast %126 : vector<1x8x64xf32> to vector<8x64xf32>
    %128 = arith.truncf %127 : vector<8x64xf32> to vector<8x64xbf16>
    %c0_38 = arith.constant 0 : index
    %c0_39 = arith.constant 0 : index
    %c0_40 = arith.constant 0 : index
    %129 = vector.load %arg4[%c0_38, %c0_39, %c0_40] : memref<2x64x64xbf16, #tpu.memory_space<vmem>>, vector<1x64x64xbf16>
    %130 = vector.shape_cast %129 : vector<1x64x64xbf16> to vector<64x64xbf16>
    %cst_41 = arith.constant dense<0.000000e+00> : vector<8x64xf32>
    %131 = tpu.matmul %128, %130, %cst_41 {dimension_numbers = #tpu.dot_dimension_numbers<[1], [0], [0], [1], [0, 0, 1, 1], [], []>} : vector<8x64xbf16>, vector<64x64xbf16>, vector<8x64xf32> -> vector<8x64xf32>
    %132 = arith.addf %2, %131 : vector<8x64xf32>
    %c0_42 = arith.constant 0 : index
    %c0_43 = arith.constant 0 : index
    %c0_44 = arith.constant 0 : index
    %133 = vector.load %arg5[%c0_42, %c0_43, %c0_44] : memref<2x1x64xf32, #tpu.memory_space<vmem>>, vector<1x1x64xf32>
    %134 = vector.shape_cast %133 : vector<1x1x64xf32> to vector<1x64xf32>
    %135 = vector.broadcast %134 : vector<1x64xf32> to vector<8x64xf32>
    %136 = arith.addf %132, %135 : vector<8x64xf32>
    %c0_45 = arith.constant 0 : index
    %c0_46 = arith.constant 0 : index
    %c0_47 = arith.constant 0 : index
    %137 = vector.load %arg8[%c0_45, %c0_46, %c0_47] : memref<2x1x64xf32, #tpu.memory_space<vmem>>, vector<1x1x64xf32>
    %138 = vector.shape_cast %137 : vector<1x1x64xf32> to vector<1x64xf32>
    %c0_48 = arith.constant 0 : index
    %c0_49 = arith.constant 0 : index
    %c0_50 = arith.constant 0 : index
    %139 = vector.load %arg9[%c0_48, %c0_49, %c0_50] : memref<2x1x64xf32, #tpu.memory_space<vmem>>, vector<1x1x64xf32>
    %140 = vector.shape_cast %139 : vector<1x1x64xf32> to vector<1x64xf32>
    %cst_51 = arith.constant dense<0.000000e+00> : vector<8xf32>
    %141 = vector.multi_reduction <add>, %136, %cst_51 [1] : vector<8x64xf32> to vector<8xf32>
    %142 = vector.shape_cast %141 : vector<8xf32> to vector<8x1xf32>
    %cst_52 = arith.constant 6.400000e+01 : f32
    %143 = vector.broadcast %cst_52 : f32 to vector<8x1xf32>
    %144 = arith.divf %142, %143 : vector<8x1xf32>
    %145 = arith.mulf %136, %136 : vector<8x64xf32>
    %cst_53 = arith.constant dense<0.000000e+00> : vector<8xf32>
    %146 = vector.multi_reduction <add>, %145, %cst_53 [1] : vector<8x64xf32> to vector<8xf32>
    %147 = vector.shape_cast %146 : vector<8xf32> to vector<8x1xf32>
    %cst_54 = arith.constant 6.400000e+01 : f32
    %148 = vector.broadcast %cst_54 : f32 to vector<8x1xf32>
    %149 = arith.divf %147, %148 : vector<8x1xf32>
    %150 = arith.mulf %144, %144 : vector<8x1xf32>
    %151 = arith.subf %149, %150 : vector<8x1xf32>
    %cst_55 = arith.constant 0.000000e+00 : f32
    %152 = vector.broadcast %cst_55 : f32 to vector<8x1xf32>
    %153 = arith.maximumf %151, %152 : vector<8x1xf32>
    %154 = vector.broadcast %144 : vector<8x1xf32> to vector<8x64xf32>
    %155 = arith.subf %136, %154 : vector<8x64xf32>
    %cst_56 = arith.constant 9.99999974E-6 : f32
    %156 = vector.broadcast %cst_56 : f32 to vector<8x1xf32>
    %157 = arith.addf %153, %156 : vector<8x1xf32>
    %158 = math.rsqrt %157 : vector<8x1xf32>
    %159 = vector.broadcast %158 : vector<8x1xf32> to vector<8x64xf32>
    %160 = arith.mulf %155, %159 : vector<8x64xf32>
    %161 = vector.broadcast %138 : vector<1x64xf32> to vector<8x64xf32>
    %162 = arith.mulf %160, %161 : vector<8x64xf32>
    %163 = vector.broadcast %140 : vector<1x64xf32> to vector<8x64xf32>
    %164 = arith.addf %162, %163 : vector<8x64xf32>
    %165 = arith.truncf %164 : vector<8x64xf32> to vector<8x64xbf16>
    %c0_57 = arith.constant 0 : index
    %c0_58 = arith.constant 0 : index
    %c0_59 = arith.constant 0 : index
    %166 = vector.load %arg10[%c0_57, %c0_58, %c0_59] : memref<2x64x128xbf16, #tpu.memory_space<vmem>>, vector<1x64x128xbf16>
    %167 = vector.shape_cast %166 : vector<1x64x128xbf16> to vector<64x128xbf16>
    %cst_60 = arith.constant dense<0.000000e+00> : vector<8x128xf32>
    %168 = tpu.matmul %165, %167, %cst_60 {dimension_numbers = #tpu.dot_dimension_numbers<[1], [0], [0], [1], [0, 0, 1, 1], [], []>} : vector<8x64xbf16>, vector<64x128xbf16>, vector<8x128xf32> -> vector<8x128xf32>
    %c0_61 = arith.constant 0 : index
    %c0_62 = arith.constant 0 : index
    %c0_63 = arith.constant 0 : index
    %169 = vector.load %arg11[%c0_61, %c0_62, %c0_63] : memref<2x1x128xf32, #tpu.memory_space<vmem>>, vector<1x1x128xf32>
    %170 = vector.shape_cast %169 : vector<1x1x128xf32> to vector<1x128xf32>
    %171 = vector.broadcast %170 : vector<1x128xf32> to vector<8x128xf32>
    %172 = arith.addf %168, %171 : vector<8x128xf32>
    %cst_64 = arith.constant 0.000000e+00 : f32
    %173 = vector.broadcast %cst_64 : f32 to vector<8x128xf32>
    %174 = arith.maximumf %172, %173 : vector<8x128xf32>
    %175 = arith.truncf %174 : vector<8x128xf32> to vector<8x128xbf16>
    %c0_65 = arith.constant 0 : index
    %c0_66 = arith.constant 0 : index
    %c0_67 = arith.constant 0 : index
    %176 = vector.load %arg12[%c0_65, %c0_66, %c0_67] : memref<2x128x64xbf16, #tpu.memory_space<vmem>>, vector<1x128x64xbf16>
    %177 = vector.shape_cast %176 : vector<1x128x64xbf16> to vector<128x64xbf16>
    %cst_68 = arith.constant dense<0.000000e+00> : vector<8x64xf32>
    %178 = tpu.matmul %175, %177, %cst_68 {dimension_numbers = #tpu.dot_dimension_numbers<[1], [0], [0], [1], [0, 0, 1, 1], [], []>} : vector<8x128xbf16>, vector<128x64xbf16>, vector<8x64xf32> -> vector<8x64xf32>
    %c0_69 = arith.constant 0 : index
    %c0_70 = arith.constant 0 : index
    %c0_71 = arith.constant 0 : index
    %179 = vector.load %arg13[%c0_69, %c0_70, %c0_71] : memref<2x1x64xf32, #tpu.memory_space<vmem>>, vector<1x1x64xf32>
    %180 = vector.shape_cast %179 : vector<1x1x64xf32> to vector<1x64xf32>
    %181 = vector.broadcast %180 : vector<1x64xf32> to vector<8x64xf32>
    %182 = arith.addf %178, %181 : vector<8x64xf32>
    %183 = arith.addf %136, %182 : vector<8x64xf32>
    %c1 = arith.constant 1 : index
    %c0_72 = arith.constant 0 : index
    %c0_73 = arith.constant 0 : index
    %184 = vector.load %arg6[%c1, %c0_72, %c0_73] : memref<2x1x64xf32, #tpu.memory_space<vmem>>, vector<1x1x64xf32>
    %185 = vector.shape_cast %184 : vector<1x1x64xf32> to vector<1x64xf32>
    %c1_74 = arith.constant 1 : index
    %c0_75 = arith.constant 0 : index
    %c0_76 = arith.constant 0 : index
    %186 = vector.load %arg7[%c1_74, %c0_75, %c0_76] : memref<2x1x64xf32, #tpu.memory_space<vmem>>, vector<1x1x64xf32>
    %187 = vector.shape_cast %186 : vector<1x1x64xf32> to vector<1x64xf32>
    %cst_77 = arith.constant dense<0.000000e+00> : vector<8xf32>
    %188 = vector.multi_reduction <add>, %183, %cst_77 [1] : vector<8x64xf32> to vector<8xf32>
    %189 = vector.shape_cast %188 : vector<8xf32> to vector<8x1xf32>
    %cst_78 = arith.constant 6.400000e+01 : f32
    %190 = vector.broadcast %cst_78 : f32 to vector<8x1xf32>
    %191 = arith.divf %189, %190 : vector<8x1xf32>
    %192 = arith.mulf %183, %183 : vector<8x64xf32>
    %cst_79 = arith.constant dense<0.000000e+00> : vector<8xf32>
    %193 = vector.multi_reduction <add>, %192, %cst_79 [1] : vector<8x64xf32> to vector<8xf32>
    %194 = vector.shape_cast %193 : vector<8xf32> to vector<8x1xf32>
    %cst_80 = arith.constant 6.400000e+01 : f32
    %195 = vector.broadcast %cst_80 : f32 to vector<8x1xf32>
    %196 = arith.divf %194, %195 : vector<8x1xf32>
    %197 = arith.mulf %191, %191 : vector<8x1xf32>
    %198 = arith.subf %196, %197 : vector<8x1xf32>
    %cst_81 = arith.constant 0.000000e+00 : f32
    %199 = vector.broadcast %cst_81 : f32 to vector<8x1xf32>
    %200 = arith.maximumf %198, %199 : vector<8x1xf32>
    %201 = vector.broadcast %191 : vector<8x1xf32> to vector<8x64xf32>
    %202 = arith.subf %183, %201 : vector<8x64xf32>
    %cst_82 = arith.constant 9.99999974E-6 : f32
    %203 = vector.broadcast %cst_82 : f32 to vector<8x1xf32>
    %204 = arith.addf %200, %203 : vector<8x1xf32>
    %205 = math.rsqrt %204 : vector<8x1xf32>
    %206 = vector.broadcast %205 : vector<8x1xf32> to vector<8x64xf32>
    %207 = arith.mulf %202, %206 : vector<8x64xf32>
    %208 = vector.broadcast %185 : vector<1x64xf32> to vector<8x64xf32>
    %209 = arith.mulf %207, %208 : vector<8x64xf32>
    %210 = vector.broadcast %187 : vector<1x64xf32> to vector<8x64xf32>
    %211 = arith.addf %209, %210 : vector<8x64xf32>
    %212 = arith.truncf %211 : vector<8x64xf32> to vector<8x64xbf16>
    %c1_83 = arith.constant 1 : index
    %c0_84 = arith.constant 0 : index
    %c0_85 = arith.constant 0 : index
    %213 = vector.load %arg2[%c1_83, %c0_84, %c0_85] : memref<2x64x192xbf16, #tpu.memory_space<vmem>>, vector<1x64x192xbf16>
    %214 = vector.shape_cast %213 : vector<1x64x192xbf16> to vector<64x192xbf16>
    %cst_86 = arith.constant dense<0.000000e+00> : vector<8x192xf32>
    %215 = tpu.matmul %212, %214, %cst_86 {dimension_numbers = #tpu.dot_dimension_numbers<[1], [0], [0], [1], [0, 0, 1, 1], [], []>} : vector<8x64xbf16>, vector<64x192xbf16>, vector<8x192xf32> -> vector<8x192xf32>
    %c1_87 = arith.constant 1 : index
    %c0_88 = arith.constant 0 : index
    %c0_89 = arith.constant 0 : index
    %216 = vector.load %arg3[%c1_87, %c0_88, %c0_89] : memref<2x1x192xf32, #tpu.memory_space<vmem>>, vector<1x1x192xf32>
    %217 = vector.shape_cast %216 : vector<1x1x192xf32> to vector<1x192xf32>
    %218 = vector.broadcast %217 : vector<1x192xf32> to vector<8x192xf32>
    %219 = arith.addf %215, %218 : vector<8x192xf32>
    %220 = vector.extract_strided_slice %219 {offsets = [0, 0], sizes = [8, 64], strides = [1, 1]} : vector<8x192xf32> to vector<8x64xf32>
    %221 = vector.shape_cast %220 : vector<8x64xf32> to vector<1x8x64xf32>
    %222 = arith.truncf %221 : vector<1x8x64xf32> to vector<1x8x64xbf16>
    %223 = vector.extract_strided_slice %219 {offsets = [0, 64], sizes = [8, 64], strides = [1, 1]} : vector<8x192xf32> to vector<8x64xf32>
    %224 = vector.shape_cast %223 : vector<8x64xf32> to vector<1x8x64xf32>
    %225 = arith.truncf %224 : vector<1x8x64xf32> to vector<1x8x64xbf16>
    %226 = vector.extract_strided_slice %219 {offsets = [0, 128], sizes = [8, 64], strides = [1, 1]} : vector<8x192xf32> to vector<8x64xf32>
    %227 = vector.shape_cast %226 : vector<8x64xf32> to vector<1x8x64xf32>
    %228 = arith.truncf %227 : vector<1x8x64xf32> to vector<1x8x64xbf16>
    %229 = vector.extract_strided_slice %222 {offsets = [0, 0, 0], sizes = [1, 8, 16], strides = [1, 1, 1]} : vector<1x8x64xbf16> to vector<1x8x16xbf16>
    %230 = vector.extract_strided_slice %225 {offsets = [0, 0, 0], sizes = [1, 8, 16], strides = [1, 1, 1]} : vector<1x8x64xbf16> to vector<1x8x16xbf16>
    "tpu.trace_start"() <{level = 10 : i32, message = "bqd,bkd->bqk"}> : () -> ()
    %cst_90 = arith.constant dense<0.000000e+00> : vector<1x8x8xf32>
    %231 = tpu.matmul %229, %230, %cst_90 {dimension_numbers = #tpu.dot_dimension_numbers<[2], [2], [1], [1], [0, 0, 0, 1, 1, 1], [0], [0]>} : vector<1x8x16xbf16>, vector<1x8x16xbf16>, vector<1x8x8xf32> -> vector<1x8x8xf32>
    "tpu.trace_stop"() : () -> ()
    %232 = vector.shape_cast %8 : vector<8x8xf32> to vector<1x8x8xf32>
    %233 = arith.addf %231, %232 : vector<1x8x8xf32>
    %cst_91 = arith.constant dense<0xFF800000> : vector<1x8xf32>
    %234 = vector.multi_reduction <maximumf>, %233, %cst_91 [2] : vector<1x8x8xf32> to vector<1x8xf32>
    %235 = vector.shape_cast %234 : vector<1x8xf32> to vector<1x8x1xf32>
    %236 = vector.broadcast %235 : vector<1x8x1xf32> to vector<1x8x8xf32>
    %237 = arith.subf %233, %236 : vector<1x8x8xf32>
    %238 = math.exp %237 : vector<1x8x8xf32>
    %cst_92 = arith.constant dense<0.000000e+00> : vector<1x8xf32>
    %239 = vector.multi_reduction <add>, %238, %cst_92 [2] : vector<1x8x8xf32> to vector<1x8xf32>
    %240 = vector.shape_cast %239 : vector<1x8xf32> to vector<1x8x1xf32>
    %241 = tpu.reciprocal %240 {approx = true} : vector<1x8x1xf32> -> vector<1x8x1xf32>
    %242 = vector.broadcast %241 : vector<1x8x1xf32> to vector<1x8x8xf32>
    %243 = arith.mulf %238, %242 : vector<1x8x8xf32>
    %244 = arith.truncf %243 : vector<1x8x8xf32> to vector<1x8x8xbf16>
    %245 = vector.extract_strided_slice %228 {offsets = [0, 0, 0], sizes = [1, 8, 16], strides = [1, 1, 1]} : vector<1x8x64xbf16> to vector<1x8x16xbf16>
    "tpu.trace_start"() <{level = 10 : i32, message = "bqk,bkd->bqd"}> : () -> ()
    %cst_93 = arith.constant dense<0.000000e+00> : vector<1x8x16xf32>
    %246 = tpu.matmul %244, %245, %cst_93 {dimension_numbers = #tpu.dot_dimension_numbers<[2], [1], [1], [2], [0, 0, 0, 1, 1, 2], [0], [0]>} : vector<1x8x8xbf16>, vector<1x8x16xbf16>, vector<1x8x16xf32> -> vector<1x8x16xf32>
    "tpu.trace_stop"() : () -> ()
    %247 = vector.extract_strided_slice %222 {offsets = [0, 0, 16], sizes = [1, 8, 16], strides = [1, 1, 1]} : vector<1x8x64xbf16> to vector<1x8x16xbf16>
    %248 = vector.extract_strided_slice %225 {offsets = [0, 0, 16], sizes = [1, 8, 16], strides = [1, 1, 1]} : vector<1x8x64xbf16> to vector<1x8x16xbf16>
    "tpu.trace_start"() <{level = 10 : i32, message = "bqd,bkd->bqk"}> : () -> ()
    %cst_94 = arith.constant dense<0.000000e+00> : vector<1x8x8xf32>
    %249 = tpu.matmul %247, %248, %cst_94 {dimension_numbers = #tpu.dot_dimension_numbers<[2], [2], [1], [1], [0, 0, 0, 1, 1, 1], [0], [0]>} : vector<1x8x16xbf16>, vector<1x8x16xbf16>, vector<1x8x8xf32> -> vector<1x8x8xf32>
    "tpu.trace_stop"() : () -> ()
    %250 = vector.shape_cast %8 : vector<8x8xf32> to vector<1x8x8xf32>
    %251 = arith.addf %249, %250 : vector<1x8x8xf32>
    %cst_95 = arith.constant dense<0xFF800000> : vector<1x8xf32>
    %252 = vector.multi_reduction <maximumf>, %251, %cst_95 [2] : vector<1x8x8xf32> to vector<1x8xf32>
    %253 = vector.shape_cast %252 : vector<1x8xf32> to vector<1x8x1xf32>
    %254 = vector.broadcast %253 : vector<1x8x1xf32> to vector<1x8x8xf32>
    %255 = arith.subf %251, %254 : vector<1x8x8xf32>
    %256 = math.exp %255 : vector<1x8x8xf32>
    %cst_96 = arith.constant dense<0.000000e+00> : vector<1x8xf32>
    %257 = vector.multi_reduction <add>, %256, %cst_96 [2] : vector<1x8x8xf32> to vector<1x8xf32>
    %258 = vector.shape_cast %257 : vector<1x8xf32> to vector<1x8x1xf32>
    %259 = tpu.reciprocal %258 {approx = true} : vector<1x8x1xf32> -> vector<1x8x1xf32>
    %260 = vector.broadcast %259 : vector<1x8x1xf32> to vector<1x8x8xf32>
    %261 = arith.mulf %256, %260 : vector<1x8x8xf32>
    %262 = arith.truncf %261 : vector<1x8x8xf32> to vector<1x8x8xbf16>
    %263 = vector.extract_strided_slice %228 {offsets = [0, 0, 16], sizes = [1, 8, 16], strides = [1, 1, 1]} : vector<1x8x64xbf16> to vector<1x8x16xbf16>
    "tpu.trace_start"() <{level = 10 : i32, message = "bqk,bkd->bqd"}> : () -> ()
    %cst_97 = arith.constant dense<0.000000e+00> : vector<1x8x16xf32>
    %264 = tpu.matmul %262, %263, %cst_97 {dimension_numbers = #tpu.dot_dimension_numbers<[2], [1], [1], [2], [0, 0, 0, 1, 1, 2], [0], [0]>} : vector<1x8x8xbf16>, vector<1x8x16xbf16>, vector<1x8x16xf32> -> vector<1x8x16xf32>
    "tpu.trace_stop"() : () -> ()
    %265 = vector.extract_strided_slice %222 {offsets = [0, 0, 32], sizes = [1, 8, 16], strides = [1, 1, 1]} : vector<1x8x64xbf16> to vector<1x8x16xbf16>
    %266 = vector.extract_strided_slice %225 {offsets = [0, 0, 32], sizes = [1, 8, 16], strides = [1, 1, 1]} : vector<1x8x64xbf16> to vector<1x8x16xbf16>
    "tpu.trace_start"() <{level = 10 : i32, message = "bqd,bkd->bqk"}> : () -> ()
    %cst_98 = arith.constant dense<0.000000e+00> : vector<1x8x8xf32>
    %267 = tpu.matmul %265, %266, %cst_98 {dimension_numbers = #tpu.dot_dimension_numbers<[2], [2], [1], [1], [0, 0, 0, 1, 1, 1], [0], [0]>} : vector<1x8x16xbf16>, vector<1x8x16xbf16>, vector<1x8x8xf32> -> vector<1x8x8xf32>
    "tpu.trace_stop"() : () -> ()
    %268 = vector.shape_cast %8 : vector<8x8xf32> to vector<1x8x8xf32>
    %269 = arith.addf %267, %268 : vector<1x8x8xf32>
    %cst_99 = arith.constant dense<0xFF800000> : vector<1x8xf32>
    %270 = vector.multi_reduction <maximumf>, %269, %cst_99 [2] : vector<1x8x8xf32> to vector<1x8xf32>
    %271 = vector.shape_cast %270 : vector<1x8xf32> to vector<1x8x1xf32>
    %272 = vector.broadcast %271 : vector<1x8x1xf32> to vector<1x8x8xf32>
    %273 = arith.subf %269, %272 : vector<1x8x8xf32>
    %274 = math.exp %273 : vector<1x8x8xf32>
    %cst_100 = arith.constant dense<0.000000e+00> : vector<1x8xf32>
    %275 = vector.multi_reduction <add>, %274, %cst_100 [2] : vector<1x8x8xf32> to vector<1x8xf32>
    %276 = vector.shape_cast %275 : vector<1x8xf32> to vector<1x8x1xf32>
    %277 = tpu.reciprocal %276 {approx = true} : vector<1x8x1xf32> -> vector<1x8x1xf32>
    %278 = vector.broadcast %277 : vector<1x8x1xf32> to vector<1x8x8xf32>
    %279 = arith.mulf %274, %278 : vector<1x8x8xf32>
    %280 = arith.truncf %279 : vector<1x8x8xf32> to vector<1x8x8xbf16>
    %281 = vector.extract_strided_slice %228 {offsets = [0, 0, 32], sizes = [1, 8, 16], strides = [1, 1, 1]} : vector<1x8x64xbf16> to vector<1x8x16xbf16>
    "tpu.trace_start"() <{level = 10 : i32, message = "bqk,bkd->bqd"}> : () -> ()
    %cst_101 = arith.constant dense<0.000000e+00> : vector<1x8x16xf32>
    %282 = tpu.matmul %280, %281, %cst_101 {dimension_numbers = #tpu.dot_dimension_numbers<[2], [1], [1], [2], [0, 0, 0, 1, 1, 2], [0], [0]>} : vector<1x8x8xbf16>, vector<1x8x16xbf16>, vector<1x8x16xf32> -> vector<1x8x16xf32>
    "tpu.trace_stop"() : () -> ()
    %283 = vector.extract_strided_slice %222 {offsets = [0, 0, 48], sizes = [1, 8, 16], strides = [1, 1, 1]} : vector<1x8x64xbf16> to vector<1x8x16xbf16>
    %284 = vector.extract_strided_slice %225 {offsets = [0, 0, 48], sizes = [1, 8, 16], strides = [1, 1, 1]} : vector<1x8x64xbf16> to vector<1x8x16xbf16>
    "tpu.trace_start"() <{level = 10 : i32, message = "bqd,bkd->bqk"}> : () -> ()
    %cst_102 = arith.constant dense<0.000000e+00> : vector<1x8x8xf32>
    %285 = tpu.matmul %283, %284, %cst_102 {dimension_numbers = #tpu.dot_dimension_numbers<[2], [2], [1], [1], [0, 0, 0, 1, 1, 1], [0], [0]>} : vector<1x8x16xbf16>, vector<1x8x16xbf16>, vector<1x8x8xf32> -> vector<1x8x8xf32>
    "tpu.trace_stop"() : () -> ()
    %286 = vector.shape_cast %8 : vector<8x8xf32> to vector<1x8x8xf32>
    %287 = arith.addf %285, %286 : vector<1x8x8xf32>
    %cst_103 = arith.constant dense<0xFF800000> : vector<1x8xf32>
    %288 = vector.multi_reduction <maximumf>, %287, %cst_103 [2] : vector<1x8x8xf32> to vector<1x8xf32>
    %289 = vector.shape_cast %288 : vector<1x8xf32> to vector<1x8x1xf32>
    %290 = vector.broadcast %289 : vector<1x8x1xf32> to vector<1x8x8xf32>
    %291 = arith.subf %287, %290 : vector<1x8x8xf32>
    %292 = math.exp %291 : vector<1x8x8xf32>
    %cst_104 = arith.constant dense<0.000000e+00> : vector<1x8xf32>
    %293 = vector.multi_reduction <add>, %292, %cst_104 [2] : vector<1x8x8xf32> to vector<1x8xf32>
    %294 = vector.shape_cast %293 : vector<1x8xf32> to vector<1x8x1xf32>
    %295 = tpu.reciprocal %294 {approx = true} : vector<1x8x1xf32> -> vector<1x8x1xf32>
    %296 = vector.broadcast %295 : vector<1x8x1xf32> to vector<1x8x8xf32>
    %297 = arith.mulf %292, %296 : vector<1x8x8xf32>
    %298 = arith.truncf %297 : vector<1x8x8xf32> to vector<1x8x8xbf16>
    %299 = vector.extract_strided_slice %228 {offsets = [0, 0, 48], sizes = [1, 8, 16], strides = [1, 1, 1]} : vector<1x8x64xbf16> to vector<1x8x16xbf16>
    "tpu.trace_start"() <{level = 10 : i32, message = "bqk,bkd->bqd"}> : () -> ()
    %cst_105 = arith.constant dense<0.000000e+00> : vector<1x8x16xf32>
    %300 = tpu.matmul %298, %299, %cst_105 {dimension_numbers = #tpu.dot_dimension_numbers<[2], [1], [1], [2], [0, 0, 0, 1, 1, 2], [0], [0]>} : vector<1x8x8xbf16>, vector<1x8x16xbf16>, vector<1x8x16xf32> -> vector<1x8x16xf32>
    "tpu.trace_stop"() : () -> ()
    %301 = tpu.concatenate %246, %264, %282, %300 in 2 : vector<1x8x16xf32>, vector<1x8x16xf32>, vector<1x8x16xf32>, vector<1x8x16xf32> -> vector<1x8x64xf32>
    %302 = vector.shape_cast %301 : vector<1x8x64xf32> to vector<8x64xf32>
    %303 = arith.truncf %302 : vector<8x64xf32> to vector<8x64xbf16>
    %c1_106 = arith.constant 1 : index
    %c0_107 = arith.constant 0 : index
    %c0_108 = arith.constant 0 : index
    %304 = vector.load %arg4[%c1_106, %c0_107, %c0_108] : memref<2x64x64xbf16, #tpu.memory_space<vmem>>, vector<1x64x64xbf16>
    %305 = vector.shape_cast %304 : vector<1x64x64xbf16> to vector<64x64xbf16>
    %cst_109 = arith.constant dense<0.000000e+00> : vector<8x64xf32>
    %306 = tpu.matmul %303, %305, %cst_109 {dimension_numbers = #tpu.dot_dimension_numbers<[1], [0], [0], [1], [0, 0, 1, 1], [], []>} : vector<8x64xbf16>, vector<64x64xbf16>, vector<8x64xf32> -> vector<8x64xf32>
    %307 = arith.addf %183, %306 : vector<8x64xf32>
    %c1_110 = arith.constant 1 : index
    %c0_111 = arith.constant 0 : index
    %c0_112 = arith.constant 0 : index
    %308 = vector.load %arg5[%c1_110, %c0_111, %c0_112] : memref<2x1x64xf32, #tpu.memory_space<vmem>>, vector<1x1x64xf32>
    %309 = vector.shape_cast %308 : vector<1x1x64xf32> to vector<1x64xf32>
    %310 = vector.broadcast %309 : vector<1x64xf32> to vector<8x64xf32>
    %311 = arith.addf %307, %310 : vector<8x64xf32>
    %c1_113 = arith.constant 1 : index
    %c0_114 = arith.constant 0 : index
    %c0_115 = arith.constant 0 : index
    %312 = vector.load %arg8[%c1_113, %c0_114, %c0_115] : memref<2x1x64xf32, #tpu.memory_space<vmem>>, vector<1x1x64xf32>
    %313 = vector.shape_cast %312 : vector<1x1x64xf32> to vector<1x64xf32>
    %c1_116 = arith.constant 1 : index
    %c0_117 = arith.constant 0 : index
    %c0_118 = arith.constant 0 : index
    %314 = vector.load %arg9[%c1_116, %c0_117, %c0_118] : memref<2x1x64xf32, #tpu.memory_space<vmem>>, vector<1x1x64xf32>
    %315 = vector.shape_cast %314 : vector<1x1x64xf32> to vector<1x64xf32>
    %cst_119 = arith.constant dense<0.000000e+00> : vector<8xf32>
    %316 = vector.multi_reduction <add>, %311, %cst_119 [1] : vector<8x64xf32> to vector<8xf32>
    %317 = vector.shape_cast %316 : vector<8xf32> to vector<8x1xf32>
    %cst_120 = arith.constant 6.400000e+01 : f32
    %318 = vector.broadcast %cst_120 : f32 to vector<8x1xf32>
    %319 = arith.divf %317, %318 : vector<8x1xf32>
    %320 = arith.mulf %311, %311 : vector<8x64xf32>
    %cst_121 = arith.constant dense<0.000000e+00> : vector<8xf32>
    %321 = vector.multi_reduction <add>, %320, %cst_121 [1] : vector<8x64xf32> to vector<8xf32>
    %322 = vector.shape_cast %321 : vector<8xf32> to vector<8x1xf32>
    %cst_122 = arith.constant 6.400000e+01 : f32
    %323 = vector.broadcast %cst_122 : f32 to vector<8x1xf32>
    %324 = arith.divf %322, %323 : vector<8x1xf32>
    %325 = arith.mulf %319, %319 : vector<8x1xf32>
    %326 = arith.subf %324, %325 : vector<8x1xf32>
    %cst_123 = arith.constant 0.000000e+00 : f32
    %327 = vector.broadcast %cst_123 : f32 to vector<8x1xf32>
    %328 = arith.maximumf %326, %327 : vector<8x1xf32>
    %329 = vector.broadcast %319 : vector<8x1xf32> to vector<8x64xf32>
    %330 = arith.subf %311, %329 : vector<8x64xf32>
    %cst_124 = arith.constant 9.99999974E-6 : f32
    %331 = vector.broadcast %cst_124 : f32 to vector<8x1xf32>
    %332 = arith.addf %328, %331 : vector<8x1xf32>
    %333 = math.rsqrt %332 : vector<8x1xf32>
    %334 = vector.broadcast %333 : vector<8x1xf32> to vector<8x64xf32>
    %335 = arith.mulf %330, %334 : vector<8x64xf32>
    %336 = vector.broadcast %313 : vector<1x64xf32> to vector<8x64xf32>
    %337 = arith.mulf %335, %336 : vector<8x64xf32>
    %338 = vector.broadcast %315 : vector<1x64xf32> to vector<8x64xf32>
    %339 = arith.addf %337, %338 : vector<8x64xf32>
    %340 = arith.truncf %339 : vector<8x64xf32> to vector<8x64xbf16>
    %c1_125 = arith.constant 1 : index
    %c0_126 = arith.constant 0 : index
    %c0_127 = arith.constant 0 : index
    %341 = vector.load %arg10[%c1_125, %c0_126, %c0_127] : memref<2x64x128xbf16, #tpu.memory_space<vmem>>, vector<1x64x128xbf16>
    %342 = vector.shape_cast %341 : vector<1x64x128xbf16> to vector<64x128xbf16>
    %cst_128 = arith.constant dense<0.000000e+00> : vector<8x128xf32>
    %343 = tpu.matmul %340, %342, %cst_128 {dimension_numbers = #tpu.dot_dimension_numbers<[1], [0], [0], [1], [0, 0, 1, 1], [], []>} : vector<8x64xbf16>, vector<64x128xbf16>, vector<8x128xf32> -> vector<8x128xf32>
    %c1_129 = arith.constant 1 : index
    %c0_130 = arith.constant 0 : index
    %c0_131 = arith.constant 0 : index
    %344 = vector.load %arg11[%c1_129, %c0_130, %c0_131] : memref<2x1x128xf32, #tpu.memory_space<vmem>>, vector<1x1x128xf32>
    %345 = vector.shape_cast %344 : vector<1x1x128xf32> to vector<1x128xf32>
    %346 = vector.broadcast %345 : vector<1x128xf32> to vector<8x128xf32>
    %347 = arith.addf %343, %346 : vector<8x128xf32>
    %cst_132 = arith.constant 0.000000e+00 : f32
    %348 = vector.broadcast %cst_132 : f32 to vector<8x128xf32>
    %349 = arith.maximumf %347, %348 : vector<8x128xf32>
    %350 = arith.truncf %349 : vector<8x128xf32> to vector<8x128xbf16>
    %c1_133 = arith.constant 1 : index
    %c0_134 = arith.constant 0 : index
    %c0_135 = arith.constant 0 : index
    %351 = vector.load %arg12[%c1_133, %c0_134, %c0_135] : memref<2x128x64xbf16, #tpu.memory_space<vmem>>, vector<1x128x64xbf16>
    %352 = vector.shape_cast %351 : vector<1x128x64xbf16> to vector<128x64xbf16>
    %cst_136 = arith.constant dense<0.000000e+00> : vector<8x64xf32>
    %353 = tpu.matmul %350, %352, %cst_136 {dimension_numbers = #tpu.dot_dimension_numbers<[1], [0], [0], [1], [0, 0, 1, 1], [], []>} : vector<8x128xbf16>, vector<128x64xbf16>, vector<8x64xf32> -> vector<8x64xf32>
    %c1_137 = arith.constant 1 : index
    %c0_138 = arith.constant 0 : index
    %c0_139 = arith.constant 0 : index
    %354 = vector.load %arg13[%c1_137, %c0_138, %c0_139] : memref<2x1x64xf32, #tpu.memory_space<vmem>>, vector<1x1x64xf32>
    %355 = vector.shape_cast %354 : vector<1x1x64xf32> to vector<1x64xf32>
    %356 = vector.broadcast %355 : vector<1x64xf32> to vector<8x64xf32>
    %357 = arith.addf %353, %356 : vector<8x64xf32>
    %358 = arith.addf %311, %357 : vector<8x64xf32>
    %c0_140 = arith.constant 0 : index
    %c0_141 = arith.constant 0 : index
    %359 = vector.load %arg14[%c0_140, %c0_141] : memref<1x64xf32, #tpu.memory_space<vmem>>, vector<1x64xf32>
    %c0_142 = arith.constant 0 : index
    %c0_143 = arith.constant 0 : index
    %360 = vector.load %arg15[%c0_142, %c0_143] : memref<1x64xf32, #tpu.memory_space<vmem>>, vector<1x64xf32>
    %cst_144 = arith.constant dense<0.000000e+00> : vector<8xf32>
    %361 = vector.multi_reduction <add>, %358, %cst_144 [1] : vector<8x64xf32> to vector<8xf32>
    %362 = vector.shape_cast %361 : vector<8xf32> to vector<8x1xf32>
    %cst_145 = arith.constant 6.400000e+01 : f32
    %363 = vector.broadcast %cst_145 : f32 to vector<8x1xf32>
    %364 = arith.divf %362, %363 : vector<8x1xf32>
    %365 = arith.mulf %358, %358 : vector<8x64xf32>
    %cst_146 = arith.constant dense<0.000000e+00> : vector<8xf32>
    %366 = vector.multi_reduction <add>, %365, %cst_146 [1] : vector<8x64xf32> to vector<8xf32>
    %367 = vector.shape_cast %366 : vector<8xf32> to vector<8x1xf32>
    %cst_147 = arith.constant 6.400000e+01 : f32
    %368 = vector.broadcast %cst_147 : f32 to vector<8x1xf32>
    %369 = arith.divf %367, %368 : vector<8x1xf32>
    %370 = arith.mulf %364, %364 : vector<8x1xf32>
    %371 = arith.subf %369, %370 : vector<8x1xf32>
    %cst_148 = arith.constant 0.000000e+00 : f32
    %372 = vector.broadcast %cst_148 : f32 to vector<8x1xf32>
    %373 = arith.maximumf %371, %372 : vector<8x1xf32>
    %374 = vector.broadcast %364 : vector<8x1xf32> to vector<8x64xf32>
    %375 = arith.subf %358, %374 : vector<8x64xf32>
    %cst_149 = arith.constant 9.99999974E-6 : f32
    %376 = vector.broadcast %cst_149 : f32 to vector<8x1xf32>
    %377 = arith.addf %373, %376 : vector<8x1xf32>
    %378 = math.rsqrt %377 : vector<8x1xf32>
    %379 = vector.broadcast %378 : vector<8x1xf32> to vector<8x64xf32>
    %380 = arith.mulf %375, %379 : vector<8x64xf32>
    %381 = vector.broadcast %359 : vector<1x64xf32> to vector<8x64xf32>
    %382 = arith.mulf %380, %381 : vector<8x64xf32>
    %383 = vector.broadcast %360 : vector<1x64xf32> to vector<8x64xf32>
    %384 = arith.addf %382, %383 : vector<8x64xf32>
    %385 = arith.truncf %384 : vector<8x64xf32> to vector<8x64xbf16>
    %c0_150 = arith.constant 0 : index
    %c0_151 = arith.constant 0 : index
    %386 = vector.load %arg16[%c0_150, %c0_151] : memref<64x512xbf16, #tpu.memory_space<vmem>>, vector<64x512xbf16>
    %cst_152 = arith.constant dense<0.000000e+00> : vector<8x512xf32>
    %387 = tpu.matmul %385, %386, %cst_152 {dimension_numbers = #tpu.dot_dimension_numbers<[1], [0], [0], [1], [0, 0, 1, 1], [], []>} : vector<8x64xbf16>, vector<64x512xbf16>, vector<8x512xf32> -> vector<8x512xf32>
    %c0_153 = arith.constant 0 : index
    %c0_154 = arith.constant 0 : index
    %388 = vector.load %arg17[%c0_153, %c0_154] : memref<1x512xf32, #tpu.memory_space<vmem>>, vector<1x512xf32>
    %389 = vector.broadcast %388 : vector<1x512xf32> to vector<8x512xf32>
    %390 = arith.addf %387, %389 : vector<8x512xf32>
    %391 = vector.shape_cast %390 : vector<8x512xf32> to vector<1x8x512xf32>
    %c0_155 = arith.constant 0 : index
    %c0_156 = arith.constant 0 : index
    %c0_157 = arith.constant 0 : index
    %392 = vector.load %arg18[%c0_155, %c0_156, %c0_157] : memref<1x8x512xf32, #tpu.memory_space<vmem>>, vector<1x8x512xf32>
    tpu.vector_store %arg18[%c0_155, %c0_156, %c0_157], %391 {strides = array<i32>} : memref<1x8x512xf32, #tpu.memory_space<vmem>>, vector<1x8x512xf32>,
    return
  }
  func.func @transform_0(%arg0: i32) -> (i32, i32, i32) {
    %c0_i32 = arith.constant 0 : i32
    %c0_i32_0 = arith.constant 0 : i32
    %c0_i32_1 = arith.constant 0 : i32
    return %arg0, %c0_i32, %c0_i32_0 : i32, i32, i32
  }
  func.func @transform_1(%arg0: i32) -> (i32, i32, i32) {
    %c0_i32 = arith.constant 0 : i32
    %c0_i32_0 = arith.constant 0 : i32
    %c0_i32_1 = arith.constant 0 : i32
    %c0_i32_2 = arith.constant 0 : i32
    return %c0_i32, %c0_i32_0, %c0_i32_1 : i32, i32, i32
  }
  func.func @transform_2(%arg0: i32) -> (i32, i32, i32) {
    %c0_i32 = arith.constant 0 : i32
    %c0_i32_0 = arith.constant 0 : i32
    %c0_i32_1 = arith.constant 0 : i32
    %c0_i32_2 = arith.constant 0 : i32
    return %c0_i32, %c0_i32_0, %c0_i32_1 : i32, i32, i32
  }
  func.func @transform_3(%arg0: i32) -> (i32, i32, i32) {
    %c0_i32 = arith.constant 0 : i32
    %c0_i32_0 = arith.constant 0 : i32
    %c0_i32_1 = arith.constant 0 : i32
    %c0_i32_2 = arith.constant 0 : i32
    return %c0_i32, %c0_i32_0, %c0_i32_1 : i32, i32, i32
  }
  func.func @transform_4(%arg0: i32) -> (i32, i32, i32) {
    %c0_i32 = arith.constant 0 : i32
    %c0_i32_0 = arith.constant 0 : i32
    %c0_i32_1 = arith.constant 0 : i32
    %c0_i32_2 = arith.constant 0 : i32
    return %c0_i32, %c0_i32_0, %c0_i32_1 : i32, i32, i32
  }
  func.func @transform_5(%arg0: i32) -> (i32, i32, i32) {
    %c0_i32 = arith.constant 0 : i32
    %c0_i32_0 = arith.constant 0 : i32
    %c0_i32_1 = arith.constant 0 : i32
    %c0_i32_2 = arith.constant 0 : i32
    return %c0_i32, %c0_i32_0, %c0_i32_1 : i32, i32, i32
  }
  func.func @transform_6(%arg0: i32) -> (i32, i32, i32) {
    %c0_i32 = arith.constant 0 : i32
    %c0_i32_0 = arith.constant 0 : i32
    %c0_i32_1 = arith.constant 0 : i32
    %c0_i32_2 = arith.constant 0 : i32
    return %c0_i32, %c0_i32_0, %c0_i32_1 : i32, i32, i32
  }
  func.func @transform_7(%arg0: i32) -> (i32, i32, i32) {
    %c0_i32 = arith.constant 0 : i32
    %c0_i32_0 = arith.constant 0 : i32
    %c0_i32_1 = arith.constant 0 : i32
    %c0_i32_2 = arith.constant 0 : i32
    return %c0_i32, %c0_i32_0, %c0_i32_1 : i32, i32, i32
  }
  func.func @transform_8(%arg0: i32) -> (i32, i32, i32) {
    %c0_i32 = arith.constant 0 : i32
    %c0_i32_0 = arith.constant 0 : i32
    %c0_i32_1 = arith.constant 0 : i32
    %c0_i32_2 = arith.constant 0 : i32
    return %c0_i32, %c0_i32_0, %c0_i32_1 : i32, i32, i32
  }
  func.func @transform_9(%arg0: i32) -> (i32, i32, i32) {
    %c0_i32 = arith.constant 0 : i32
    %c0_i32_0 = arith.constant 0 : i32
    %c0_i32_1 = arith.constant 0 : i32
    %c0_i32_2 = arith.constant 0 : i32
    return %c0_i32, %c0_i32_0, %c0_i32_1 : i32, i32, i32
  }
  func.func @transform_10(%arg0: i32) -> (i32, i32, i32) {
    %c0_i32 = arith.constant 0 : i32
    %c0_i32_0 = arith.constant 0 : i32
    %c0_i32_1 = arith.constant 0 : i32
    %c0_i32_2 = arith.constant 0 : i32
    return %c0_i32, %c0_i32_0, %c0_i32_1 : i32, i32, i32
  }
  func.func @transform_11(%arg0: i32) -> (i32, i32, i32) {
    %c0_i32 = arith.constant 0 : i32
    %c0_i32_0 = arith.constant 0 : i32
    %c0_i32_1 = arith.constant 0 : i32
    %c0_i32_2 = arith.constant 0 : i32
    return %c0_i32, %c0_i32_0, %c0_i32_1 : i32, i32, i32
  }
  func.func @transform_12(%arg0: i32) -> (i32, i32, i32) {
    %c0_i32 = arith.constant 0 : i32
    %c0_i32_0 = arith.constant 0 : i32
    %c0_i32_1 = arith.constant 0 : i32
    %c0_i32_2 = arith.constant 0 : i32
    return %c0_i32, %c0_i32_0, %c0_i32_1 : i32, i32, i32
  }
  func.func @transform_13(%arg0: i32) -> (i32, i32) {
    %c0_i32 = arith.constant 0 : i32
    %c0_i32_0 = arith.constant 0 : i32
    %c0_i32_1 = arith.constant 0 : i32
    return %c0_i32, %c0_i32_0 : i32, i32
  }
  func.func @transform_14(%arg0: i32) -> (i32, i32) {
    %c0_i32 = arith.constant 0 : i32
    %c0_i32_0 = arith.constant 0 : i32
    %c0_i32_1 = arith.constant 0 : i32
    return %c0_i32, %c0_i32_0 : i32, i32
  }
  func.func @transform_15(%arg0: i32) -> (i32, i32) {
    %c0_i32 = arith.constant 0 : i32
    %c0_i32_0 = arith.constant 0 : i32
    %c0_i32_1 = arith.constant 0 : i32
    return %c0_i32, %c0_i32_0 : i32, i32
  }
  func.func @transform_16(%arg0: i32) -> (i32, i32) {
    %c0_i32 = arith.constant 0 : i32
    %c0_i32_0 = arith.constant 0 : i32
    %c0_i32_1 = arith.constant 0 : i32
    return %c0_i32, %c0_i32_0 : i32, i32
  }
  func.func @transform_17(%arg0: i32) -> (i32, i32, i32) {
    %c0_i32 = arith.constant 0 : i32
    %c0_i32_0 = arith.constant 0 : i32
    %c0_i32_1 = arith.constant 0 : i32
    return %arg0, %c0_i32, %c0_i32_0 : i32, i32, i32
  }
}

</mosaic_0001>

<llo_original>
// kernel: tpu_custom_call.1
$region0: #{tpu_custom_call.1}
  #allocation0 [shape = 'u32[]', space=smem, size = 0x4, offset = 0x4, fixed_abs, tag = 'smem constant byte address 0x4 - core index']
  #allocation1 [shape = 'u32[144,128]{1,0:T(1,128)}', space=vmem, size = 0x12000, scoped, tag = 'internal scratch']
  %s0 = inlined_call_operand.hbm [shape: bf16[2,8,64], index: 0, kind: input, shape index: {}]
  %s1 = inlined_call_operand.vmem [shape: bf16[2,64,192], index: 1, kind: input, shape index: {}]
  %s2 = inlined_call_operand.vmem [shape: f32[2,1,192], index: 2, kind: input, shape index: {}]
  %s3 = inlined_call_operand.vmem [shape: bf16[2,64,64], index: 3, kind: input, shape index: {}]
  %s4 = inlined_call_operand.vmem [shape: f32[2,1,64], index: 4, kind: input, shape index: {}]
  %s5 = inlined_call_operand.vmem [shape: f32[2,1,64], index: 5, kind: input, shape index: {}]
  %s6 = inlined_call_operand.vmem [shape: f32[2,1,64], index: 6, kind: input, shape index: {}]
  %s7 = inlined_call_operand.vmem [shape: f32[2,1,64], index: 7, kind: input, shape index: {}]
  %s8 = inlined_call_operand.vmem [shape: f32[2,1,64], index: 8, kind: input, shape index: {}]
  %s9 = inlined_call_operand.hbm [shape: bf16[2,64,128], index: 9, kind: input, shape index: {}]
  %s10 = inlined_call_operand.vmem [shape: f32[2,1,128], index: 10, kind: input, shape index: {}]
  %s11 = inlined_call_operand.vmem [shape: bf16[2,128,64], index: 11, kind: input, shape index: {}]
  %s12 = inlined_call_operand.vmem [shape: f32[2,1,64], index: 12, kind: input, shape index: {}]
  %s13 = inlined_call_operand.vmem [shape: f32[1,64], index: 13, kind: input, shape index: {}]
  %s14 = inlined_call_operand.vmem [shape: f32[1,64], index: 14, kind: input, shape index: {}]
  %s15 = inlined_call_operand.hbm [shape: bf16[64,512], index: 15, kind: input, shape index: {}]
  %s16 = inlined_call_operand.vmem [shape: f32[1,512], index: 16, kind: input, shape index: {}]
  %s17 = inlined_call_operand.hbm [shape: f32[2,8,512], index: 17, kind: output, shape index: {}]
  %s18 = sld [smem:[#allocation0]]
  $region113: #{tpu_custom_call.1} parent=0
    _
  %s20 = ssub.s32 1, %s18
  %s21 = scalar_select 0, %s20, %s18
  $region1: #{tpu_custom_call.1} parent=0
    #allocation2 [shape = 'u8[4096]{0}', space=vmem, size = 0x1000, scoped, tag = 'input window, operand 0']
    #allocation3 [shape = 's32[2]{0}', space=sflag, size = 0x8, scoped, tag = 'scoped memory for tpu_custom_call.1']
    #allocation4 [shape = 's32[2]{0}', space=sflag, size = 0x8, scoped, tag = 'scoped memory for tpu_custom_call.1']
    #allocation5 [shape = 'u8[32768]{0}', space=vmem, size = 0x8000, scoped, tag = 'input window, operand 9, single buffered']
    #allocation6 [shape = 's32[1]{0}', space=sflag, size = 0x4, scoped, tag = 'scoped memory for tpu_custom_call.1']
    #allocation7 [shape = 'u8[65536]{0}', space=vmem, size = 0x10000, scoped, tag = 'input window, operand 15, single buffered']
    #allocation8 [shape = 'u8[32768]{0}', space=vmem, size = 0x8000, scoped, tag = 'output window, operand 0']
    %22 = vsyncpa [#allocation3], 0
    %s23 = scalar_lea.sflag [#allocation3], 1
    %24 = vsyncpa %s23, 0
    %25 = vsyncpa [#allocation6], 0
    %26 = vsyncpa [#allocation4], 0
    %s27 = scalar_lea.sflag [#allocation4], 1
    %28 = vsyncpa %s27, 0
    loop: start=0, step=1, limit=4
    $region2: #{tpu_custom_call.1} parent=1 // loop_pre_header
      _
    $region3: #{tpu_custom_call.1} parent=1 // loop_header
      %s30 = sphi 0, %s34
      %p31 = scmp.ge.s32.totalorder %s30, 4
      %s40 = sphi 0, %s42
      %s43 = sphi 0, %s40
      %s44 = sphi 0, %s43
      %s60 = sphi 0, %s44
      %s64 = sphi 0, %s64
      %s66 = sphi 0, %s64
      %s67 = sphi 0, %s66
      %s81 = sphi 0, %s67
      %s85 = sphi 0, %s85
      %s87 = sphi 0, %s85
      %s88 = sphi 0, %s87
      %s102 = sphi 0, %s88
      %s106 = sphi 0, %s106
      %s108 = sphi 0, %s106
      %s109 = sphi 0, %s108
      %s123 = sphi 0, %s109
      %s127 = sphi 0, %s127
      %s129 = sphi 0, %s127
      %s130 = sphi 0, %s129
      %s144 = sphi 0, %s130
      %s148 = sphi 0, %s148
      %s150 = sphi 0, %s148
      %s151 = sphi 0, %s150
      %s165 = sphi 0, %s151
      %s169 = sphi 0, %s169
      %s171 = sphi 0, %s169
      %s172 = sphi 0, %s171
      %s186 = sphi 0, %s172
      %s190 = sphi 0, %s190
      %s192 = sphi 0, %s190
      %s193 = sphi 0, %s192
      %s207 = sphi 0, %s193
      %s211 = sphi 0, %s211
      %s213 = sphi 0, %s211
      %s214 = sphi 0, %s213
      %s228 = sphi 0, %s214
      %s232 = sphi 0, %s232
      %s234 = sphi 0, %s232
      %s235 = sphi 0, %s234
      %s249 = sphi 0, %s235
      %s253 = sphi 0, %s253
      %s255 = sphi 0, %s253
      %s256 = sphi 0, %s255
      %s270 = sphi 0, %s256
      %s274 = sphi 0, %s274
      %s276 = sphi 0, %s274
      %s277 = sphi 0, %s276
      %s291 = sphi 0, %s277
      %s295 = sphi 0, %s295
      %s297 = sphi 0, %s295
      %s298 = sphi 0, %s297
      %s312 = sphi 0, %s298
      %s316 = sphi 0, %s316
      %s318 = sphi 0, %s316
      %s319 = sphi 0, %s318
      %s333 = sphi 0, %s319
      %s337 = sphi 0, %s337
      %s339 = sphi 0, %s337
      %s340 = sphi 0, %s339
      %s354 = sphi 0, %s340
      %s358 = sphi 0, %s358
      %s360 = sphi 0, %s358
      %s361 = sphi 0, %s360
      %s375 = sphi 0, %s361
      %s379 = sphi 0, %s379
      %s381 = sphi 0, %s379
      %s382 = sphi 0, %s381
      %s396 = sphi 0, %s382
      %s402 = sphi 0, %s404
      %s405 = sphi 0, %s402
      %s406 = sphi 0, %s405
      %s422 = sphi 0, %s406
    $region4: #{tpu_custom_call.1} parent=1 // loop_header_branch
      %33 = sbr.rel (%p31) target = $region8
    $region5: #{tpu_custom_call.1} parent=1 // loop_body
      %s35 = ssub.s32 %s30, 1
      %s36 = ssub.s32 %s30, 2
      %s37 = sadd.s32 %s30, 1
      %s38 = ssub.s32 %s30, %s37
      %p39 = scmp.eq.s32.totalorder %s38, 0
      %s41 = sadd.s32 %s40, 1
      %s42 = scalar_select %p39, %s40, %s41
      %p45 = pneg %p39
      %p46 = scmp.eq.s32.totalorder %s30, 1
      %p47 = por %p45, %p46
      %p48 = scmp.ne.s32.totalorder %s40, %s43
      %p49 = scmp.eq.s32.totalorder %s30, 0
      %p50 = por %p48, %p49
      %p51 = scmp.ne.s32.totalorder %s40, %s43
      %p52 = scmp.eq.s32.totalorder %s35, 1
      %p53 = por %p51, %p52
      %p54 = scmp.ne.s32.totalorder %s43, %s44
      %p55 = scmp.eq.s32.totalorder %s35, 0
      %p56 = por %p54, %p55
      %p57 = scmp.ne.s32.totalorder %s43, %s44
      %p58 = scmp.eq.s32.totalorder %s36, 1
      %p59 = por %p57, %p58
      %p61 = scmp.ne.s32.totalorder %s44, %s60
      %p62 = scmp.eq.s32.totalorder %s36, 0
      %p63 = por %p61, %p62
      %s65 = sadd.s32 %s64, 1
      %p68 = scmp.eq.s32.totalorder %s30, 1
      %p69 = scmp.ne.s32.totalorder %s64, %s66
      %p70 = scmp.eq.s32.totalorder %s30, 0
      %p71 = por %p69, %p70
      %p72 = scmp.ne.s32.totalorder %s64, %s66
      %p73 = scmp.eq.s32.totalorder %s35, 1
      %p74 = por %p72, %p73
      %p75 = scmp.ne.s32.totalorder %s66, %s67
      %p76 = scmp.eq.s32.totalorder %s35, 0
      %p77 = por %p75, %p76
      %p78 = scmp.ne.s32.totalorder %s66, %s67
      %p79 = scmp.eq.s32.totalorder %s36, 1
      %p80 = por %p78, %p79
      %p82 = scmp.ne.s32.totalorder %s67, %s81
      %p83 = scmp.eq.s32.totalorder %s36, 0
      %p84 = por %p82, %p83
      %s86 = sadd.s32 %s85, 1
      %p89 = scmp.eq.s32.totalorder %s30, 1
      %p90 = scmp.ne.s32.totalorder %s85, %s87
      %p91 = scmp.eq.s32.totalorder %s30, 0
      %p92 = por %p90, %p91
      %p93 = scmp.ne.s32.totalorder %s85, %s87
      %p94 = scmp.eq.s32.totalorder %s35, 1
      %p95 = por %p93, %p94
      %p96 = scmp.ne.s32.totalorder %s87, %s88
      %p97 = scmp.eq.s32.totalorder %s35, 0
      %p98 = por %p96, %p97
      %p99 = scmp.ne.s32.totalorder %s87, %s88
      %p100 = scmp.eq.s32.totalorder %s36, 1
      %p101 = por %p99, %p100
      %p103 = scmp.ne.s32.totalorder %s88, %s102
      %p104 = scmp.eq.s32.totalorder %s36, 0
      %p105 = por %p103, %p104
      %s107 = sadd.s32 %s106, 1
      %p110 = scmp.eq.s32.totalorder %s30, 1
      %p111 = scmp.ne.s32.totalorder %s106, %s108
      %p112 = scmp.eq.s32.totalorder %s30, 0
      %p113 = por %p111, %p112
      %p114 = scmp.ne.s32.totalorder %s106, %s108
      %p115 = scmp.eq.s32.totalorder %s35, 1
      %p116 = por %p114, %p115
      %p117 = scmp.ne.s32.totalorder %s108, %s109
      %p118 = scmp.eq.s32.totalorder %s35, 0
      %p119 = por %p117, %p118
      %p120 = scmp.ne.s32.totalorder %s108, %s109
      %p121 = scmp.eq.s32.totalorder %s36, 1
      %p122 = por %p120, %p121
      %p124 = scmp.ne.s32.totalorder %s109, %s123
      %p125 = scmp.eq.s32.totalorder %s36, 0
      %p126 = por %p124, %p125
      %s128 = sadd.s32 %s127, 1
      %p131 = scmp.eq.s32.totalorder %s30, 1
      %p132 = scmp.ne.s32.totalorder %s127, %s129
      %p133 = scmp.eq.s32.totalorder %s30, 0
      %p134 = por %p132, %p133
      %p135 = scmp.ne.s32.totalorder %s127, %s129
      %p136 = scmp.eq.s32.totalorder %s35, 1
      %p137 = por %p135, %p136
      %p138 = scmp.ne.s32.totalorder %s129, %s130
      %p139 = scmp.eq.s32.totalorder %s35, 0
      %p140 = por %p138, %p139
      %p141 = scmp.ne.s32.totalorder %s129, %s130
      %p142 = scmp.eq.s32.totalorder %s36, 1
      %p143 = por %p141, %p142
      %p145 = scmp.ne.s32.totalorder %s130, %s144
      %p146 = scmp.eq.s32.totalorder %s36, 0
      %p147 = por %p145, %p146
      %s149 = sadd.s32 %s148, 1
      %p152 = scmp.eq.s32.totalorder %s30, 1
      %p153 = scmp.ne.s32.totalorder %s148, %s150
      %p154 = scmp.eq.s32.totalorder %s30, 0
      %p155 = por %p153, %p154
      %p156 = scmp.ne.s32.totalorder %s148, %s150
      %p157 = scmp.eq.s32.totalorder %s35, 1
      %p158 = por %p156, %p157
      %p159 = scmp.ne.s32.totalorder %s150, %s151
      %p160 = scmp.eq.s32.totalorder %s35, 0
      %p161 = por %p159, %p160
      %p162 = scmp.ne.s32.totalorder %s150, %s151
      %p163 = scmp.eq.s32.totalorder %s36, 1
      %p164 = por %p162, %p163
      %p166 = scmp.ne.s32.totalorder %s151, %s165
      %p167 = scmp.eq.s32.totalorder %s36, 0
      %p168 = por %p166, %p167
      %s170 = sadd.s32 %s169, 1
      %p173 = scmp.eq.s32.totalorder %s30, 1
      %p174 = scmp.ne.s32.totalorder %s169, %s171
      %p175 = scmp.eq.s32.totalorder %s30, 0
      %p176 = por %p174, %p175
      %p177 = scmp.ne.s32.totalorder %s169, %s171
      %p178 = scmp.eq.s32.totalorder %s35, 1
      %p179 = por %p177, %p178
      %p180 = scmp.ne.s32.totalorder %s171, %s172
      %p181 = scmp.eq.s32.totalorder %s35, 0
      %p182 = por %p180, %p181
      %p183 = scmp.ne.s32.totalorder %s171, %s172
      %p184 = scmp.eq.s32.totalorder %s36, 1
      %p185 = por %p183, %p184
      %p187 = scmp.ne.s32.totalorder %s172, %s186
      %p188 = scmp.eq.s32.totalorder %s36, 0
      %p189 = por %p187, %p188
      %s191 = sadd.s32 %s190, 1
      %p194 = scmp.eq.s32.totalorder %s30, 1
      %p195 = scmp.ne.s32.totalorder %s190, %s192
      %p196 = scmp.eq.s32.totalorder %s30, 0
      %p197 = por %p195, %p196
      %p198 = scmp.ne.s32.totalorder %s190, %s192
      %p199 = scmp.eq.s32.totalorder %s35, 1
      %p200 = por %p198, %p199
      %p201 = scmp.ne.s32.totalorder %s192, %s193
      %p202 = scmp.eq.s32.totalorder %s35, 0
      %p203 = por %p201, %p202
      %p204 = scmp.ne.s32.totalorder %s192, %s193
      %p205 = scmp.eq.s32.totalorder %s36, 1
      %p206 = por %p204, %p205
      %p208 = scmp.ne.s32.totalorder %s193, %s207
      %p209 = scmp.eq.s32.totalorder %s36, 0
      %p210 = por %p208, %p209
      %s212 = sadd.s32 %s211, 1
      %p215 = scmp.eq.s32.totalorder %s30, 1
      %p216 = scmp.ne.s32.totalorder %s211, %s213
      %p217 = scmp.eq.s32.totalorder %s30, 0
      %p218 = por %p216, %p217
      %p219 = scmp.ne.s32.totalorder %s211, %s213
      %p220 = scmp.eq.s32.totalorder %s35, 1
      %p221 = por %p219, %p220
      %p222 = scmp.ne.s32.totalorder %s213, %s214
      %p223 = scmp.eq.s32.totalorder %s35, 0
      %p224 = por %p222, %p223
      %p225 = scmp.ne.s32.totalorder %s213, %s214
      %p226 = scmp.eq.s32.totalorder %s36, 1
      %p227 = por %p225, %p226
      %p229 = scmp.ne.s32.totalorder %s214, %s228
      %p230 = scmp.eq.s32.totalorder %s36, 0
      %p231 = por %p229, %p230
      %s233 = sadd.s32 %s232, 1
      %p236 = scmp.eq.s32.totalorder %s30, 1
      %p237 = scmp.ne.s32.totalorder %s232, %s234
      %p238 = scmp.eq.s32.totalorder %s30, 0
      %p239 = por %p237, %p238
      %p240 = scmp.ne.s32.totalorder %s232, %s234
      %p241 = scmp.eq.s32.totalorder %s35, 1
      %p242 = por %p240, %p241
      %p243 = scmp.ne.s32.totalorder %s234, %s235
      %p244 = scmp.eq.s32.totalorder %s35, 0
      %p245 = por %p243, %p244
      %p246 = scmp.ne.s32.totalorder %s234, %s235
      %p247 = scmp.eq.s32.totalorder %s36, 1
      %p248 = por %p246, %p247
      %p250 = scmp.ne.s32.totalorder %s235, %s249
      %p251 = scmp.eq.s32.totalorder %s36, 0
      %p252 = por %p250, %p251
      %s254 = sadd.s32 %s253, 1
      %p257 = scmp.eq.s32.totalorder %s30, 1
      %p258 = scmp.ne.s32.totalorder %s253, %s255
      %p259 = scmp.eq.s32.totalorder %s30, 0
      %p260 = por %p258, %p259
      %p261 = scmp.ne.s32.totalorder %s253, %s255
      %p262 = scmp.eq.s32.totalorder %s35, 1
      %p263 = por %p261, %p262
      %p264 = scmp.ne.s32.totalorder %s255, %s256
      %p265 = scmp.eq.s32.totalorder %s35, 0
      %p266 = por %p264, %p265
      %p267 = scmp.ne.s32.totalorder %s255, %s256
      %p268 = scmp.eq.s32.totalorder %s36, 1
      %p269 = por %p267, %p268
      %p271 = scmp.ne.s32.totalorder %s256, %s270
      %p272 = scmp.eq.s32.totalorder %s36, 0
      %p273 = por %p271, %p272
      %s275 = sadd.s32 %s274, 1
      %p278 = scmp.eq.s32.totalorder %s30, 1
      %p279 = scmp.ne.s32.totalorder %s274, %s276
      %p280 = scmp.eq.s32.totalorder %s30, 0
      %p281 = por %p279, %p280
      %p282 = scmp.ne.s32.totalorder %s274, %s276
      %p283 = scmp.eq.s32.totalorder %s35, 1
      %p284 = por %p282, %p283
      %p285 = scmp.ne.s32.totalorder %s276, %s277
      %p286 = scmp.eq.s32.totalorder %s35, 0
      %p287 = por %p285, %p286
      %p288 = scmp.ne.s32.totalorder %s276, %s277
      %p289 = scmp.eq.s32.totalorder %s36, 1
      %p290 = por %p288, %p289
      %p292 = scmp.ne.s32.totalorder %s277, %s291
      %p293 = scmp.eq.s32.totalorder %s36, 0
      %p294 = por %p292, %p293
      %s296 = sadd.s32 %s295, 1
      %p299 = scmp.eq.s32.totalorder %s30, 1
      %p300 = scmp.ne.s32.totalorder %s295, %s297
      %p301 = scmp.eq.s32.totalorder %s30, 0
      %p302 = por %p300, %p301
      %p303 = scmp.ne.s32.totalorder %s295, %s297
      %p304 = scmp.eq.s32.totalorder %s35, 1
      %p305 = por %p303, %p304
      %p306 = scmp.ne.s32.totalorder %s297, %s298
      %p307 = scmp.eq.s32.totalorder %s35, 0
      %p308 = por %p306, %p307
      %p309 = scmp.ne.s32.totalorder %s297, %s298
      %p310 = scmp.eq.s32.totalorder %s36, 1
      %p311 = por %p309, %p310
      %p313 = scmp.ne.s32.totalorder %s298, %s312
      %p314 = scmp.eq.s32.totalorder %s36, 0
      %p315 = por %p313, %p314
      %s317 = sadd.s32 %s316, 1
      %p320 = scmp.eq.s32.totalorder %s30, 1
      %p321 = scmp.ne.s32.totalorder %s316, %s318
      %p322 = scmp.eq.s32.totalorder %s30, 0
      %p323 = por %p321, %p322
      %p324 = scmp.ne.s32.totalorder %s316, %s318
      %p325 = scmp.eq.s32.totalorder %s35, 1
      %p326 = por %p324, %p325
      %p327 = scmp.ne.s32.totalorder %s318, %s319
      %p328 = scmp.eq.s32.totalorder %s35, 0
      %p329 = por %p327, %p328
      %p330 = scmp.ne.s32.totalorder %s318, %s319
      %p331 = scmp.eq.s32.totalorder %s36, 1
      %p332 = por %p330, %p331
      %p334 = scmp.ne.s32.totalorder %s319, %s333
      %p335 = scmp.eq.s32.totalorder %s36, 0
      %p336 = por %p334, %p335
      %s338 = sadd.s32 %s337, 1
      %p341 = scmp.eq.s32.totalorder %s30, 1
      %p342 = scmp.ne.s32.totalorder %s337, %s339
      %p343 = scmp.eq.s32.totalorder %s30, 0
      %p344 = por %p342, %p343
      %p345 = scmp.ne.s32.totalorder %s337, %s339
      %p346 = scmp.eq.s32.totalorder %s35, 1
      %p347 = por %p345, %p346
      %p348 = scmp.ne.s32.totalorder %s339, %s340
      %p349 = scmp.eq.s32.totalorder %s35, 0
      %p350 = por %p348, %p349
      %p351 = scmp.ne.s32.totalorder %s339, %s340
      %p352 = scmp.eq.s32.totalorder %s36, 1
      %p353 = por %p351, %p352
      %p355 = scmp.ne.s32.totalorder %s340, %s354
      %p356 = scmp.eq.s32.totalorder %s36, 0
      %p357 = por %p355, %p356
      %s359 = sadd.s32 %s358, 1
      %p362 = scmp.eq.s32.totalorder %s30, 1
      %p363 = scmp.ne.s32.totalorder %s358, %s360
      %p364 = scmp.eq.s32.totalorder %s30, 0
      %p365 = por %p363, %p364
      %p366 = scmp.ne.s32.totalorder %s358, %s360
      %p367 = scmp.eq.s32.totalorder %s35, 1
      %p368 = por %p366, %p367
      %p369 = scmp.ne.s32.totalorder %s360, %s361
      %p370 = scmp.eq.s32.totalorder %s35, 0
      %p371 = por %p369, %p370
      %p372 = scmp.ne.s32.totalorder %s360, %s361
      %p373 = scmp.eq.s32.totalorder %s36, 1
      %p374 = por %p372, %p373
      %p376 = scmp.ne.s32.totalorder %s361, %s375
      %p377 = scmp.eq.s32.totalorder %s36, 0
      %p378 = por %p376, %p377
      %s380 = sadd.s32 %s379, 1
      %p383 = scmp.eq.s32.totalorder %s30, 1
      %p384 = scmp.ne.s32.totalorder %s379, %s381
      %p385 = scmp.eq.s32.totalorder %s30, 0
      %p386 = por %p384, %p385
      %p387 = scmp.ne.s32.totalorder %s379, %s381
      %p388 = scmp.eq.s32.totalorder %s35, 1
      %p389 = por %p387, %p388
      %p390 = scmp.ne.s32.totalorder %s381, %s382
      %p391 = scmp.eq.s32.totalorder %s35, 0
      %p392 = por %p390, %p391
      %p393 = scmp.ne.s32.totalorder %s381, %s382
      %p394 = scmp.eq.s32.totalorder %s36, 1
      %p395 = por %p393, %p394
      %p397 = scmp.ne.s32.totalorder %s382, %s396
      %p398 = scmp.eq.s32.totalorder %s36, 0
      %p399 = por %p397, %p398
      %s400 = ssub.s32 %s30, %s37
      %p401 = scmp.eq.s32.totalorder %s400, 0
      %s403 = sadd.s32 %s402, 1
      %s404 = scalar_select %p401, %s402, %s403
      %p407 = pneg %p401
      %p408 = scmp.eq.s32.totalorder %s30, 1
      %p409 = por %p407, %p408
      %p410 = scmp.ne.s32.totalorder %s402, %s405
      %p411 = scmp.eq.s32.totalorder %s30, 0
      %p412 = por %p410, %p411
      %p413 = scmp.ne.s32.totalorder %s402, %s405
      %p414 = scmp.eq.s32.totalorder %s35, 1
      %p415 = por %p413, %p414
      %p416 = scmp.ne.s32.totalorder %s405, %s406
      %p417 = scmp.eq.s32.totalorder %s35, 0
      %p418 = por %p416, %p417
      %p419 = scmp.ne.s32.totalorder %s405, %s406
      %p420 = scmp.eq.s32.totalorder %s36, 1
      %p421 = por %p419, %p420
      %p423 = scmp.ne.s32.totalorder %s406, %s422
      %p424 = scmp.eq.s32.totalorder %s36, 0
      %p425 = por %p423, %p424
      %p426 = scmp.le.s32.totalorder 1, %s30
      %p427 = scmp.lt.s32.totalorder %s30, 3
      %p428 = pnand %p426, %p427
      %p429 = pneg %p428
      // Predicated region
      $region9: #{tpu_custom_call.1} parent=5 // pred_check
        _
      $region10: #{tpu_custom_call.1} parent=5 // pred_check_branch
        %431 = sbr.rel (%p428) target = $region12
      $region11: #{tpu_custom_call.1} parent=5 // pred_region
        %s432 = ssub.s32 %s30, 1
        // Predicated region
        $region13: #{tpu_custom_call.1} parent=11 // pred_check
          %p433 = pneg %p77
        $region14: #{tpu_custom_call.1} parent=11 // pred_check_branch
          %435 = sbr.rel (%p433) target = $region16
        $region15: #{tpu_custom_call.1} parent=11 // pred_region
          _
        $region16: #{tpu_custom_call.1} parent=11 // pred_fallthru
          _
        // Predicated region
        $region17: #{tpu_custom_call.1} parent=11 // pred_check
          %p436 = pneg %p98
        $region18: #{tpu_custom_call.1} parent=11 // pred_check_branch
          %438 = sbr.rel (%p436) target = $region20
        $region19: #{tpu_custom_call.1} parent=11 // pred_region
          _
        $region20: #{tpu_custom_call.1} parent=11 // pred_fallthru
          _
        // Predicated region
        $region21: #{tpu_custom_call.1} parent=11 // pred_check
          %p439 = pneg %p119
        $region22: #{tpu_custom_call.1} parent=11 // pred_check_branch
          %441 = sbr.rel (%p439) target = $region24
        $region23: #{tpu_custom_call.1} parent=11 // pred_region
          _
        $region24: #{tpu_custom_call.1} parent=11 // pred_fallthru
          _
        // Predicated region
        $region25: #{tpu_custom_call.1} parent=11 // pred_check
          %p442 = pneg %p140
        $region26: #{tpu_custom_call.1} parent=11 // pred_check_branch
          %444 = sbr.rel (%p442) target = $region28
        $region27: #{tpu_custom_call.1} parent=11 // pred_region
          _
        $region28: #{tpu_custom_call.1} parent=11 // pred_fallthru
          _
        // Predicated region
        $region29: #{tpu_custom_call.1} parent=11 // pred_check
          %p445 = pneg %p161
        $region30: #{tpu_custom_call.1} parent=11 // pred_check_branch
          %447 = sbr.rel (%p445) target = $region32
        $region31: #{tpu_custom_call.1} parent=11 // pred_region
          _
        $region32: #{tpu_custom_call.1} parent=11 // pred_fallthru
          _
        // Predicated region
        $region33: #{tpu_custom_call.1} parent=11 // pred_check
          %p448 = pneg %p182
        $region34: #{tpu_custom_call.1} parent=11 // pred_check_branch
          %450 = sbr.rel (%p448) target = $region36
        $region35: #{tpu_custom_call.1} parent=11 // pred_region
          _
        $region36: #{tpu_custom_call.1} parent=11 // pred_fallthru
          _
        // Predicated region
        $region37: #{tpu_custom_call.1} parent=11 // pred_check
          %p451 = pneg %p203
        $region38: #{tpu_custom_call.1} parent=11 // pred_check_branch
          %453 = sbr.rel (%p451) target = $region40
        $region39: #{tpu_custom_call.1} parent=11 // pred_region
          _
        $region40: #{tpu_custom_call.1} parent=11 // pred_fallthru
          _
        // Predicated region
        $region41: #{tpu_custom_call.1} parent=11 // pred_check
          %p454 = pneg %p224
        $region42: #{tpu_custom_call.1} parent=11 // pred_check_branch
          %456 = sbr.rel (%p454) target = $region44
        $region43: #{tpu_custom_call.1} parent=11 // pred_region
          _
        $region44: #{tpu_custom_call.1} parent=11 // pred_fallthru
          _
        // Predicated region
        $region45: #{tpu_custom_call.1} parent=11 // pred_check
          %p457 = pneg %p245
        $region46: #{tpu_custom_call.1} parent=11 // pred_check_branch
          %459 = sbr.rel (%p457) target = $region48
        $region47: #{tpu_custom_call.1} parent=11 // pred_region
          %s461 = ssub.s32 1024, 1024
          %462 = vsyncadd [#allocation6], %s461
          %s463 = sshll.u32 [#allocation5], 4
          %s464 = int_to_ptr.vmem [resolvable:$true] %s463
          %469 = dma.hbm_to_vmem [thread:$0]  %s9, 1024, %s464, [#allocation6], 64, 64, 4
        $region48: #{tpu_custom_call.1} parent=11 // pred_fallthru
          _
        // Predicated region
        $region49: #{tpu_custom_call.1} parent=11 // pred_check
          %p470 = pneg %p266
        $region50: #{tpu_custom_call.1} parent=11 // pred_check_branch
          %472 = sbr.rel (%p470) target = $region52
        $region51: #{tpu_custom_call.1} parent=11 // pred_region
          _
        $region52: #{tpu_custom_call.1} parent=11 // pred_fallthru
          _
        // Predicated region
        $region53: #{tpu_custom_call.1} parent=11 // pred_check
          %p473 = pneg %p287
        $region54: #{tpu_custom_call.1} parent=11 // pred_check_branch
          %475 = sbr.rel (%p473) target = $region56
        $region55: #{tpu_custom_call.1} parent=11 // pred_region
          _
        $region56: #{tpu_custom_call.1} parent=11 // pred_fallthru
          _
        // Predicated region
        $region57: #{tpu_custom_call.1} parent=11 // pred_check
          %p476 = pneg %p308
        $region58: #{tpu_custom_call.1} parent=11 // pred_check_branch
          %478 = sbr.rel (%p476) target = $region60
        $region59: #{tpu_custom_call.1} parent=11 // pred_region
          _
        $region60: #{tpu_custom_call.1} parent=11 // pred_fallthru
          _
        // Predicated region
        $region61: #{tpu_custom_call.1} parent=11 // pred_check
          %p479 = pneg %p329
        $region62: #{tpu_custom_call.1} parent=11 // pred_check_branch
          %481 = sbr.rel (%p479) target = $region64
        $region63: #{tpu_custom_call.1} parent=11 // pred_region
          _
        $region64: #{tpu_custom_call.1} parent=11 // pred_fallthru
          _
        // Predicated region
        $region65: #{tpu_custom_call.1} parent=11 // pred_check
          %p482 = pneg %p350
        $region66: #{tpu_custom_call.1} parent=11 // pred_check_branch
          %484 = sbr.rel (%p482) target = $region68
        $region67: #{tpu_custom_call.1} parent=11 // pred_region
          _
        $region68: #{tpu_custom_call.1} parent=11 // pred_fallthru
          _
        // Predicated region
        $region69: #{tpu_custom_call.1} parent=11 // pred_check
          %p485 = pneg %p371
        $region70: #{tpu_custom_call.1} parent=11 // pred_check_branch
          %487 = sbr.rel (%p485) target = $region72
        $region71: #{tpu_custom_call.1} parent=11 // pred_region
          %s489 = ssub.s32 2048, 2048
          %490 = vsyncadd [#allocation6], %s489
          %s491 = sshll.u32 [#allocation7], 4
          %s492 = int_to_ptr.vmem [resolvable:$true] %s491
          %497 = dma.hbm_to_vmem [thread:$0]  %s15, 2048, %s492, [#allocation6], 256, 256, 16
        $region72: #{tpu_custom_call.1} parent=11 // pred_fallthru
          _
        // Predicated region
        $region73: #{tpu_custom_call.1} parent=11 // pred_check
          %p498 = pneg %p392
        $region74: #{tpu_custom_call.1} parent=11 // pred_check_branch
          %500 = sbr.rel (%p498) target = $region76
        $region75: #{tpu_custom_call.1} parent=11 // pred_region
          _
        $region76: #{tpu_custom_call.1} parent=11 // pred_fallthru
          _
      $region12: #{tpu_custom_call.1} parent=5 // pred_fallthru
        _
      %p501 = scmp.lt.s32.totalorder %s30, 2
      // Predicated region
      $region77: #{tpu_custom_call.1} parent=5 // pred_check
        %p502 = pneg %p501
      $region78: #{tpu_custom_call.1} parent=5 // pred_check_branch
        %504 = sbr.rel (%p502) target = $region80
      $region79: #{tpu_custom_call.1} parent=5 // pred_region
        // Predicated region
        $region81: #{tpu_custom_call.1} parent=79 // pred_check
          %p505 = pneg %p50
        $region82: #{tpu_custom_call.1} parent=79 // pred_check_branch
          %507 = sbr.rel (%p505) target = $region84
        $region83: #{tpu_custom_call.1} parent=79 // pred_region
          %s508 = sand.u32 %s40, 1
          %s509 = scalar_lea.sflag [#allocation3], %s508
          %s510 = sand.u32 %s40, 1
          %s511 = smul.addr %s510, 4
          %s512 = scalar_lea.vmem [#allocation2], %s511
          %s514 = ssub.s32 64, 64
          %515 = vsyncadd %s509, %s514
          %s516 = smul.addr %s30, 64
          %s517 = scalar_lea.hbm %s0, %s516
          %s519 = sshll.u32 %s512, 4
          %s520 = int_to_ptr.vmem [resolvable:$true] %s519
          %522 = dma.hbm_to_vmem [thread:$0]  %s517, 64, %s520, %s509
        $region84: #{tpu_custom_call.1} parent=79 // pred_fallthru
          _
      $region80: #{tpu_custom_call.1} parent=5 // pred_fallthru
        _
      %p523 = scmp.le.s32.totalorder 1, %s30
      %p524 = scmp.lt.s32.totalorder %s30, 3
      %p525 = pnand %p523, %p524
      %p526 = pneg %p525
      // Predicated region
      $region85: #{tpu_custom_call.1} parent=5 // pred_check
        _
      $region86: #{tpu_custom_call.1} parent=5 // pred_check_branch
        %528 = sbr.rel (%p525) target = $region88
      $region87: #{tpu_custom_call.1} parent=5 // pred_region
        %s529 = ssub.s32 %s30, 1
        %s530 = sand.u32 %s43, 1
        %s531 = scalar_lea.sflag [#allocation3], %s530
        %s532 = sand.u32 %s43, 1
        %s533 = smul.addr %s532, 4
        %s534 = scalar_lea.vmem [#allocation2], %s533
        // Predicated region
        $region89: #{tpu_custom_call.1} parent=87 // pred_check
          %p535 = pneg %p56
        $region90: #{tpu_custom_call.1} parent=87 // pred_check_branch
          %537 = sbr.rel (%p535) target = $region92
        $region91: #{tpu_custom_call.1} parent=87 // pred_region
          %538 = dma.done %s531, 64
        $region92: #{tpu_custom_call.1} parent=87 // pred_fallthru
          _
        // Predicated region
        $region93: #{tpu_custom_call.1} parent=87 // pred_check
          %p539 = pneg %p245
        $region94: #{tpu_custom_call.1} parent=87 // pred_check_branch
          %541 = sbr.rel (%p539) target = $region96
        $region95: #{tpu_custom_call.1} parent=87 // pred_region
          %542 = dma.done [#allocation6], 1024
        $region96: #{tpu_custom_call.1} parent=87 // pred_fallthru
          _
        // Predicated region
        $region97: #{tpu_custom_call.1} parent=87 // pred_check
          %p543 = pneg %p371
        $region98: #{tpu_custom_call.1} parent=87 // pred_check_branch
          %545 = sbr.rel (%p543) target = $region100
        $region99: #{tpu_custom_call.1} parent=87 // pred_region
          %546 = dma.done [#allocation6], 2048
        $region100: #{tpu_custom_call.1} parent=87 // pred_fallthru
          _
        %s547 = sand.u32 %s43, 1
        %s548 = scalar_lea.sflag [#allocation3], %s547
        %s549 = sand.u32 %s43, 1
        %s550 = smul.addr %s549, 4
        %s551 = scalar_lea.vmem [#allocation2], %s550
        %p552 = pneg %p56
        %p553 = pneg %p53
        %p554 = pneg %p77
        %p555 = pneg %p74
        %p556 = pneg %p98
        %p557 = pneg %p95
        %p558 = pneg %p119
        %p559 = pneg %p116
        %p560 = pneg %p140
        %p561 = pneg %p137
        %p562 = pneg %p161
        %p563 = pneg %p158
        %p564 = pneg %p182
        %p565 = pneg %p179
        %p566 = pneg %p203
        %p567 = pneg %p200
        %p568 = pneg %p224
        %p569 = pneg %p221
        %p570 = pneg %p245
        %p571 = pneg %p242
        %p572 = pneg %p266
        %p573 = pneg %p263
        %p574 = pneg %p287
        %p575 = pneg %p284
        %p576 = pneg %p308
        %p577 = pneg %p305
        %p578 = pneg %p329
        %p579 = pneg %p326
        %p580 = pneg %p350
        %p581 = pneg %p347
        %p582 = pneg %p371
        %p583 = pneg %p368
        %p584 = pneg %p392
        %p585 = pneg %p389
        %p586 = pneg %p418
        %p587 = pneg %p415
        %s588 = sand.u32 %s405, 1
        %s589 = scalar_lea.sflag [#allocation4], %s588
        %s590 = sand.u32 %s405, 1
        %s591 = smul.addr %s590, 32
        %s592 = scalar_lea.vmem [#allocation8], %s591
        %v594 = vld [vmem:[%s534] sm:$0xf]
        %v595 = vunpack.c.l.bf16 %v594
        %v596 = vlaneseq
        %v597 = vshrl.u32 %v596, 7
        %v598 = vlaneseq
        %v599 = vand.u32 %v598, 127
        %vm600 = vcmp.le.s32.totalorder %v599, %v597
        %v601 = vsel %vm600, 0.0, -1e+30
        %v602 = vld [vmem:[%s5] sm:$0x1]
        %v603 = vld [vmem:[%s6] sm:$0x1]
        %vm604 = vcmask 523264
        %v605 = vsel %vm604, %v595, 0.0
        %606 = vadd.xlane.f32.xlu0 %v605
        %v607 = vpop.xlane.xlu0 %606
        %v608 = vrcp.pop 64.0
        %v609 = vmul.f32 %v607, %v608
        %v610 = vmul.f32 %v595, %v595
        %v611 = vsel %vm604, %v610, 0.0
        %612 = vadd.xlane.f32.xlu0 %v611
        %v613 = vpop.xlane.xlu0 %612
        %v614 = vmul.f32 %v613, %v608
        %v615 = vmul.f32 %v609, %v609
        %v616 = vsub.f32 %v614, %v615
        %v617 = vmax.f32 %v616, 0.0
        %v618 = vsub.f32 %v595, %v609
        %v619 = vadd.f32 %v617, 1e-05
        %v620 = vrsqrt.pop %v619
        %v621 = vmul.f32 %v618, %v620
        %v623 = vlaneseq
        %v624 = vshrl.u32 %v623, 7
        %v625 = vsub.s32 0, %v624
        %v626 = vrot.slane %v602, %v625
        %v628 = vmul.f32 %v621, %v626
        %v630 = vlaneseq
        %v631 = vshrl.u32 %v630, 7
        %v632 = vsub.s32 0, %v631
        %v633 = vrot.slane %v603, %v632
        %v635 = vadd.f32 %v628, %v633
        %v636 = vpack.c.bf16 %v635, %v635
        %v637 = vld [vmem:[%s1] sm:$0xff]
        %v638 = vld [vmem:[%s1 + $0x8] sm:$0xff]
        %v639 = vld [vmem:[%s1 + $0x10] sm:$0xff]
        %v640 = vld [vmem:[%s1 + $0x18] sm:$0xff]
        %v641 = vld [vmem:[%s1 + $0x20] sm:$0xff]
        %v642 = vld [vmem:[%s1 + $0x28] sm:$0xff]
        %v643 = vld [vmem:[%s1 + $0x30] sm:$0xff]
        %v644 = vld [vmem:[%s1 + $0x38] sm:$0xff]
        %v645 = vld [vmem:[%s2] sm:$0x3]
        %v647 = vlaneseq
        %v648 = vshrl.u32 %v647, 7
        %v649 = vsub.s32 0, %v648
        %v650 = vrot.slane %v645, %v649
        %v651 = vlaneseq
        %v652 = vshrl.u32 %v651, 7
        %v653 = vsub.s32 1, %v652
        %v654 = vrot.slane %v645, %v653
        %v665 = vunpack.c.l.b16 %v637
        %v666 = vunpack.c.h.b16 %v637
        %v667 = vunpack.c.l.b16 %v638
        %v668 = vunpack.c.h.b16 %v638
        %v669 = vunpack.c.l.b16 %v639
        %v670 = vunpack.c.h.b16 %v639
        %v671 = vunpack.c.l.b16 %v640
        %v672 = vunpack.c.h.b16 %v640
        %v673 = vunpack.c.l.b16 %v641
        %v674 = vunpack.c.h.b16 %v641
        %v675 = vunpack.c.l.b16 %v642
        %v676 = vunpack.c.h.b16 %v642
        %v677 = vunpack.c.l.b16 %v643
        %v678 = vunpack.c.h.b16 %v643
        %v679 = vunpack.c.l.b16 %v644
        %v680 = vunpack.c.h.b16 %v644
        %v681 = vpack.c.b16 %v667, %v665
        %v682 = vpack.c.b16 %v668, %v666
        %v683 = vpack.c.b16 %v671, %v669
        %v684 = vpack.c.b16 %v672, %v670
        %v685 = vpack.c.b16 %v675, %v673
        %v686 = vpack.c.b16 %v676, %v674
        %v687 = vpack.c.b16 %v679, %v677
        %v688 = vpack.c.b16 %v680, %v678
        %v698 = vsel %vm604, %v636, 0
        %700 = vmatprep.subr.bf16.mxu0 %v682
        %701 = vmatpush1.bf16.msra.mxu0 %v681
        %702 = vmatprep.subr.bf16.mxu0 %v684
        %703 = vmatpush1.bf16.msra.mxu0 %v683
        %704 = vmatprep.subr.bf16.mxu0 %v686
        %705 = vmatpush1.bf16.msra.mxu0 %v685
        %706 = vmatprep.subr.bf16.mxu0 %v688
        %707 = vmatpush1.bf16.msra.mxu0 %v687
        %708 = vmatprep.subr.bf16.mxu0 0
        %709 = vmatpush1.bf16.msra.mxu0 0
        %710 = vmatprep.subr.bf16.mxu0 0
        %711 = vmatpush1.bf16.msra.mxu0 0
        %712 = vmatprep.subr.bf16.mxu0 0
        %713 = vmatpush1.bf16.msra.mxu0 0
        %714 = vmatprep.subr.bf16.mxu0 0
        %715 = vmatpush1.bf16.msra.mxu0 0
        %716 = vmatprep.subr.bf16.mxu0 0
        %717 = vmatpush1.bf16.msra.mxu0 0
        %718 = vmatprep.subr.bf16.mxu0 0
        %719 = vmatpush1.bf16.msra.mxu0 0
        %720 = vmatprep.subr.bf16.mxu0 0
        %721 = vmatpush1.bf16.msra.mxu0 0
        %722 = vmatprep.subr.bf16.mxu0 0
        %723 = vmatpush1.bf16.msra.mxu0 0
        %724 = vmatprep.subr.bf16.mxu0 0
        %725 = vmatpush1.bf16.msra.mxu0 0
        %726 = vmatprep.subr.bf16.mxu0 0
        %727 = vmatpush1.bf16.msra.mxu0 0
        %728 = vmatprep.subr.bf16.mxu0 0
        %729 = vmatpush1.bf16.msra.mxu0 0
        %730 = vmatprep.subr.bf16.mxu0 0
        %731 = vmatpush1.bf16.msra.mxu0 0
        %732 = vmatprep.mubr.bf16.mxu0 0
        %733 = vmatmul.mubr.bf16.gmra.mrb[0].mxu0 %v698
        %v734 = vpop.f32.mrb[0].mxu0
        %v735 = vadd.f32 %v650, %v734
        %v736 = vpop.f32.mrb[0].mxu0
        %v737 = vadd.f32 %v654, %v736
        %v738 = vpop.f32.mrb[0].mxu0
        %v739 = vpop.f32.mrb[0].mxu0
        %740 = vdwg.mxu0
        %v741 = vpack.c.bf16 %v735, %v735
        %v742 = vpack.c.bf16 %v737, %v737
        %744 = vrot.lane.b32.xlu0 %v741, 64
        %v745 = vpop.permute.xlu0 %744
        %vm746 = vcmask 130048
        %v748 = vsel %vm746, %v741, 0
        %v751 = vsel %vm746, %v745, 0
        %753 = vmatprep.subr.bf16.mxu0 0
        %754 = vmatpush1.bf16.xpose.msra.mxu0 %v751
        %755 = vmatprep.subr.bf16.mxu0 0
        %756 = vmatpush1.bf16.xpose.msra.mxu0 0
        %757 = vmatprep.subr.bf16.mxu0 0
        %758 = vmatpush1.bf16.xpose.msra.mxu0 0
        %759 = vmatprep.subr.bf16.mxu0 0
        %760 = vmatpush1.bf16.xpose.msra.mxu0 0
        %761 = vmatprep.subr.bf16.mxu0 0
        %762 = vmatpush1.bf16.xpose.msra.mxu0 0
        %763 = vmatprep.subr.bf16.mxu0 0
        %764 = vmatpush1.bf16.xpose.msra.mxu0 0
        %765 = vmatprep.subr.bf16.mxu0 0
        %766 = vmatpush1.bf16.xpose.msra.mxu0 0
        %767 = vmatprep.subr.bf16.mxu0 0
        %768 = vmatpush1.bf16.xpose.msra.mxu0 0
        %769 = vmatprep.subr.bf16.mxu0 0
        %770 = vmatpush1.bf16.xpose.msra.mxu0 0
        %771 = vmatprep.subr.bf16.mxu0 0
        %772 = vmatpush1.bf16.xpose.msra.mxu0 0
        %773 = vmatprep.subr.bf16.mxu0 0
        %774 = vmatpush1.bf16.xpose.msra.mxu0 0
        %775 = vmatprep.subr.bf16.mxu0 0
        %776 = vmatpush1.bf16.xpose.msra.mxu0 0
        %777 = vmatprep.subr.bf16.mxu0 0
        %778 = vmatpush1.bf16.xpose.msra.mxu0 0
        %779 = vmatprep.subr.bf16.mxu0 0
        %780 = vmatpush1.bf16.xpose.msra.mxu0 0
        %781 = vmatprep.subr.bf16.mxu0 0
        %782 = vmatpush1.bf16.xpose.msra.mxu0 0
        %783 = vmatprep.subr.bf16.mxu0 0
        %784 = vmatpush1.bf16.xpose.msra.mxu0 0
        %785 = vmatprep.mubr.bf16.mxu0 0
        %786 = vmatmul.mubr.bf16.gmra.mrb[0].mxu0 %v748
        %v787 = vpop.f32.mrb[0].mxu0
        %v788 = vadd.f32 %v601, %v787
        %v789 = vpop.f32.mrb[0].mxu0
        %v790 = vpop.f32.mrb[0].mxu0
        %v791 = vpop.f32.mrb[0].mxu0
        %792 = vdwg.mxu0
        %vm793 = vcmask 64512
        %v794 = vsel %vm793, %v788, -inf
        %795 = vmax.xlane.f32.xlu0 %v794
        %v796 = vpop.xlane.xlu0 %795
        %v797 = vsub.f32 %v788, %v796
        %v798 = vmul.f32 %v797, 1.442695
        %v799 = vpow.pop %v798
        %v800 = vsel %vm793, %v799, 0.0
        %801 = vadd.xlane.f32.xlu0 %v800
        %v802 = vpop.xlane.xlu0 %801
        %v803 = vrcp.pop %v802
        %v804 = vmul.f32 %v799, %v803
        %v805 = vpack.c.bf16 %v804, %v804
        %v807 = vsel %vm793, %v805, 0
        %vm809 = vcmask 1043456
        %v811 = vsel %vm809, %v742, 0
        %813 = vmatprep.subr.bf16.mxu0 0
        %814 = vmatpush1.bf16.msra.mxu0 %v811
        %815 = vmatprep.subr.bf16.mxu0 0
        %816 = vmatpush1.bf16.msra.mxu0 0
        %817 = vmatprep.subr.bf16.mxu0 0
        %818 = vmatpush1.bf16.msra.mxu0 0
        %819 = vmatprep.subr.bf16.mxu0 0
        %820 = vmatpush1.bf16.msra.mxu0 0
        %821 = vmatprep.subr.bf16.mxu0 0
        %822 = vmatpush1.bf16.msra.mxu0 0
        %823 = vmatprep.subr.bf16.mxu0 0
        %824 = vmatpush1.bf16.msra.mxu0 0
        %825 = vmatprep.subr.bf16.mxu0 0
        %826 = vmatpush1.bf16.msra.mxu0 0
        %827 = vmatprep.subr.bf16.mxu0 0
        %828 = vmatpush1.bf16.msra.mxu0 0
        %829 = vmatprep.subr.bf16.mxu0 0
        %830 = vmatpush1.bf16.msra.mxu0 0
        %831 = vmatprep.subr.bf16.mxu0 0
        %832 = vmatpush1.bf16.msra.mxu0 0
        %833 = vmatprep.subr.bf16.mxu0 0
        %834 = vmatpush1.bf16.msra.mxu0 0
        %835 = vmatprep.subr.bf16.mxu0 0
        %836 = vmatpush1.bf16.msra.mxu0 0
        %837 = vmatprep.subr.bf16.mxu0 0
        %838 = vmatpush1.bf16.msra.mxu0 0
        %839 = vmatprep.subr.bf16.mxu0 0
        %840 = vmatpush1.bf16.msra.mxu0 0
        %841 = vmatprep.subr.bf16.mxu0 0
        %842 = vmatpush1.bf16.msra.mxu0 0
        %843 = vmatprep.subr.bf16.mxu0 0
        %844 = vmatpush1.bf16.msra.mxu0 0
        %845 = vmatprep.mubr.bf16.mxu0 0
        %846 = vmatmul.mubr.bf16.gmra.mrb[0].mxu0 %v807
        %v847 = vpop.f32.mrb[0].mxu0
        %v848 = vadd.f32 0.0, %v847
        %v849 = vpop.f32.mrb[0].mxu0
        %v850 = vpop.f32.mrb[0].mxu0
        %v851 = vpop.f32.mrb[0].mxu0
        %852 = vdwg.mxu0
        %853 = vrot.lane.b32.xlu0 %v741, 112
        %v854 = vpop.permute.xlu0 %853
        %855 = vrot.lane.b32.xlu0 %v741, 48
        %v856 = vpop.permute.xlu0 %855
        %v858 = vsel %vm746, %v854, 0
        %v861 = vsel %vm746, %v856, 0
        %863 = vmatprep.subr.bf16.mxu0 0
        %864 = vmatpush1.bf16.xpose.msra.mxu0 %v861
        %865 = vmatprep.subr.bf16.mxu0 0
        %866 = vmatpush1.bf16.xpose.msra.mxu0 0
        %867 = vmatprep.subr.bf16.mxu0 0
        %868 = vmatpush1.bf16.xpose.msra.mxu0 0
        %869 = vmatprep.subr.bf16.mxu0 0
        %870 = vmatpush1.bf16.xpose.msra.mxu0 0
        %871 = vmatprep.subr.bf16.mxu0 0
        %872 = vmatpush1.bf16.xpose.msra.mxu0 0
        %873 = vmatprep.subr.bf16.mxu0 0
        %874 = vmatpush1.bf16.xpose.msra.mxu0 0
        %875 = vmatprep.subr.bf16.mxu0 0
        %876 = vmatpush1.bf16.xpose.msra.mxu0 0
        %877 = vmatprep.subr.bf16.mxu0 0
        %878 = vmatpush1.bf16.xpose.msra.mxu0 0
        %879 = vmatprep.subr.bf16.mxu0 0
        %880 = vmatpush1.bf16.xpose.msra.mxu0 0
        %881 = vmatprep.subr.bf16.mxu0 0
        %882 = vmatpush1.bf16.xpose.msra.mxu0 0
        %883 = vmatprep.subr.bf16.mxu0 0
        %884 = vmatpush1.bf16.xpose.msra.mxu0 0
        %885 = vmatprep.subr.bf16.mxu0 0
        %886 = vmatpush1.bf16.xpose.msra.mxu0 0
        %887 = vmatprep.subr.bf16.mxu0 0
        %888 = vmatpush1.bf16.xpose.msra.mxu0 0
        %889 = vmatprep.subr.bf16.mxu0 0
        %890 = vmatpush1.bf16.xpose.msra.mxu0 0
        %891 = vmatprep.subr.bf16.mxu0 0
        %892 = vmatpush1.bf16.xpose.msra.mxu0 0
        %893 = vmatprep.subr.bf16.mxu0 0
        %894 = vmatpush1.bf16.xpose.msra.mxu0 0
        %895 = vmatprep.mubr.bf16.mxu0 0
        %896 = vmatmul.mubr.bf16.gmra.mrb[0].mxu0 %v858
        %v897 = vpop.f32.mrb[0].mxu0
        %v898 = vadd.f32 %v601, %v897
        %v899 = vpop.f32.mrb[0].mxu0
        %v900 = vpop.f32.mrb[0].mxu0
        %v901 = vpop.f32.mrb[0].mxu0
        %902 = vdwg.mxu0
        %v903 = vsel %vm793, %v898, -inf
        %904 = vmax.xlane.f32.xlu0 %v903
        %v905 = vpop.xlane.xlu0 %904
        %v906 = vsub.f32 %v898, %v905
        %v907 = vmul.f32 %v906, 1.442695
        %v908 = vpow.pop %v907
        %v909 = vsel %vm793, %v908, 0.0
        %910 = vadd.xlane.f32.xlu0 %v909
        %v911 = vpop.xlane.xlu0 %910
        %v912 = vrcp.pop %v911
        %v913 = vmul.f32 %v908, %v912
        %v914 = vpack.c.bf16 %v913, %v913
        %916 = vrot.lane.b32.xlu0 %v742, 112
        %v917 = vpop.permute.xlu0 %916
        %v919 = vsel %vm793, %v914, 0
        %v922 = vsel %vm809, %v917, 0
        %924 = vmatprep.subr.bf16.mxu0 0
        %925 = vmatpush1.bf16.msra.mxu0 %v922
        %926 = vmatprep.subr.bf16.mxu0 0
        %927 = vmatpush1.bf16.msra.mxu0 0
        %928 = vmatprep.subr.bf16.mxu0 0
        %929 = vmatpush1.bf16.msra.mxu0 0
        %930 = vmatprep.subr.bf16.mxu0 0
        %931 = vmatpush1.bf16.msra.mxu0 0
        %932 = vmatprep.subr.bf16.mxu0 0
        %933 = vmatpush1.bf16.msra.mxu0 0
        %934 = vmatprep.subr.bf16.mxu0 0
        %935 = vmatpush1.bf16.msra.mxu0 0
        %936 = vmatprep.subr.bf16.mxu0 0
        %937 = vmatpush1.bf16.msra.mxu0 0
        %938 = vmatprep.subr.bf16.mxu0 0
        %939 = vmatpush1.bf16.msra.mxu0 0
        %940 = vmatprep.subr.bf16.mxu0 0
        %941 = vmatpush1.bf16.msra.mxu0 0
        %942 = vmatprep.subr.bf16.mxu0 0
        %943 = vmatpush1.bf16.msra.mxu0 0
        %944 = vmatprep.subr.bf16.mxu0 0
        %945 = vmatpush1.bf16.msra.mxu0 0
        %946 = vmatprep.subr.bf16.mxu0 0
        %947 = vmatpush1.bf16.msra.mxu0 0
        %948 = vmatprep.subr.bf16.mxu0 0
        %949 = vmatpush1.bf16.msra.mxu0 0
        %950 = vmatprep.subr.bf16.mxu0 0
        %951 = vmatpush1.bf16.msra.mxu0 0
        %952 = vmatprep.subr.bf16.mxu0 0
        %953 = vmatpush1.bf16.msra.mxu0 0
        %954 = vmatprep.subr.bf16.mxu0 0
        %955 = vmatpush1.bf16.msra.mxu0 0
        %956 = vmatprep.mubr.bf16.mxu0 0
        %957 = vmatmul.mubr.bf16.gmra.mrb[0].mxu0 %v919
        %v958 = vpop.f32.mrb[0].mxu0
        %v959 = vadd.f32 0.0, %v958
        %v960 = vpop.f32.mrb[0].mxu0
        %v961 = vpop.f32.mrb[0].mxu0
        %v962 = vpop.f32.mrb[0].mxu0
        %963 = vdwg.mxu0
        %964 = vrot.lane.b32.xlu0 %v741, 96
        %v965 = vpop.permute.xlu0 %964
        %966 = vrot.lane.b32.xlu0 %v741, 32
        %v967 = vpop.permute.xlu0 %966
        %v969 = vsel %vm746, %v965, 0
        %v972 = vsel %vm746, %v967, 0
        %974 = vmatprep.subr.bf16.mxu0 0
        %975 = vmatpush1.bf16.xpose.msra.mxu0 %v972
        %976 = vmatprep.subr.bf16.mxu0 0
        %977 = vmatpush1.bf16.xpose.msra.mxu0 0
        %978 = vmatprep.subr.bf16.mxu0 0
        %979 = vmatpush1.bf16.xpose.msra.mxu0 0
        %980 = vmatprep.subr.bf16.mxu0 0
        %981 = vmatpush1.bf16.xpose.msra.mxu0 0
        %982 = vmatprep.subr.bf16.mxu0 0
        %983 = vmatpush1.bf16.xpose.msra.mxu0 0
        %984 = vmatprep.subr.bf16.mxu0 0
        %985 = vmatpush1.bf16.xpose.msra.mxu0 0
        %986 = vmatprep.subr.bf16.mxu0 0
        %987 = vmatpush1.bf16.xpose.msra.mxu0 0
        %988 = vmatprep.subr.bf16.mxu0 0
        %989 = vmatpush1.bf16.xpose.msra.mxu0 0
        %990 = vmatprep.subr.bf16.mxu0 0
        %991 = vmatpush1.bf16.xpose.msra.mxu0 0
        %992 = vmatprep.subr.bf16.mxu0 0
        %993 = vmatpush1.bf16.xpose.msra.mxu0 0
        %994 = vmatprep.subr.bf16.mxu0 0
        %995 = vmatpush1.bf16.xpose.msra.mxu0 0
        %996 = vmatprep.subr.bf16.mxu0 0
        %997 = vmatpush1.bf16.xpose.msra.mxu0 0
        %998 = vmatprep.subr.bf16.mxu0 0
        %999 = vmatpush1.bf16.xpose.msra.mxu0 0
        %1000 = vmatprep.subr.bf16.mxu0 0
        %1001 = vmatpush1.bf16.xpose.msra.mxu0 0
        %1002 = vmatprep.subr.bf16.mxu0 0
        %1003 = vmatpush1.bf16.xpose.msra.mxu0 0
        %1004 = vmatprep.subr.bf16.mxu0 0
        %1005 = vmatpush1.bf16.xpose.msra.mxu0 0
        %1006 = vmatprep.mubr.bf16.mxu0 0
        %1007 = vmatmul.mubr.bf16.gmra.mrb[0].mxu0 %v969
        %v1008 = vpop.f32.mrb[0].mxu0
        %v1009 = vadd.f32 %v601, %v1008
        %v1010 = vpop.f32.mrb[0].mxu0
        %v1011 = vpop.f32.mrb[0].mxu0
        %v1012 = vpop.f32.mrb[0].mxu0
        %1013 = vdwg.mxu0
        %v1014 = vsel %vm793, %v1009, -inf
        %1015 = vmax.xlane.f32.xlu0 %v1014
        %v1016 = vpop.xlane.xlu0 %1015
        %v1017 = vsub.f32 %v1009, %v1016
        %v1018 = vmul.f32 %v1017, 1.442695
        %v1019 = vpow.pop %v1018
        %v1020 = vsel %vm793, %v1019, 0.0
        %1021 = vadd.xlane.f32.xlu0 %v1020
        %v1022 = vpop.xlane.xlu0 %1021
        %v1023 = vrcp.pop %v1022
        %v1024 = vmul.f32 %v1019, %v1023
        %v1025 = vpack.c.bf16 %v1024, %v1024
        %1026 = vrot.lane.b32.xlu0 %v742, 96
        %v1027 = vpop.permute.xlu0 %1026
        %v1029 = vsel %vm793, %v1025, 0
        %v1032 = vsel %vm809, %v1027, 0
        %1034 = vmatprep.subr.bf16.mxu0 0
        %1035 = vmatpush1.bf16.msra.mxu0 %v1032
        %1036 = vmatprep.subr.bf16.mxu0 0
        %1037 = vmatpush1.bf16.msra.mxu0 0
        %1038 = vmatprep.subr.bf16.mxu0 0
        %1039 = vmatpush1.bf16.msra.mxu0 0
        %1040 = vmatprep.subr.bf16.mxu0 0
        %1041 = vmatpush1.bf16.msra.mxu0 0
        %1042 = vmatprep.subr.bf16.mxu0 0
        %1043 = vmatpush1.bf16.msra.mxu0 0
        %1044 = vmatprep.subr.bf16.mxu0 0
        %1045 = vmatpush1.bf16.msra.mxu0 0
        %1046 = vmatprep.subr.bf16.mxu0 0
        %1047 = vmatpush1.bf16.msra.mxu0 0
        %1048 = vmatprep.subr.bf16.mxu0 0
        %1049 = vmatpush1.bf16.msra.mxu0 0
        %1050 = vmatprep.subr.bf16.mxu0 0
        %1051 = vmatpush1.bf16.msra.mxu0 0
        %1052 = vmatprep.subr.bf16.mxu0 0
        %1053 = vmatpush1.bf16.msra.mxu0 0
        %1054 = vmatprep.subr.bf16.mxu0 0
        %1055 = vmatpush1.bf16.msra.mxu0 0
        %1056 = vmatprep.subr.bf16.mxu0 0
        %1057 = vmatpush1.bf16.msra.mxu0 0
        %1058 = vmatprep.subr.bf16.mxu0 0
        %1059 = vmatpush1.bf16.msra.mxu0 0
        %1060 = vmatprep.subr.bf16.mxu0 0
        %1061 = vmatpush1.bf16.msra.mxu0 0
        %1062 = vmatprep.subr.bf16.mxu0 0
        %1063 = vmatpush1.bf16.msra.mxu0 0
        %1064 = vmatprep.subr.bf16.mxu0 0
        %1065 = vmatpush1.bf16.msra.mxu0 0
        %1066 = vmatprep.mubr.bf16.mxu0 0
        %1067 = vmatmul.mubr.bf16.gmra.mrb[0].mxu0 %v1029
        %v1068 = vpop.f32.mrb[0].mxu0
        %v1069 = vadd.f32 0.0, %v1068
        %v1070 = vpop.f32.mrb[0].mxu0
        %v1071 = vpop.f32.mrb[0].mxu0
        %v1072 = vpop.f32.mrb[0].mxu0
        %1073 = vdwg.mxu0
        %1074 = vrot.lane.b32.xlu0 %v741, 80
        %v1075 = vpop.permute.xlu0 %1074
        %1076 = vrot.lane.b32.xlu0 %v741, 16
        %v1077 = vpop.permute.xlu0 %1076
        %v1079 = vsel %vm746, %v1075, 0
        %v1082 = vsel %vm746, %v1077, 0
        %1084 = vmatprep.subr.bf16.mxu0 0
        %1085 = vmatpush1.bf16.xpose.msra.mxu0 %v1082
        %1086 = vmatprep.subr.bf16.mxu0 0
        %1087 = vmatpush1.bf16.xpose.msra.mxu0 0
        %1088 = vmatprep.subr.bf16.mxu0 0
        %1089 = vmatpush1.bf16.xpose.msra.mxu0 0
        %1090 = vmatprep.subr.bf16.mxu0 0
        %1091 = vmatpush1.bf16.xpose.msra.mxu0 0
        %1092 = vmatprep.subr.bf16.mxu0 0
        %1093 = vmatpush1.bf16.xpose.msra.mxu0 0
        %1094 = vmatprep.subr.bf16.mxu0 0
        %1095 = vmatpush1.bf16.xpose.msra.mxu0 0
        %1096 = vmatprep.subr.bf16.mxu0 0
        %1097 = vmatpush1.bf16.xpose.msra.mxu0 0
        %1098 = vmatprep.subr.bf16.mxu0 0
        %1099 = vmatpush1.bf16.xpose.msra.mxu0 0
        %1100 = vmatprep.subr.bf16.mxu0 0
        %1101 = vmatpush1.bf16.xpose.msra.mxu0 0
        %1102 = vmatprep.subr.bf16.mxu0 0
        %1103 = vmatpush1.bf16.xpose.msra.mxu0 0
        %1104 = vmatprep.subr.bf16.mxu0 0
        %1105 = vmatpush1.bf16.xpose.msra.mxu0 0
        %1106 = vmatprep.subr.bf16.mxu0 0
        %1107 = vmatpush1.bf16.xpose.msra.mxu0 0
        %1108 = vmatprep.subr.bf16.mxu0 0
        %1109 = vmatpush1.bf16.xpose.msra.mxu0 0
        %1110 = vmatprep.subr.bf16.mxu0 0
        %1111 = vmatpush1.bf16.xpose.msra.mxu0 0
        %1112 = vmatprep.subr.bf16.mxu0 0
        %1113 = vmatpush1.bf16.xpose.msra.mxu0 0
        %1114 = vmatprep.subr.bf16.mxu0 0
        %1115 = vmatpush1.bf16.xpose.msra.mxu0 0
        %1116 = vmatprep.mubr.bf16.mxu0 0
        %1117 = vmatmul.mubr.bf16.gmra.mrb[0].mxu0 %v1079
        %v1118 = vpop.f32.mrb[0].mxu0
        %v1119 = vadd.f32 %v601, %v1118
        %v1120 = vpop.f32.mrb[0].mxu0
        %v1121 = vpop.f32.mrb[0].mxu0
        %v1122 = vpop.f32.mrb[0].mxu0
        %1123 = vdwg.mxu0
        %v1124 = vsel %vm793, %v1119, -inf
        %1125 = vmax.xlane.f32.xlu0 %v1124
        %v1126 = vpop.xlane.xlu0 %1125
        %v1127 = vsub.f32 %v1119, %v1126
        %v1128 = vmul.f32 %v1127, 1.442695
        %v1129 = vpow.pop %v1128
        %v1130 = vsel %vm793, %v1129, 0.0
        %1131 = vadd.xlane.f32.xlu0 %v1130
        %v1132 = vpop.xlane.xlu0 %1131
        %v1133 = vrcp.pop %v1132
        %v1134 = vmul.f32 %v1129, %v1133
        %v1135 = vpack.c.bf16 %v1134, %v1134
        %1136 = vrot.lane.b32.xlu0 %v742, 80
        %v1137 = vpop.permute.xlu0 %1136
        %v1139 = vsel %vm793, %v1135, 0
        %v1142 = vsel %vm809, %v1137, 0
        %1144 = vmatprep.subr.bf16.mxu0 0
        %1145 = vmatpush1.bf16.msra.mxu0 %v1142
        %1146 = vmatprep.subr.bf16.mxu0 0
        %1147 = vmatpush1.bf16.msra.mxu0 0
        %1148 = vmatprep.subr.bf16.mxu0 0
        %1149 = vmatpush1.bf16.msra.mxu0 0
        %1150 = vmatprep.subr.bf16.mxu0 0
        %1151 = vmatpush1.bf16.msra.mxu0 0
        %1152 = vmatprep.subr.bf16.mxu0 0
        %1153 = vmatpush1.bf16.msra.mxu0 0
        %1154 = vmatprep.subr.bf16.mxu0 0
        %1155 = vmatpush1.bf16.msra.mxu0 0
        %1156 = vmatprep.subr.bf16.mxu0 0
        %1157 = vmatpush1.bf16.msra.mxu0 0
        %1158 = vmatprep.subr.bf16.mxu0 0
        %1159 = vmatpush1.bf16.msra.mxu0 0
        %1160 = vmatprep.subr.bf16.mxu0 0
        %1161 = vmatpush1.bf16.msra.mxu0 0
        %1162 = vmatprep.subr.bf16.mxu0 0
        %1163 = vmatpush1.bf16.msra.mxu0 0
        %1164 = vmatprep.subr.bf16.mxu0 0
        %1165 = vmatpush1.bf16.msra.mxu0 0
        %1166 = vmatprep.subr.bf16.mxu0 0
        %1167 = vmatpush1.bf16.msra.mxu0 0
        %1168 = vmatprep.subr.bf16.mxu0 0
        %1169 = vmatpush1.bf16.msra.mxu0 0
        %1170 = vmatprep.subr.bf16.mxu0 0
        %1171 = vmatpush1.bf16.msra.mxu0 0
        %1172 = vmatprep.subr.bf16.mxu0 0
        %1173 = vmatpush1.bf16.msra.mxu0 0
        %1174 = vmatprep.subr.bf16.mxu0 0
        %1175 = vmatpush1.bf16.msra.mxu0 0
        %1176 = vmatprep.mubr.bf16.mxu0 0
        %1177 = vmatmul.mubr.bf16.gmra.mrb[0].mxu0 %v1139
        %v1178 = vpop.f32.mrb[0].mxu0
        %v1179 = vadd.f32 0.0, %v1178
        %v1180 = vpop.f32.mrb[0].mxu0
        %v1181 = vpop.f32.mrb[0].mxu0
        %v1182 = vpop.f32.mrb[0].mxu0
        %1183 = vdwg.mxu0
        %1185 = vrot.lane.b32.xlu0 %v959, 16
        %v1186 = vpop.permute.xlu0 %1185
        %1189 = vrot.lane.b32.xlu0 %v1069, 32
        %v1190 = vpop.permute.xlu0 %1189
        %1193 = vrot.lane.b32.xlu0 %v1179, 48
        %v1194 = vpop.permute.xlu0 %1193
        %v1196 = vsel %vm746, %v848, %v1186
        %vm1197 = vcmask 261120
        %v1198 = vsel %vm1197, %v1196, %v1190
        %vm1199 = vcmask 392192
        %v1200 = vsel %vm1199, %v1198, %v1194
        %v1201 = vpack.c.bf16 %v1200, %v1200
        %v1202 = vld [vmem:[%s3] sm:$0xf]
        %v1203 = vld [vmem:[%s3 + $0x4] sm:$0xf]
        %v1204 = vld [vmem:[%s3 + $0x8] sm:$0xf]
        %v1205 = vld [vmem:[%s3 + $0xc] sm:$0xf]
        %v1206 = vld [vmem:[%s3 + $0x10] sm:$0xf]
        %v1207 = vld [vmem:[%s3 + $0x14] sm:$0xf]
        %v1208 = vld [vmem:[%s3 + $0x18] sm:$0xf]
        %v1209 = vld [vmem:[%s3 + $0x1c] sm:$0xf]
        %v1218 = vunpack.c.l.b16 %v1202
        %v1219 = vunpack.c.l.b16 %v1203
        %v1220 = vunpack.c.l.b16 %v1204
        %v1221 = vunpack.c.l.b16 %v1205
        %v1222 = vunpack.c.l.b16 %v1206
        %v1223 = vunpack.c.l.b16 %v1207
        %v1224 = vunpack.c.l.b16 %v1208
        %v1225 = vunpack.c.l.b16 %v1209
        %v1226 = vpack.c.b16 %v1219, %v1218
        %v1227 = vpack.c.b16 %v1221, %v1220
        %v1228 = vpack.c.b16 %v1223, %v1222
        %v1229 = vpack.c.b16 %v1225, %v1224
        %v1235 = vsel %vm604, %v1201, 0
        %1237 = vmatprep.subr.bf16.mxu0 0
        %1238 = vmatpush1.bf16.msra.mxu0 %v1226
        %1239 = vmatprep.subr.bf16.mxu0 0
        %1240 = vmatpush1.bf16.msra.mxu0 %v1227
        %1241 = vmatprep.subr.bf16.mxu0 0
        %1242 = vmatpush1.bf16.msra.mxu0 %v1228
        %1243 = vmatprep.subr.bf16.mxu0 0
        %1244 = vmatpush1.bf16.msra.mxu0 %v1229
        %1245 = vmatprep.subr.bf16.mxu0 0
        %1246 = vmatpush1.bf16.msra.mxu0 0
        %1247 = vmatprep.subr.bf16.mxu0 0
        %1248 = vmatpush1.bf16.msra.mxu0 0
        %1249 = vmatprep.subr.bf16.mxu0 0
        %1250 = vmatpush1.bf16.msra.mxu0 0
        %1251 = vmatprep.subr.bf16.mxu0 0
        %1252 = vmatpush1.bf16.msra.mxu0 0
        %1253 = vmatprep.subr.bf16.mxu0 0
        %1254 = vmatpush1.bf16.msra.mxu0 0
        %1255 = vmatprep.subr.bf16.mxu0 0
        %1256 = vmatpush1.bf16.msra.mxu0 0
        %1257 = vmatprep.subr.bf16.mxu0 0
        %1258 = vmatpush1.bf16.msra.mxu0 0
        %1259 = vmatprep.subr.bf16.mxu0 0
        %1260 = vmatpush1.bf16.msra.mxu0 0
        %1261 = vmatprep.subr.bf16.mxu0 0
        %1262 = vmatpush1.bf16.msra.mxu0 0
        %1263 = vmatprep.subr.bf16.mxu0 0
        %1264 = vmatpush1.bf16.msra.mxu0 0
        %1265 = vmatprep.subr.bf16.mxu0 0
        %1266 = vmatpush1.bf16.msra.mxu0 0
        %1267 = vmatprep.subr.bf16.mxu0 0
        %1268 = vmatpush1.bf16.msra.mxu0 0
        %1269 = vmatprep.mubr.bf16.mxu0 0
        %1270 = vmatmul.mubr.bf16.gmra.mrb[0].mxu0 %v1235
        %v1271 = vpop.f32.mrb[0].mxu0
        %v1272 = vadd.f32 0.0, %v1271
        %v1273 = vpop.f32.mrb[0].mxu0
        %v1274 = vpop.f32.mrb[0].mxu0
        %v1275 = vpop.f32.mrb[0].mxu0
        %1276 = vdwg.mxu0
        %v1277 = vadd.f32 %v595, %v1272
        %v1278 = vld [vmem:[%s4] sm:$0x1]
        %v1280 = vlaneseq
        %v1281 = vshrl.u32 %v1280, 7
        %v1282 = vsub.s32 0, %v1281
        %v1283 = vrot.slane %v1278, %v1282
        %v1285 = vadd.f32 %v1277, %v1283
        %v1286 = vld [vmem:[%s7] sm:$0x1]
        %v1287 = vld [vmem:[%s8] sm:$0x1]
        %v1288 = vsel %vm604, %v1285, 0.0
        %1289 = vadd.xlane.f32.xlu0 %v1288
        %v1290 = vpop.xlane.xlu0 %1289
        %v1291 = vmul.f32 %v1290, %v608
        %v1292 = vmul.f32 %v1285, %v1285
        %v1293 = vsel %vm604, %v1292, 0.0
        %1294 = vadd.xlane.f32.xlu0 %v1293
        %v1295 = vpop.xlane.xlu0 %1294
        %v1296 = vmul.f32 %v1295, %v608
        %v1297 = vmul.f32 %v1291, %v1291
        %v1298 = vsub.f32 %v1296, %v1297
        %v1299 = vmax.f32 %v1298, 0.0
        %v1300 = vsub.f32 %v1285, %v1291
        %v1301 = vadd.f32 %v1299, 1e-05
        %v1302 = vrsqrt.pop %v1301
        %v1303 = vmul.f32 %v1300, %v1302
        %v1305 = vlaneseq
        %v1306 = vshrl.u32 %v1305, 7
        %v1307 = vsub.s32 0, %v1306
        %v1308 = vrot.slane %v1286, %v1307
        %v1310 = vmul.f32 %v1303, %v1308
        %v1312 = vlaneseq
        %v1313 = vshrl.u32 %v1312, 7
        %v1314 = vsub.s32 0, %v1313
        %v1315 = vrot.slane %v1287, %v1314
        %v1317 = vadd.f32 %v1310, %v1315
        %v1318 = vpack.c.bf16 %v1317, %v1317
        %v1319 = vld [vmem:[#allocation5] sm:$0xf]
        %v1320 = vld [vmem:[#allocation5 + $0x4] sm:$0xf]
        %v1321 = vld [vmem:[#allocation5 + $0x8] sm:$0xf]
        %v1322 = vld [vmem:[#allocation5 + $0xc] sm:$0xf]
        %v1323 = vld [vmem:[#allocation5 + $0x10] sm:$0xf]
        %v1324 = vld [vmem:[#allocation5 + $0x14] sm:$0xf]
        %v1325 = vld [vmem:[#allocation5 + $0x18] sm:$0xf]
        %v1326 = vld [vmem:[#allocation5 + $0x1c] sm:$0xf]
        %v1327 = vld [vmem:[%s10] sm:$0x1]
        %v1329 = vlaneseq
        %v1330 = vshrl.u32 %v1329, 7
        %v1331 = vsub.s32 0, %v1330
        %v1332 = vrot.slane %v1327, %v1331
        %v1342 = vunpack.c.l.b16 %v1319
        %v1343 = vunpack.c.l.b16 %v1320
        %v1344 = vunpack.c.l.b16 %v1321
        %v1345 = vunpack.c.l.b16 %v1322
        %v1346 = vunpack.c.l.b16 %v1323
        %v1347 = vunpack.c.l.b16 %v1324
        %v1348 = vunpack.c.l.b16 %v1325
        %v1349 = vunpack.c.l.b16 %v1326
        %v1350 = vpack.c.b16 %v1343, %v1342
        %v1351 = vpack.c.b16 %v1345, %v1344
        %v1352 = vpack.c.b16 %v1347, %v1346
        %v1353 = vpack.c.b16 %v1349, %v1348
        %v1359 = vsel %vm604, %v1318, 0
        %1361 = vmatprep.subr.bf16.mxu0 0
        %1362 = vmatpush1.bf16.msra.mxu0 %v1350
        %1363 = vmatprep.subr.bf16.mxu0 0
        %1364 = vmatpush1.bf16.msra.mxu0 %v1351
        %1365 = vmatprep.subr.bf16.mxu0 0
        %1366 = vmatpush1.bf16.msra.mxu0 %v1352
        %1367 = vmatprep.subr.bf16.mxu0 0
        %1368 = vmatpush1.bf16.msra.mxu0 %v1353
        %1369 = vmatprep.subr.bf16.mxu0 0
        %1370 = vmatpush1.bf16.msra.mxu0 0
        %1371 = vmatprep.subr.bf16.mxu0 0
        %1372 = vmatpush1.bf16.msra.mxu0 0
        %1373 = vmatprep.subr.bf16.mxu0 0
        %1374 = vmatpush1.bf16.msra.mxu0 0
        %1375 = vmatprep.subr.bf16.mxu0 0
        %1376 = vmatpush1.bf16.msra.mxu0 0
        %1377 = vmatprep.subr.bf16.mxu0 0
        %1378 = vmatpush1.bf16.msra.mxu0 0
        %1379 = vmatprep.subr.bf16.mxu0 0
        %1380 = vmatpush1.bf16.msra.mxu0 0
        %1381 = vmatprep.subr.bf16.mxu0 0
        %1382 = vmatpush1.bf16.msra.mxu0 0
        %1383 = vmatprep.subr.bf16.mxu0 0
        %1384 = vmatpush1.bf16.msra.mxu0 0
        %1385 = vmatprep.subr.bf16.mxu0 0
        %1386 = vmatpush1.bf16.msra.mxu0 0
        %1387 = vmatprep.subr.bf16.mxu0 0
        %1388 = vmatpush1.bf16.msra.mxu0 0
        %1389 = vmatprep.subr.bf16.mxu0 0
        %1390 = vmatpush1.bf16.msra.mxu0 0
        %1391 = vmatprep.subr.bf16.mxu0 0
        %1392 = vmatpush1.bf16.msra.mxu0 0
        %1393 = vmatprep.mubr.bf16.mxu0 0
        %1394 = vmatmul.mubr.bf16.gmra.mrb[0].mxu0 %v1359
        %v1395 = vpop.f32.mrb[0].mxu0
        %v1396 = vadd.f32 %v1332, %v1395
        %v1397 = vpop.f32.mrb[0].mxu0
        %v1398 = vpop.f32.mrb[0].mxu0
        %v1399 = vpop.f32.mrb[0].mxu0
        %1400 = vdwg.mxu0
        %v1401 = vmax.f32 %v1396, 0.0
        %v1402 = vpack.c.bf16 %v1401, %v1401
        %v1403 = vld [vmem:[%s11] sm:$0xf]
        %v1404 = vld [vmem:[%s11 + $0x4] sm:$0xf]
        %v1405 = vld [vmem:[%s11 + $0x8] sm:$0xf]
        %v1406 = vld [vmem:[%s11 + $0xc] sm:$0xf]
        %v1407 = vld [vmem:[%s11 + $0x10] sm:$0xf]
        %v1408 = vld [vmem:[%s11 + $0x14] sm:$0xf]
        %v1409 = vld [vmem:[%s11 + $0x18] sm:$0xf]
        %v1410 = vld [vmem:[%s11 + $0x1c] sm:$0xf]
        %v1411 = vld [vmem:[%s11 + $0x20] sm:$0xf]
        %v1412 = vld [vmem:[%s11 + $0x24] sm:$0xf]
        %v1413 = vld [vmem:[%s11 + $0x28] sm:$0xf]
        %v1414 = vld [vmem:[%s11 + $0x2c] sm:$0xf]
        %v1415 = vld [vmem:[%s11 + $0x30] sm:$0xf]
        %v1416 = vld [vmem:[%s11 + $0x34] sm:$0xf]
        %v1417 = vld [vmem:[%s11 + $0x38] sm:$0xf]
        %v1418 = vld [vmem:[%s11 + $0x3c] sm:$0xf]
        %v1419 = vld [vmem:[%s12] sm:$0x1]
        %v1421 = vlaneseq
        %v1422 = vshrl.u32 %v1421, 7
        %v1423 = vsub.s32 0, %v1422
        %v1424 = vrot.slane %v1419, %v1423
        %v1442 = vunpack.c.l.b16 %v1403
        %v1443 = vunpack.c.l.b16 %v1404
        %v1444 = vunpack.c.l.b16 %v1405
        %v1445 = vunpack.c.l.b16 %v1406
        %v1446 = vunpack.c.l.b16 %v1407
        %v1447 = vunpack.c.l.b16 %v1408
        %v1448 = vunpack.c.l.b16 %v1409
        %v1449 = vunpack.c.l.b16 %v1410
        %v1450 = vunpack.c.l.b16 %v1411
        %v1451 = vunpack.c.l.b16 %v1412
        %v1452 = vunpack.c.l.b16 %v1413
        %v1453 = vunpack.c.l.b16 %v1414
        %v1454 = vunpack.c.l.b16 %v1415
        %v1455 = vunpack.c.l.b16 %v1416
        %v1456 = vunpack.c.l.b16 %v1417
        %v1457 = vunpack.c.l.b16 %v1418
        %v1458 = vpack.c.b16 %v1443, %v1442
        %v1459 = vpack.c.b16 %v1445, %v1444
        %v1460 = vpack.c.b16 %v1447, %v1446
        %v1461 = vpack.c.b16 %v1449, %v1448
        %v1462 = vpack.c.b16 %v1451, %v1450
        %v1463 = vpack.c.b16 %v1453, %v1452
        %v1464 = vpack.c.b16 %v1455, %v1454
        %v1465 = vpack.c.b16 %v1457, %v1456
        %1474 = vmatprep.subr.bf16.mxu0 0
        %1475 = vmatpush1.bf16.msra.mxu0 %v1458
        %1476 = vmatprep.subr.bf16.mxu0 0
        %1477 = vmatpush1.bf16.msra.mxu0 %v1459
        %1478 = vmatprep.subr.bf16.mxu0 0
        %1479 = vmatpush1.bf16.msra.mxu0 %v1460
        %1480 = vmatprep.subr.bf16.mxu0 0
        %1481 = vmatpush1.bf16.msra.mxu0 %v1461
        %1482 = vmatprep.subr.bf16.mxu0 0
        %1483 = vmatpush1.bf16.msra.mxu0 %v1462
        %1484 = vmatprep.subr.bf16.mxu0 0
        %1485 = vmatpush1.bf16.msra.mxu0 %v1463
        %1486 = vmatprep.subr.bf16.mxu0 0
        %1487 = vmatpush1.bf16.msra.mxu0 %v1464
        %1488 = vmatprep.subr.bf16.mxu0 0
        %1489 = vmatpush1.bf16.msra.mxu0 %v1465
        %1490 = vmatprep.subr.bf16.mxu0 0
        %1491 = vmatpush1.bf16.msra.mxu0 0
        %1492 = vmatprep.subr.bf16.mxu0 0
        %1493 = vmatpush1.bf16.msra.mxu0 0
        %1494 = vmatprep.subr.bf16.mxu0 0
        %1495 = vmatpush1.bf16.msra.mxu0 0
        %1496 = vmatprep.subr.bf16.mxu0 0
        %1497 = vmatpush1.bf16.msra.mxu0 0
        %1498 = vmatprep.subr.bf16.mxu0 0
        %1499 = vmatpush1.bf16.msra.mxu0 0
        %1500 = vmatprep.subr.bf16.mxu0 0
        %1501 = vmatpush1.bf16.msra.mxu0 0
        %1502 = vmatprep.subr.bf16.mxu0 0
        %1503 = vmatpush1.bf16.msra.mxu0 0
        %1504 = vmatprep.subr.bf16.mxu0 0
        %1505 = vmatpush1.bf16.msra.mxu0 0
        %1506 = vmatprep.mubr.bf16.mxu0 0
        %1507 = vmatmul.mubr.bf16.gmra.mrb[0].mxu0 %v1402
        %v1508 = vpop.f32.mrb[0].mxu0
        %v1509 = vadd.f32 %v1424, %v1508
        %v1510 = vpop.f32.mrb[0].mxu0
        %v1511 = vpop.f32.mrb[0].mxu0
        %v1512 = vpop.f32.mrb[0].mxu0
        %1513 = vdwg.mxu0
        %v1514 = vadd.f32 %v1285, %v1509
        %s1515 = scalar_lea.vmem %s5, 1
        %v1516 = vld [vmem:[%s1515] sm:$0x1]
        %s1517 = scalar_lea.vmem %s6, 1
        %v1518 = vld [vmem:[%s1517] sm:$0x1]
        %v1519 = vsel %vm604, %v1514, 0.0
        %1520 = vadd.xlane.f32.xlu0 %v1519
        %v1521 = vpop.xlane.xlu0 %1520
        %v1522 = vmul.f32 %v1521, %v608
        %v1523 = vmul.f32 %v1514, %v1514
        %v1524 = vsel %vm604, %v1523, 0.0
        %1525 = vadd.xlane.f32.xlu0 %v1524
        %v1526 = vpop.xlane.xlu0 %1525
        %v1527 = vmul.f32 %v1526, %v608
        %v1528 = vmul.f32 %v1522, %v1522
        %v1529 = vsub.f32 %v1527, %v1528
        %v1530 = vmax.f32 %v1529, 0.0
        %v1531 = vsub.f32 %v1514, %v1522
        %v1532 = vadd.f32 %v1530, 1e-05
        %v1533 = vrsqrt.pop %v1532
        %v1534 = vmul.f32 %v1531, %v1533
        %v1536 = vlaneseq
        %v1537 = vshrl.u32 %v1536, 7
        %v1538 = vsub.s32 0, %v1537
        %v1539 = vrot.slane %v1516, %v1538
        %v1541 = vmul.f32 %v1534, %v1539
        %v1543 = vlaneseq
        %v1544 = vshrl.u32 %v1543, 7
        %v1545 = vsub.s32 0, %v1544
        %v1546 = vrot.slane %v1518, %v1545
        %v1548 = vadd.f32 %v1541, %v1546
        %v1549 = vpack.c.bf16 %v1548, %v1548
        %s1550 = scalar_lea.vmem %s1, 64
        %v1551 = vld [vmem:[%s1550] sm:$0xff]
        %v1552 = vld [vmem:[%s1550 + $0x8] sm:$0xff]
        %v1553 = vld [vmem:[%s1550 + $0x10] sm:$0xff]
        %v1554 = vld [vmem:[%s1550 + $0x18] sm:$0xff]
        %v1555 = vld [vmem:[%s1550 + $0x20] sm:$0xff]
        %v1556 = vld [vmem:[%s1550 + $0x28] sm:$0xff]
        %v1557 = vld [vmem:[%s1550 + $0x30] sm:$0xff]
        %v1558 = vld [vmem:[%s1550 + $0x38] sm:$0xff]
        %s1559 = scalar_lea.vmem %s2, 2
        %v1560 = vld [vmem:[%s1559] sm:$0x3]
        %v1562 = vlaneseq
        %v1563 = vshrl.u32 %v1562, 7
        %v1564 = vsub.s32 0, %v1563
        %v1565 = vrot.slane %v1560, %v1564
        %v1566 = vlaneseq
        %v1567 = vshrl.u32 %v1566, 7
        %v1568 = vsub.s32 1, %v1567
        %v1569 = vrot.slane %v1560, %v1568
        %v1580 = vunpack.c.l.b16 %v1551
        %v1581 = vunpack.c.h.b16 %v1551
        %v1582 = vunpack.c.l.b16 %v1552
        %v1583 = vunpack.c.h.b16 %v1552
        %v1584 = vunpack.c.l.b16 %v1553
        %v1585 = vunpack.c.h.b16 %v1553
        %v1586 = vunpack.c.l.b16 %v1554
        %v1587 = vunpack.c.h.b16 %v1554
        %v1588 = vunpack.c.l.b16 %v1555
        %v1589 = vunpack.c.h.b16 %v1555
        %v1590 = vunpack.c.l.b16 %v1556
        %v1591 = vunpack.c.h.b16 %v1556
        %v1592 = vunpack.c.l.b16 %v1557
        %v1593 = vunpack.c.h.b16 %v1557
        %v1594 = vunpack.c.l.b16 %v1558
        %v1595 = vunpack.c.h.b16 %v1558
        %v1596 = vpack.c.b16 %v1582, %v1580
        %v1597 = vpack.c.b16 %v1583, %v1581
        %v1598 = vpack.c.b16 %v1586, %v1584
        %v1599 = vpack.c.b16 %v1587, %v1585
        %v1600 = vpack.c.b16 %v1590, %v1588
        %v1601 = vpack.c.b16 %v1591, %v1589
        %v1602 = vpack.c.b16 %v1594, %v1592
        %v1603 = vpack.c.b16 %v1595, %v1593
        %v1613 = vsel %vm604, %v1549, 0
        %1615 = vmatprep.subr.bf16.mxu0 %v1597
        %1616 = vmatpush1.bf16.msra.mxu0 %v1596
        %1617 = vmatprep.subr.bf16.mxu0 %v1599
        %1618 = vmatpush1.bf16.msra.mxu0 %v1598
        %1619 = vmatprep.subr.bf16.mxu0 %v1601
        %1620 = vmatpush1.bf16.msra.mxu0 %v1600
        %1621 = vmatprep.subr.bf16.mxu0 %v1603
        %1622 = vmatpush1.bf16.msra.mxu0 %v1602
        %1623 = vmatprep.subr.bf16.mxu0 0
        %1624 = vmatpush1.bf16.msra.mxu0 0
        %1625 = vmatprep.subr.bf16.mxu0 0
        %1626 = vmatpush1.bf16.msra.mxu0 0
        %1627 = vmatprep.subr.bf16.mxu0 0
        %1628 = vmatpush1.bf16.msra.mxu0 0
        %1629 = vmatprep.subr.bf16.mxu0 0
        %1630 = vmatpush1.bf16.msra.mxu0 0
        %1631 = vmatprep.subr.bf16.mxu0 0
        %1632 = vmatpush1.bf16.msra.mxu0 0
        %1633 = vmatprep.subr.bf16.mxu0 0
        %1634 = vmatpush1.bf16.msra.mxu0 0
        %1635 = vmatprep.subr.bf16.mxu0 0
        %1636 = vmatpush1.bf16.msra.mxu0 0
        %1637 = vmatprep.subr.bf16.mxu0 0
        %1638 = vmatpush1.bf16.msra.mxu0 0
        %1639 = vmatprep.subr.bf16.mxu0 0
        %1640 = vmatpush1.bf16.msra.mxu0 0
        %1641 = vmatprep.subr.bf16.mxu0 0
        %1642 = vmatpush1.bf16.msra.mxu0 0
        %1643 = vmatprep.subr.bf16.mxu0 0
        %1644 = vmatpush1.bf16.msra.mxu0 0
        %1645 = vmatprep.subr.bf16.mxu0 0
        %1646 = vmatpush1.bf16.msra.mxu0 0
        %1647 = vmatprep.mubr.bf16.mxu0 0
        %1648 = vmatmul.mubr.bf16.gmra.mrb[0].mxu0 %v1613
        %v1649 = vpop.f32.mrb[0].mxu0
        %v1650 = vadd.f32 %v1565, %v1649
        %v1651 = vpop.f32.mrb[0].mxu0
        %v1652 = vadd.f32 %v1569, %v1651
        %v1653 = vpop.f32.mrb[0].mxu0
        %v1654 = vpop.f32.mrb[0].mxu0
        %1655 = vdwg.mxu0
        %v1656 = vpack.c.bf16 %v1650, %v1650
        %v1657 = vpack.c.bf16 %v1652, %v1652
        %1659 = vrot.lane.b32.xlu0 %v1656, 64
        %v1660 = vpop.permute.xlu0 %1659
        %v1662 = vsel %vm746, %v1656, 0
        %v1665 = vsel %vm746, %v1660, 0
        %1667 = vmatprep.subr.bf16.mxu0 0
        %1668 = vmatpush1.bf16.xpose.msra.mxu0 %v1665
        %1669 = vmatprep.subr.bf16.mxu0 0
        %1670 = vmatpush1.bf16.xpose.msra.mxu0 0
        %1671 = vmatprep.subr.bf16.mxu0 0
        %1672 = vmatpush1.bf16.xpose.msra.mxu0 0
        %1673 = vmatprep.subr.bf16.mxu0 0
        %1674 = vmatpush1.bf16.xpose.msra.mxu0 0
        %1675 = vmatprep.subr.bf16.mxu0 0
        %1676 = vmatpush1.bf16.xpose.msra.mxu0 0
        %1677 = vmatprep.subr.bf16.mxu0 0
        %1678 = vmatpush1.bf16.xpose.msra.mxu0 0
        %1679 = vmatprep.subr.bf16.mxu0 0
        %1680 = vmatpush1.bf16.xpose.msra.mxu0 0
        %1681 = vmatprep.subr.bf16.mxu0 0
        %1682 = vmatpush1.bf16.xpose.msra.mxu0 0
        %1683 = vmatprep.subr.bf16.mxu0 0
        %1684 = vmatpush1.bf16.xpose.msra.mxu0 0
        %1685 = vmatprep.subr.bf16.mxu0 0
        %1686 = vmatpush1.bf16.xpose.msra.mxu0 0
        %1687 = vmatprep.subr.bf16.mxu0 0
        %1688 = vmatpush1.bf16.xpose.msra.mxu0 0
        %1689 = vmatprep.subr.bf16.mxu0 0
        %1690 = vmatpush1.bf16.xpose.msra.mxu0 0
        %1691 = vmatprep.subr.bf16.mxu0 0
        %1692 = vmatpush1.bf16.xpose.msra.mxu0 0
        %1693 = vmatprep.subr.bf16.mxu0 0
        %1694 = vmatpush1.bf16.xpose.msra.mxu0 0
        %1695 = vmatprep.subr.bf16.mxu0 0
        %1696 = vmatpush1.bf16.xpose.msra.mxu0 0
        %1697 = vmatprep.subr.bf16.mxu0 0
        %1698 = vmatpush1.bf16.xpose.msra.mxu0 0
        %1699 = vmatprep.mubr.bf16.mxu0 0
        %1700 = vmatmul.mubr.bf16.gmra.mrb[0].mxu0 %v1662
        %v1701 = vpop.f32.mrb[0].mxu0
        %v1702 = vadd.f32 %v601, %v1701
        %v1703 = vpop.f32.mrb[0].mxu0
        %v1704 = vpop.f32.mrb[0].mxu0
        %v1705 = vpop.f32.mrb[0].mxu0
        %1706 = vdwg.mxu0
        %v1707 = vsel %vm793, %v1702, -inf
        %1708 = vmax.xlane.f32.xlu0 %v1707
        %v1709 = vpop.xlane.xlu0 %1708
        %v1710 = vsub.f32 %v1702, %v1709
        %v1711 = vmul.f32 %v1710, 1.442695
        %v1712 = vpow.pop %v1711
        %v1713 = vsel %vm793, %v1712, 0.0
        %1714 = vadd.xlane.f32.xlu0 %v1713
        %v1715 = vpop.xlane.xlu0 %1714
        %v1716 = vrcp.pop %v1715
        %v1717 = vmul.f32 %v1712, %v1716
        %v1718 = vpack.c.bf16 %v1717, %v1717
        %v1720 = vsel %vm793, %v1718, 0
        %v1723 = vsel %vm809, %v1657, 0
        %1725 = vmatprep.subr.bf16.mxu0 0
        %1726 = vmatpush1.bf16.msra.mxu0 %v1723
        %1727 = vmatprep.subr.bf16.mxu0 0
        %1728 = vmatpush1.bf16.msra.mxu0 0
        %1729 = vmatprep.subr.bf16.mxu0 0
        %1730 = vmatpush1.bf16.msra.mxu0 0
        %1731 = vmatprep.subr.bf16.mxu0 0
        %1732 = vmatpush1.bf16.msra.mxu0 0
        %1733 = vmatprep.subr.bf16.mxu0 0
        %1734 = vmatpush1.bf16.msra.mxu0 0
        %1735 = vmatprep.subr.bf16.mxu0 0
        %1736 = vmatpush1.bf16.msra.mxu0 0
        %1737 = vmatprep.subr.bf16.mxu0 0
        %1738 = vmatpush1.bf16.msra.mxu0 0
        %1739 = vmatprep.subr.bf16.mxu0 0
        %1740 = vmatpush1.bf16.msra.mxu0 0
        %1741 = vmatprep.subr.bf16.mxu0 0
        %1742 = vmatpush1.bf16.msra.mxu0 0
        %1743 = vmatprep.subr.bf16.mxu0 0
        %1744 = vmatpush1.bf16.msra.mxu0 0
        %1745 = vmatprep.subr.bf16.mxu0 0
        %1746 = vmatpush1.bf16.msra.mxu0 0
        %1747 = vmatprep.subr.bf16.mxu0 0
        %1748 = vmatpush1.bf16.msra.mxu0 0
        %1749 = vmatprep.subr.bf16.mxu0 0
        %1750 = vmatpush1.bf16.msra.mxu0 0
        %1751 = vmatprep.subr.bf16.mxu0 0
        %1752 = vmatpush1.bf16.msra.mxu0 0
        %1753 = vmatprep.subr.bf16.mxu0 0
        %1754 = vmatpush1.bf16.msra.mxu0 0
        %1755 = vmatprep.subr.bf16.mxu0 0
        %1756 = vmatpush1.bf16.msra.mxu0 0
        %1757 = vmatprep.mubr.bf16.mxu0 0
        %1758 = vmatmul.mubr.bf16.gmra.mrb[0].mxu0 %v1720
        %v1759 = vpop.f32.mrb[0].mxu0
        %v1760 = vadd.f32 0.0, %v1759
        %v1761 = vpop.f32.mrb[0].mxu0
        %v1762 = vpop.f32.mrb[0].mxu0
        %v1763 = vpop.f32.mrb[0].mxu0
        %1764 = vdwg.mxu0
        %1765 = vrot.lane.b32.xlu0 %v1656, 112
        %v1766 = vpop.permute.xlu0 %1765
        %1767 = vrot.lane.b32.xlu0 %v1656, 48
        %v1768 = vpop.permute.xlu0 %1767
        %v1770 = vsel %vm746, %v1766, 0
        %v1773 = vsel %vm746, %v1768, 0
        %1775 = vmatprep.subr.bf16.mxu0 0
        %1776 = vmatpush1.bf16.xpose.msra.mxu0 %v1773
        %1777 = vmatprep.subr.bf16.mxu0 0
        %1778 = vmatpush1.bf16.xpose.msra.mxu0 0
        %1779 = vmatprep.subr.bf16.mxu0 0
        %1780 = vmatpush1.bf16.xpose.msra.mxu0 0
        %1781 = vmatprep.subr.bf16.mxu0 0
        %1782 = vmatpush1.bf16.xpose.msra.mxu0 0
        %1783 = vmatprep.subr.bf16.mxu0 0
        %1784 = vmatpush1.bf16.xpose.msra.mxu0 0
        %1785 = vmatprep.subr.bf16.mxu0 0
        %1786 = vmatpush1.bf16.xpose.msra.mxu0 0
        %1787 = vmatprep.subr.bf16.mxu0 0
        %1788 = vmatpush1.bf16.xpose.msra.mxu0 0
        %1789 = vmatprep.subr.bf16.mxu0 0
        %1790 = vmatpush1.bf16.xpose.msra.mxu0 0
        %1791 = vmatprep.subr.bf16.mxu0 0
        %1792 = vmatpush1.bf16.xpose.msra.mxu0 0
        %1793 = vmatprep.subr.bf16.mxu0 0
        %1794 = vmatpush1.bf16.xpose.msra.mxu0 0
        %1795 = vmatprep.subr.bf16.mxu0 0
        %1796 = vmatpush1.bf16.xpose.msra.mxu0 0
        %1797 = vmatprep.subr.bf16.mxu0 0
        %1798 = vmatpush1.bf16.xpose.msra.mxu0 0
        %1799 = vmatprep.subr.bf16.mxu0 0
        %1800 = vmatpush1.bf16.xpose.msra.mxu0 0
        %1801 = vmatprep.subr.bf16.mxu0 0
        %1802 = vmatpush1.bf16.xpose.msra.mxu0 0
        %1803 = vmatprep.subr.bf16.mxu0 0
        %1804 = vmatpush1.bf16.xpose.msra.mxu0 0
        %1805 = vmatprep.subr.bf16.mxu0 0
        %1806 = vmatpush1.bf16.xpose.msra.mxu0 0
        %1807 = vmatprep.mubr.bf16.mxu0 0
        %1808 = vmatmul.mubr.bf16.gmra.mrb[0].mxu0 %v1770
        %v1809 = vpop.f32.mrb[0].mxu0
        %v1810 = vadd.f32 %v601, %v1809
        %v1811 = vpop.f32.mrb[0].mxu0
        %v1812 = vpop.f32.mrb[0].mxu0
        %v1813 = vpop.f32.mrb[0].mxu0
        %1814 = vdwg.mxu0
        %v1815 = vsel %vm793, %v1810, -inf
        %1816 = vmax.xlane.f32.xlu0 %v1815
        %v1817 = vpop.xlane.xlu0 %1816
        %v1818 = vsub.f32 %v1810, %v1817
        %v1819 = vmul.f32 %v1818, 1.442695
        %v1820 = vpow.pop %v1819
        %v1821 = vsel %vm793, %v1820, 0.0
        %1822 = vadd.xlane.f32.xlu0 %v1821
        %v1823 = vpop.xlane.xlu0 %1822
        %v1824 = vrcp.pop %v1823
        %v1825 = vmul.f32 %v1820, %v1824
        %v1826 = vpack.c.bf16 %v1825, %v1825
        %1828 = vrot.lane.b32.xlu0 %v1657, 112
        %v1829 = vpop.permute.xlu0 %1828
        %v1831 = vsel %vm793, %v1826, 0
        %v1834 = vsel %vm809, %v1829, 0
        %1836 = vmatprep.subr.bf16.mxu0 0
        %1837 = vmatpush1.bf16.msra.mxu0 %v1834
        %1838 = vmatprep.subr.bf16.mxu0 0
        %1839 = vmatpush1.bf16.msra.mxu0 0
        %1840 = vmatprep.subr.bf16.mxu0 0
        %1841 = vmatpush1.bf16.msra.mxu0 0
        %1842 = vmatprep.subr.bf16.mxu0 0
        %1843 = vmatpush1.bf16.msra.mxu0 0
        %1844 = vmatprep.subr.bf16.mxu0 0
        %1845 = vmatpush1.bf16.msra.mxu0 0
        %1846 = vmatprep.subr.bf16.mxu0 0
        %1847 = vmatpush1.bf16.msra.mxu0 0
        %1848 = vmatprep.subr.bf16.mxu0 0
        %1849 = vmatpush1.bf16.msra.mxu0 0
        %1850 = vmatprep.subr.bf16.mxu0 0
        %1851 = vmatpush1.bf16.msra.mxu0 0
        %1852 = vmatprep.subr.bf16.mxu0 0
        %1853 = vmatpush1.bf16.msra.mxu0 0
        %1854 = vmatprep.subr.bf16.mxu0 0
        %1855 = vmatpush1.bf16.msra.mxu0 0
        %1856 = vmatprep.subr.bf16.mxu0 0
        %1857 = vmatpush1.bf16.msra.mxu0 0
        %1858 = vmatprep.subr.bf16.mxu0 0
        %1859 = vmatpush1.bf16.msra.mxu0 0
        %1860 = vmatprep.subr.bf16.mxu0 0
        %1861 = vmatpush1.bf16.msra.mxu0 0
        %1862 = vmatprep.subr.bf16.mxu0 0
        %1863 = vmatpush1.bf16.msra.mxu0 0
        %1864 = vmatprep.subr.bf16.mxu0 0
        %1865 = vmatpush1.bf16.msra.mxu0 0
        %1866 = vmatprep.subr.bf16.mxu0 0
        %1867 = vmatpush1.bf16.msra.mxu0 0
        %1868 = vmatprep.mubr.bf16.mxu0 0
        %1869 = vmatmul.mubr.bf16.gmra.mrb[0].mxu0 %v1831
        %v1870 = vpop.f32.mrb[0].mxu0
        %v1871 = vadd.f32 0.0, %v1870
        %v1872 = vpop.f32.mrb[0].mxu0
        %v1873 = vpop.f32.mrb[0].mxu0
        %v1874 = vpop.f32.mrb[0].mxu0
        %1875 = vdwg.mxu0
        %1876 = vrot.lane.b32.xlu0 %v1656, 96
        %v1877 = vpop.permute.xlu0 %1876
        %1878 = vrot.lane.b32.xlu0 %v1656, 32
        %v1879 = vpop.permute.xlu0 %1878
        %v1881 = vsel %vm746, %v1877, 0
        %v1884 = vsel %vm746, %v1879, 0
        %1886 = vmatprep.subr.bf16.mxu0 0
        %1887 = vmatpush1.bf16.xpose.msra.mxu0 %v1884
        %1888 = vmatprep.subr.bf16.mxu0 0
        %1889 = vmatpush1.bf16.xpose.msra.mxu0 0
        %1890 = vmatprep.subr.bf16.mxu0 0
        %1891 = vmatpush1.bf16.xpose.msra.mxu0 0
        %1892 = vmatprep.subr.bf16.mxu0 0
        %1893 = vmatpush1.bf16.xpose.msra.mxu0 0
        %1894 = vmatprep.subr.bf16.mxu0 0
        %1895 = vmatpush1.bf16.xpose.msra.mxu0 0
        %1896 = vmatprep.subr.bf16.mxu0 0
        %1897 = vmatpush1.bf16.xpose.msra.mxu0 0
        %1898 = vmatprep.subr.bf16.mxu0 0
        %1899 = vmatpush1.bf16.xpose.msra.mxu0 0
        %1900 = vmatprep.subr.bf16.mxu0 0
        %1901 = vmatpush1.bf16.xpose.msra.mxu0 0
        %1902 = vmatprep.subr.bf16.mxu0 0
        %1903 = vmatpush1.bf16.xpose.msra.mxu0 0
        %1904 = vmatprep.subr.bf16.mxu0 0
        %1905 = vmatpush1.bf16.xpose.msra.mxu0 0
        %1906 = vmatprep.subr.bf16.mxu0 0
        %1907 = vmatpush1.bf16.xpose.msra.mxu0 0
        %1908 = vmatprep.subr.bf16.mxu0 0
        %1909 = vmatpush1.bf16.xpose.msra.mxu0 0
        %1910 = vmatprep.subr.bf16.mxu0 0
        %1911 = vmatpush1.bf16.xpose.msra.mxu0 0
        %1912 = vmatprep.subr.bf16.mxu0 0
        %1913 = vmatpush1.bf16.xpose.msra.mxu0 0
        %1914 = vmatprep.subr.bf16.mxu0 0
        %1915 = vmatpush1.bf16.xpose.msra.mxu0 0
        %1916 = vmatprep.subr.bf16.mxu0 0
        %1917 = vmatpush1.bf16.xpose.msra.mxu0 0
        %1918 = vmatprep.mubr.bf16.mxu0 0
        %1919 = vmatmul.mubr.bf16.gmra.mrb[0].mxu0 %v1881
        %v1920 = vpop.f32.mrb[0].mxu0
        %v1921 = vadd.f32 %v601, %v1920
        %v1922 = vpop.f32.mrb[0].mxu0
        %v1923 = vpop.f32.mrb[0].mxu0
        %v1924 = vpop.f32.mrb[0].mxu0
        %1925 = vdwg.mxu0
        %v1926 = vsel %vm793, %v1921, -inf
        %1927 = vmax.xlane.f32.xlu0 %v1926
        %v1928 = vpop.xlane.xlu0 %1927
        %v1929 = vsub.f32 %v1921, %v1928
        %v1930 = vmul.f32 %v1929, 1.442695
        %v1931 = vpow.pop %v1930
        %v1932 = vsel %vm793, %v1931, 0.0
        %1933 = vadd.xlane.f32.xlu0 %v1932
        %v1934 = vpop.xlane.xlu0 %1933
        %v1935 = vrcp.pop %v1934
        %v1936 = vmul.f32 %v1931, %v1935
        %v1937 = vpack.c.bf16 %v1936, %v1936
        %1938 = vrot.lane.b32.xlu0 %v1657, 96
        %v1939 = vpop.permute.xlu0 %1938
        %v1941 = vsel %vm793, %v1937, 0
        %v1944 = vsel %vm809, %v1939, 0
        %1946 = vmatprep.subr.bf16.mxu0 0
        %1947 = vmatpush1.bf16.msra.mxu0 %v1944
        %1948 = vmatprep.subr.bf16.mxu0 0
        %1949 = vmatpush1.bf16.msra.mxu0 0
        %1950 = vmatprep.subr.bf16.mxu0 0
        %1951 = vmatpush1.bf16.msra.mxu0 0
        %1952 = vmatprep.subr.bf16.mxu0 0
        %1953 = vmatpush1.bf16.msra.mxu0 0
        %1954 = vmatprep.subr.bf16.mxu0 0
        %1955 = vmatpush1.bf16.msra.mxu0 0
        %1956 = vmatprep.subr.bf16.mxu0 0
        %1957 = vmatpush1.bf16.msra.mxu0 0
        %1958 = vmatprep.subr.bf16.mxu0 0
        %1959 = vmatpush1.bf16.msra.mxu0 0
        %1960 = vmatprep.subr.bf16.mxu0 0
        %1961 = vmatpush1.bf16.msra.mxu0 0
        %1962 = vmatprep.subr.bf16.mxu0 0
        %1963 = vmatpush1.bf16.msra.mxu0 0
        %1964 = vmatprep.subr.bf16.mxu0 0
        %1965 = vmatpush1.bf16.msra.mxu0 0
        %1966 = vmatprep.subr.bf16.mxu0 0
        %1967 = vmatpush1.bf16.msra.mxu0 0
        %1968 = vmatprep.subr.bf16.mxu0 0
        %1969 = vmatpush1.bf16.msra.mxu0 0
        %1970 = vmatprep.subr.bf16.mxu0 0
        %1971 = vmatpush1.bf16.msra.mxu0 0
        %1972 = vmatprep.subr.bf16.mxu0 0
        %1973 = vmatpush1.bf16.msra.mxu0 0
        %1974 = vmatprep.subr.bf16.mxu0 0
        %1975 = vmatpush1.bf16.msra.mxu0 0
        %1976 = vmatprep.subr.bf16.mxu0 0
        %1977 = vmatpush1.bf16.msra.mxu0 0
        %1978 = vmatprep.mubr.bf16.mxu0 0
        %1979 = vmatmul.mubr.bf16.gmra.mrb[0].mxu0 %v1941
        %v1980 = vpop.f32.mrb[0].mxu0
        %v1981 = vadd.f32 0.0, %v1980
        %v1982 = vpop.f32.mrb[0].mxu0
        %v1983 = vpop.f32.mrb[0].mxu0
        %v1984 = vpop.f32.mrb[0].mxu0
        %1985 = vdwg.mxu0
        %1986 = vrot.lane.b32.xlu0 %v1656, 80
        %v1987 = vpop.permute.xlu0 %1986
        %1988 = vrot.lane.b32.xlu0 %v1656, 16
        %v1989 = vpop.permute.xlu0 %1988
        %v1991 = vsel %vm746, %v1987, 0
        %v1994 = vsel %vm746, %v1989, 0
        %1996 = vmatprep.subr.bf16.mxu0 0
        %1997 = vmatpush1.bf16.xpose.msra.mxu0 %v1994
        %1998 = vmatprep.subr.bf16.mxu0 0
        %1999 = vmatpush1.bf16.xpose.msra.mxu0 0
        %2000 = vmatprep.subr.bf16.mxu0 0
        %2001 = vmatpush1.bf16.xpose.msra.mxu0 0
        %2002 = vmatprep.subr.bf16.mxu0 0
        %2003 = vmatpush1.bf16.xpose.msra.mxu0 0
        %2004 = vmatprep.subr.bf16.mxu0 0
        %2005 = vmatpush1.bf16.xpose.msra.mxu0 0
        %2006 = vmatprep.subr.bf16.mxu0 0
        %2007 = vmatpush1.bf16.xpose.msra.mxu0 0
        %2008 = vmatprep.subr.bf16.mxu0 0
        %2009 = vmatpush1.bf16.xpose.msra.mxu0 0
        %2010 = vmatprep.subr.bf16.mxu0 0
        %2011 = vmatpush1.bf16.xpose.msra.mxu0 0
        %2012 = vmatprep.subr.bf16.mxu0 0
        %2013 = vmatpush1.bf16.xpose.msra.mxu0 0
        %2014 = vmatprep.subr.bf16.mxu0 0
        %2015 = vmatpush1.bf16.xpose.msra.mxu0 0
        %2016 = vmatprep.subr.bf16.mxu0 0
        %2017 = vmatpush1.bf16.xpose.msra.mxu0 0
        %2018 = vmatprep.subr.bf16.mxu0 0
        %2019 = vmatpush1.bf16.xpose.msra.mxu0 0
        %2020 = vmatprep.subr.bf16.mxu0 0
        %2021 = vmatpush1.bf16.xpose.msra.mxu0 0
        %2022 = vmatprep.subr.bf16.mxu0 0
        %2023 = vmatpush1.bf16.xpose.msra.mxu0 0
        %2024 = vmatprep.subr.bf16.mxu0 0
        %2025 = vmatpush1.bf16.xpose.msra.mxu0 0
        %2026 = vmatprep.subr.bf16.mxu0 0
        %2027 = vmatpush1.bf16.xpose.msra.mxu0 0
        %2028 = vmatprep.mubr.bf16.mxu0 0
        %2029 = vmatmul.mubr.bf16.gmra.mrb[0].mxu0 %v1991
        %v2030 = vpop.f32.mrb[0].mxu0
        %v2031 = vadd.f32 %v601, %v2030
        %v2032 = vpop.f32.mrb[0].mxu0
        %v2033 = vpop.f32.mrb[0].mxu0
        %v2034 = vpop.f32.mrb[0].mxu0
        %2035 = vdwg.mxu0
        %v2036 = vsel %vm793, %v2031, -inf
        %2037 = vmax.xlane.f32.xlu0 %v2036
        %v2038 = vpop.xlane.xlu0 %2037
        %v2039 = vsub.f32 %v2031, %v2038
        %v2040 = vmul.f32 %v2039, 1.442695
        %v2041 = vpow.pop %v2040
        %v2042 = vsel %vm793, %v2041, 0.0
        %2043 = vadd.xlane.f32.xlu0 %v2042
        %v2044 = vpop.xlane.xlu0 %2043
        %v2045 = vrcp.pop %v2044
        %v2046 = vmul.f32 %v2041, %v2045
        %v2047 = vpack.c.bf16 %v2046, %v2046
        %2048 = vrot.lane.b32.xlu0 %v1657, 80
        %v2049 = vpop.permute.xlu0 %2048
        %v2051 = vsel %vm793, %v2047, 0
        %v2054 = vsel %vm809, %v2049, 0
        %2056 = vmatprep.subr.bf16.mxu0 0
        %2057 = vmatpush1.bf16.msra.mxu0 %v2054
        %2058 = vmatprep.subr.bf16.mxu0 0
        %2059 = vmatpush1.bf16.msra.mxu0 0
        %2060 = vmatprep.subr.bf16.mxu0 0
        %2061 = vmatpush1.bf16.msra.mxu0 0
        %2062 = vmatprep.subr.bf16.mxu0 0
        %2063 = vmatpush1.bf16.msra.mxu0 0
        %2064 = vmatprep.subr.bf16.mxu0 0
        %2065 = vmatpush1.bf16.msra.mxu0 0
        %2066 = vmatprep.subr.bf16.mxu0 0
        %2067 = vmatpush1.bf16.msra.mxu0 0
        %2068 = vmatprep.subr.bf16.mxu0 0
        %2069 = vmatpush1.bf16.msra.mxu0 0
        %2070 = vmatprep.subr.bf16.mxu0 0
        %2071 = vmatpush1.bf16.msra.mxu0 0
        %2072 = vmatprep.subr.bf16.mxu0 0
        %2073 = vmatpush1.bf16.msra.mxu0 0
        %2074 = vmatprep.subr.bf16.mxu0 0
        %2075 = vmatpush1.bf16.msra.mxu0 0
        %2076 = vmatprep.subr.bf16.mxu0 0
        %2077 = vmatpush1.bf16.msra.mxu0 0
        %2078 = vmatprep.subr.bf16.mxu0 0
        %2079 = vmatpush1.bf16.msra.mxu0 0
        %2080 = vmatprep.subr.bf16.mxu0 0
        %2081 = vmatpush1.bf16.msra.mxu0 0
        %2082 = vmatprep.subr.bf16.mxu0 0
        %2083 = vmatpush1.bf16.msra.mxu0 0
        %2084 = vmatprep.subr.bf16.mxu0 0
        %2085 = vmatpush1.bf16.msra.mxu0 0
        %2086 = vmatprep.subr.bf16.mxu0 0
        %2087 = vmatpush1.bf16.msra.mxu0 0
        %2088 = vmatprep.mubr.bf16.mxu0 0
        %2089 = vmatmul.mubr.bf16.gmra.mrb[0].mxu0 %v2051
        %v2090 = vpop.f32.mrb[0].mxu0
        %v2091 = vadd.f32 0.0, %v2090
        %v2092 = vpop.f32.mrb[0].mxu0
        %v2093 = vpop.f32.mrb[0].mxu0
        %v2094 = vpop.f32.mrb[0].mxu0
        %2095 = vdwg.mxu0
        %2097 = vrot.lane.b32.xlu0 %v1871, 16
        %v2098 = vpop.permute.xlu0 %2097
        %2101 = vrot.lane.b32.xlu0 %v1981, 32
        %v2102 = vpop.permute.xlu0 %2101
        %2105 = vrot.lane.b32.xlu0 %v2091, 48
        %v2106 = vpop.permute.xlu0 %2105
        %v2108 = vsel %vm746, %v1760, %v2098
        %v2109 = vsel %vm1197, %v2108, %v2102
        %v2110 = vsel %vm1199, %v2109, %v2106
        %v2111 = vpack.c.bf16 %v2110, %v2110
        %s2112 = scalar_lea.vmem %s3, 32
        %v2113 = vld [vmem:[%s2112] sm:$0xf]
        %v2114 = vld [vmem:[%s2112 + $0x4] sm:$0xf]
        %v2115 = vld [vmem:[%s2112 + $0x8] sm:$0xf]
        %v2116 = vld [vmem:[%s2112 + $0xc] sm:$0xf]
        %v2117 = vld [vmem:[%s2112 + $0x10] sm:$0xf]
        %v2118 = vld [vmem:[%s2112 + $0x14] sm:$0xf]
        %v2119 = vld [vmem:[%s2112 + $0x18] sm:$0xf]
        %v2120 = vld [vmem:[%s2112 + $0x1c] sm:$0xf]
        %v2129 = vunpack.c.l.b16 %v2113
        %v2130 = vunpack.c.l.b16 %v2114
        %v2131 = vunpack.c.l.b16 %v2115
        %v2132 = vunpack.c.l.b16 %v2116
        %v2133 = vunpack.c.l.b16 %v2117
        %v2134 = vunpack.c.l.b16 %v2118
        %v2135 = vunpack.c.l.b16 %v2119
        %v2136 = vunpack.c.l.b16 %v2120
        %v2137 = vpack.c.b16 %v2130, %v2129
        %v2138 = vpack.c.b16 %v2132, %v2131
        %v2139 = vpack.c.b16 %v2134, %v2133
        %v2140 = vpack.c.b16 %v2136, %v2135
        %v2146 = vsel %vm604, %v2111, 0
        %2148 = vmatprep.subr.bf16.mxu0 0
        %2149 = vmatpush1.bf16.msra.mxu0 %v2137
        %2150 = vmatprep.subr.bf16.mxu0 0
        %2151 = vmatpush1.bf16.msra.mxu0 %v2138
        %2152 = vmatprep.subr.bf16.mxu0 0
        %2153 = vmatpush1.bf16.msra.mxu0 %v2139
        %2154 = vmatprep.subr.bf16.mxu0 0
        %2155 = vmatpush1.bf16.msra.mxu0 %v2140
        %2156 = vmatprep.subr.bf16.mxu0 0
        %2157 = vmatpush1.bf16.msra.mxu0 0
        %2158 = vmatprep.subr.bf16.mxu0 0
        %2159 = vmatpush1.bf16.msra.mxu0 0
        %2160 = vmatprep.subr.bf16.mxu0 0
        %2161 = vmatpush1.bf16.msra.mxu0 0
        %2162 = vmatprep.subr.bf16.mxu0 0
        %2163 = vmatpush1.bf16.msra.mxu0 0
        %2164 = vmatprep.subr.bf16.mxu0 0
        %2165 = vmatpush1.bf16.msra.mxu0 0
        %2166 = vmatprep.subr.bf16.mxu0 0
        %2167 = vmatpush1.bf16.msra.mxu0 0
        %2168 = vmatprep.subr.bf16.mxu0 0
        %2169 = vmatpush1.bf16.msra.mxu0 0
        %2170 = vmatprep.subr.bf16.mxu0 0
        %2171 = vmatpush1.bf16.msra.mxu0 0
        %2172 = vmatprep.subr.bf16.mxu0 0
        %2173 = vmatpush1.bf16.msra.mxu0 0
        %2174 = vmatprep.subr.bf16.mxu0 0
        %2175 = vmatpush1.bf16.msra.mxu0 0
        %2176 = vmatprep.subr.bf16.mxu0 0
        %2177 = vmatpush1.bf16.msra.mxu0 0
        %2178 = vmatprep.subr.bf16.mxu0 0
        %2179 = vmatpush1.bf16.msra.mxu0 0
        %2180 = vmatprep.mubr.bf16.mxu0 0
        %2181 = vmatmul.mubr.bf16.gmra.mrb[0].mxu0 %v2146
        %v2182 = vpop.f32.mrb[0].mxu0
        %v2183 = vadd.f32 0.0, %v2182
        %v2184 = vpop.f32.mrb[0].mxu0
        %v2185 = vpop.f32.mrb[0].mxu0
        %v2186 = vpop.f32.mrb[0].mxu0
        %2187 = vdwg.mxu0
        %v2188 = vadd.f32 %v1514, %v2183
        %s2189 = scalar_lea.vmem %s4, 1
        %v2190 = vld [vmem:[%s2189] sm:$0x1]
        %v2192 = vlaneseq
        %v2193 = vshrl.u32 %v2192, 7
        %v2194 = vsub.s32 0, %v2193
        %v2195 = vrot.slane %v2190, %v2194
        %v2197 = vadd.f32 %v2188, %v2195
        %s2198 = scalar_lea.vmem %s7, 1
        %v2199 = vld [vmem:[%s2198] sm:$0x1]
        %s2200 = scalar_lea.vmem %s8, 1
        %v2201 = vld [vmem:[%s2200] sm:$0x1]
        %v2202 = vsel %vm604, %v2197, 0.0
        %2203 = vadd.xlane.f32.xlu0 %v2202
        %v2204 = vpop.xlane.xlu0 %2203
        %v2205 = vmul.f32 %v2204, %v608
        %v2206 = vmul.f32 %v2197, %v2197
        %v2207 = vsel %vm604, %v2206, 0.0
        %2208 = vadd.xlane.f32.xlu0 %v2207
        %v2209 = vpop.xlane.xlu0 %2208
        %v2210 = vmul.f32 %v2209, %v608
        %v2211 = vmul.f32 %v2205, %v2205
        %v2212 = vsub.f32 %v2210, %v2211
        %v2213 = vmax.f32 %v2212, 0.0
        %v2214 = vsub.f32 %v2197, %v2205
        %v2215 = vadd.f32 %v2213, 1e-05
        %v2216 = vrsqrt.pop %v2215
        %v2217 = vmul.f32 %v2214, %v2216
        %v2219 = vlaneseq
        %v2220 = vshrl.u32 %v2219, 7
        %v2221 = vsub.s32 0, %v2220
        %v2222 = vrot.slane %v2199, %v2221
        %v2224 = vmul.f32 %v2217, %v2222
        %v2226 = vlaneseq
        %v2227 = vshrl.u32 %v2226, 7
        %v2228 = vsub.s32 0, %v2227
        %v2229 = vrot.slane %v2201, %v2228
        %v2231 = vadd.f32 %v2224, %v2229
        %v2232 = vpack.c.bf16 %v2231, %v2231
        %s2233 = scalar_lea.vmem [#allocation5], 32
        %v2234 = vld [vmem:[%s2233] sm:$0xf]
        %v2235 = vld [vmem:[%s2233 + $0x4] sm:$0xf]
        %v2236 = vld [vmem:[%s2233 + $0x8] sm:$0xf]
        %v2237 = vld [vmem:[%s2233 + $0xc] sm:$0xf]
        %v2238 = vld [vmem:[%s2233 + $0x10] sm:$0xf]
        %v2239 = vld [vmem:[%s2233 + $0x14] sm:$0xf]
        %v2240 = vld [vmem:[%s2233 + $0x18] sm:$0xf]
        %v2241 = vld [vmem:[%s2233 + $0x1c] sm:$0xf]
        %s2242 = scalar_lea.vmem %s10, 1
        %v2243 = vld [vmem:[%s2242] sm:$0x1]
        %v2245 = vlaneseq
        %v2246 = vshrl.u32 %v2245, 7
        %v2247 = vsub.s32 0, %v2246
        %v2248 = vrot.slane %v2243, %v2247
        %v2258 = vunpack.c.l.b16 %v2234
        %v2259 = vunpack.c.l.b16 %v2235
        %v2260 = vunpack.c.l.b16 %v2236
        %v2261 = vunpack.c.l.b16 %v2237
        %v2262 = vunpack.c.l.b16 %v2238
        %v2263 = vunpack.c.l.b16 %v2239
        %v2264 = vunpack.c.l.b16 %v2240
        %v2265 = vunpack.c.l.b16 %v2241
        %v2266 = vpack.c.b16 %v2259, %v2258
        %v2267 = vpack.c.b16 %v2261, %v2260
        %v2268 = vpack.c.b16 %v2263, %v2262
        %v2269 = vpack.c.b16 %v2265, %v2264
        %v2275 = vsel %vm604, %v2232, 0
        %2277 = vmatprep.subr.bf16.mxu0 0
        %2278 = vmatpush1.bf16.msra.mxu0 %v2266
        %2279 = vmatprep.subr.bf16.mxu0 0
        %2280 = vmatpush1.bf16.msra.mxu0 %v2267
        %2281 = vmatprep.subr.bf16.mxu0 0
        %2282 = vmatpush1.bf16.msra.mxu0 %v2268
        %2283 = vmatprep.subr.bf16.mxu0 0
        %2284 = vmatpush1.bf16.msra.mxu0 %v2269
        %2285 = vmatprep.subr.bf16.mxu0 0
        %2286 = vmatpush1.bf16.msra.mxu0 0
        %2287 = vmatprep.subr.bf16.mxu0 0
        %2288 = vmatpush1.bf16.msra.mxu0 0
        %2289 = vmatprep.subr.bf16.mxu0 0
        %2290 = vmatpush1.bf16.msra.mxu0 0
        %2291 = vmatprep.subr.bf16.mxu0 0
        %2292 = vmatpush1.bf16.msra.mxu0 0
        %2293 = vmatprep.subr.bf16.mxu0 0
        %2294 = vmatpush1.bf16.msra.mxu0 0
        %2295 = vmatprep.subr.bf16.mxu0 0
        %2296 = vmatpush1.bf16.msra.mxu0 0
        %2297 = vmatprep.subr.bf16.mxu0 0
        %2298 = vmatpush1.bf16.msra.mxu0 0
        %2299 = vmatprep.subr.bf16.mxu0 0
        %2300 = vmatpush1.bf16.msra.mxu0 0
        %2301 = vmatprep.subr.bf16.mxu0 0
        %2302 = vmatpush1.bf16.msra.mxu0 0
        %2303 = vmatprep.subr.bf16.mxu0 0
        %2304 = vmatpush1.bf16.msra.mxu0 0
        %2305 = vmatprep.subr.bf16.mxu0 0
        %2306 = vmatpush1.bf16.msra.mxu0 0
        %2307 = vmatprep.subr.bf16.mxu0 0
        %2308 = vmatpush1.bf16.msra.mxu0 0
        %2309 = vmatprep.mubr.bf16.mxu0 0
        %2310 = vmatmul.mubr.bf16.gmra.mrb[0].mxu0 %v2275
        %v2311 = vpop.f32.mrb[0].mxu0
        %v2312 = vadd.f32 %v2248, %v2311
        %v2313 = vpop.f32.mrb[0].mxu0
        %v2314 = vpop.f32.mrb[0].mxu0
        %v2315 = vpop.f32.mrb[0].mxu0
        %2316 = vdwg.mxu0
        %v2317 = vmax.f32 %v2312, 0.0
        %v2318 = vpack.c.bf16 %v2317, %v2317
        %s2319 = scalar_lea.vmem %s11, 64
        %v2320 = vld [vmem:[%s2319] sm:$0xf]
        %v2321 = vld [vmem:[%s2319 + $0x4] sm:$0xf]
        %v2322 = vld [vmem:[%s2319 + $0x8] sm:$0xf]
        %v2323 = vld [vmem:[%s2319 + $0xc] sm:$0xf]
        %v2324 = vld [vmem:[%s2319 + $0x10] sm:$0xf]
        %v2325 = vld [vmem:[%s2319 + $0x14] sm:$0xf]
        %v2326 = vld [vmem:[%s2319 + $0x18] sm:$0xf]
        %v2327 = vld [vmem:[%s2319 + $0x1c] sm:$0xf]
        %v2328 = vld [vmem:[%s2319 + $0x20] sm:$0xf]
        %v2329 = vld [vmem:[%s2319 + $0x24] sm:$0xf]
        %v2330 = vld [vmem:[%s2319 + $0x28] sm:$0xf]
        %v2331 = vld [vmem:[%s2319 + $0x2c] sm:$0xf]
        %v2332 = vld [vmem:[%s2319 + $0x30] sm:$0xf]
        %v2333 = vld [vmem:[%s2319 + $0x34] sm:$0xf]
        %v2334 = vld [vmem:[%s2319 + $0x38] sm:$0xf]
        %v2335 = vld [vmem:[%s2319 + $0x3c] sm:$0xf]
        %s2336 = scalar_lea.vmem %s12, 1
        %v2337 = vld [vmem:[%s2336] sm:$0x1]
        %v2339 = vlaneseq
        %v2340 = vshrl.u32 %v2339, 7
        %v2341 = vsub.s32 0, %v2340
        %v2342 = vrot.slane %v2337, %v2341
        %v2360 = vunpack.c.l.b16 %v2320
        %v2361 = vunpack.c.l.b16 %v2321
        %v2362 = vunpack.c.l.b16 %v2322
        %v2363 = vunpack.c.l.b16 %v2323
        %v2364 = vunpack.c.l.b16 %v2324
        %v2365 = vunpack.c.l.b16 %v2325
        %v2366 = vunpack.c.l.b16 %v2326
        %v2367 = vunpack.c.l.b16 %v2327
        %v2368 = vunpack.c.l.b16 %v2328
        %v2369 = vunpack.c.l.b16 %v2329
        %v2370 = vunpack.c.l.b16 %v2330
        %v2371 = vunpack.c.l.b16 %v2331
        %v2372 = vunpack.c.l.b16 %v2332
        %v2373 = vunpack.c.l.b16 %v2333
        %v2374 = vunpack.c.l.b16 %v2334
        %v2375 = vunpack.c.l.b16 %v2335
        %v2376 = vpack.c.b16 %v2361, %v2360
        %v2377 = vpack.c.b16 %v2363, %v2362
        %v2378 = vpack.c.b16 %v2365, %v2364
        %v2379 = vpack.c.b16 %v2367, %v2366
        %v2380 = vpack.c.b16 %v2369, %v2368
        %v2381 = vpack.c.b16 %v2371, %v2370
        %v2382 = vpack.c.b16 %v2373, %v2372
        %v2383 = vpack.c.b16 %v2375, %v2374
        %2392 = vmatprep.subr.bf16.mxu0 0
        %2393 = vmatpush1.bf16.msra.mxu0 %v2376
        %2394 = vmatprep.subr.bf16.mxu0 0
        %2395 = vmatpush1.bf16.msra.mxu0 %v2377
        %2396 = vmatprep.subr.bf16.mxu0 0
        %2397 = vmatpush1.bf16.msra.mxu0 %v2378
        %2398 = vmatprep.subr.bf16.mxu0 0
        %2399 = vmatpush1.bf16.msra.mxu0 %v2379
        %2400 = vmatprep.subr.bf16.mxu0 0
        %2401 = vmatpush1.bf16.msra.mxu0 %v2380
        %2402 = vmatprep.subr.bf16.mxu0 0
        %2403 = vmatpush1.bf16.msra.mxu0 %v2381
        %2404 = vmatprep.subr.bf16.mxu0 0
        %2405 = vmatpush1.bf16.msra.mxu0 %v2382
        %2406 = vmatprep.subr.bf16.mxu0 0
        %2407 = vmatpush1.bf16.msra.mxu0 %v2383
        %2408 = vmatprep.subr.bf16.mxu0 0
        %2409 = vmatpush1.bf16.msra.mxu0 0
        %2410 = vmatprep.subr.bf16.mxu0 0
        %2411 = vmatpush1.bf16.msra.mxu0 0
        %2412 = vmatprep.subr.bf16.mxu0 0
        %2413 = vmatpush1.bf16.msra.mxu0 0
        %2414 = vmatprep.subr.bf16.mxu0 0
        %2415 = vmatpush1.bf16.msra.mxu0 0
        %2416 = vmatprep.subr.bf16.mxu0 0
        %2417 = vmatpush1.bf16.msra.mxu0 0
        %2418 = vmatprep.subr.bf16.mxu0 0
        %2419 = vmatpush1.bf16.msra.mxu0 0
        %2420 = vmatprep.subr.bf16.mxu0 0
        %2421 = vmatpush1.bf16.msra.mxu0 0
        %2422 = vmatprep.subr.bf16.mxu0 0
        %2423 = vmatpush1.bf16.msra.mxu0 0
        %2424 = vmatprep.mubr.bf16.mxu0 0
        %2425 = vmatmul.mubr.bf16.gmra.mrb[0].mxu0 %v2318
        %v2426 = vpop.f32.mrb[0].mxu0
        %v2427 = vadd.f32 %v2342, %v2426
        %v2428 = vpop.f32.mrb[0].mxu0
        %v2429 = vpop.f32.mrb[0].mxu0
        %v2430 = vpop.f32.mrb[0].mxu0
        %2431 = vdwg.mxu0
        %v2432 = vadd.f32 %v2197, %v2427
        %v2433 = vld [vmem:[%s13] sm:$0x1]
        %v2434 = vld [vmem:[%s14] sm:$0x1]
        %v2435 = vsel %vm604, %v2432, 0.0
        %2436 = vadd.xlane.f32.xlu0 %v2435
        %v2437 = vpop.xlane.xlu0 %2436
        %v2438 = vmul.f32 %v2437, %v608
        %v2439 = vmul.f32 %v2432, %v2432
        %v2440 = vsel %vm604, %v2439, 0.0
        %2441 = vadd.xlane.f32.xlu0 %v2440
        %v2442 = vpop.xlane.xlu0 %2441
        %v2443 = vmul.f32 %v2442, %v608
        %v2444 = vmul.f32 %v2438, %v2438
        %v2445 = vsub.f32 %v2443, %v2444
        %v2446 = vmax.f32 %v2445, 0.0
        %v2447 = vsub.f32 %v2432, %v2438
        %v2448 = vadd.f32 %v2446, 1e-05
        %v2449 = vrsqrt.pop %v2448
        %v2450 = vmul.f32 %v2447, %v2449
        %v2452 = vlaneseq
        %v2453 = vshrl.u32 %v2452, 7
        %v2454 = vsub.s32 0, %v2453
        %v2455 = vrot.slane %v2433, %v2454
        %v2457 = vmul.f32 %v2450, %v2455
        %v2459 = vlaneseq
        %v2460 = vshrl.u32 %v2459, 7
        %v2461 = vsub.s32 0, %v2460
        %v2462 = vrot.slane %v2434, %v2461
        %v2464 = vadd.f32 %v2457, %v2462
        %v2465 = vpack.c.bf16 %v2464, %v2464
        %v2466 = vld [vmem:[#allocation7] sm:$0xff]
        %v2467 = vld [vmem:[#allocation7 + $0x8] sm:$0xff]
        %v2468 = vld [vmem:[#allocation7 + $0x10] sm:$0xff]
        %v2469 = vld [vmem:[#allocation7 + $0x18] sm:$0xff]
        %v2470 = vld [vmem:[#allocation7 + $0x20] sm:$0xff]
        %v2471 = vld [vmem:[#allocation7 + $0x28] sm:$0xff]
        %v2472 = vld [vmem:[#allocation7 + $0x30] sm:$0xff]
        %v2473 = vld [vmem:[#allocation7 + $0x38] sm:$0xff]
        %v2474 = vld [vmem:[#allocation7 + $0x40] sm:$0xff]
        %v2475 = vld [vmem:[#allocation7 + $0x48] sm:$0xff]
        %v2476 = vld [vmem:[#allocation7 + $0x50] sm:$0xff]
        %v2477 = vld [vmem:[#allocation7 + $0x58] sm:$0xff]
        %v2478 = vld [vmem:[#allocation7 + $0x60] sm:$0xff]
        %v2479 = vld [vmem:[#allocation7 + $0x68] sm:$0xff]
        %v2480 = vld [vmem:[#allocation7 + $0x70] sm:$0xff]
        %v2481 = vld [vmem:[#allocation7 + $0x78] sm:$0xff]
        %v2482 = vld [vmem:[%s16] sm:$0xf]
        %v2484 = vlaneseq
        %v2485 = vshrl.u32 %v2484, 7
        %v2486 = vsub.s32 0, %v2485
        %v2487 = vrot.slane %v2482, %v2486
        %v2488 = vlaneseq
        %v2489 = vshrl.u32 %v2488, 7
        %v2490 = vsub.s32 1, %v2489
        %v2491 = vrot.slane %v2482, %v2490
        %v2492 = vlaneseq
        %v2493 = vshrl.u32 %v2492, 7
        %v2494 = vsub.s32 2, %v2493
        %v2495 = vrot.slane %v2482, %v2494
        %v2496 = vlaneseq
        %v2497 = vshrl.u32 %v2496, 7
        %v2498 = vsub.s32 3, %v2497
        %v2499 = vrot.slane %v2482, %v2498
        %v2520 = vunpack.c.l.b16 %v2466
        %v2521 = vunpack.c.h.b16 %v2466
        %v2522 = vunpack.c.l.b16 %v2467
        %v2523 = vunpack.c.h.b16 %v2467
        %v2524 = vunpack.c.l.b16 %v2468
        %v2525 = vunpack.c.h.b16 %v2468
        %v2526 = vunpack.c.l.b16 %v2469
        %v2527 = vunpack.c.h.b16 %v2469
        %v2528 = vunpack.c.l.b16 %v2470
        %v2529 = vunpack.c.h.b16 %v2470
        %v2530 = vunpack.c.l.b16 %v2471
        %v2531 = vunpack.c.h.b16 %v2471
        %v2532 = vunpack.c.l.b16 %v2472
        %v2533 = vunpack.c.h.b16 %v2472
        %v2534 = vunpack.c.l.b16 %v2473
        %v2535 = vunpack.c.h.b16 %v2473
        %v2536 = vunpack.c.l.b16 %v2474
        %v2537 = vunpack.c.h.b16 %v2474
        %v2538 = vunpack.c.l.b16 %v2475
        %v2539 = vunpack.c.h.b16 %v2475
        %v2540 = vunpack.c.l.b16 %v2476
        %v2541 = vunpack.c.h.b16 %v2476
        %v2542 = vunpack.c.l.b16 %v2477
        %v2543 = vunpack.c.h.b16 %v2477
        %v2544 = vunpack.c.l.b16 %v2478
        %v2545 = vunpack.c.h.b16 %v2478
        %v2546 = vunpack.c.l.b16 %v2479
        %v2547 = vunpack.c.h.b16 %v2479
        %v2548 = vunpack.c.l.b16 %v2480
        %v2549 = vunpack.c.h.b16 %v2480
        %v2550 = vunpack.c.l.b16 %v2481
        %v2551 = vunpack.c.h.b16 %v2481
        %v2552 = vpack.c.b16 %v2524, %v2520
        %v2553 = vpack.c.b16 %v2525, %v2521
        %v2554 = vpack.c.b16 %v2526, %v2522
        %v2555 = vpack.c.b16 %v2527, %v2523
        %v2556 = vpack.c.b16 %v2532, %v2528
        %v2557 = vpack.c.b16 %v2533, %v2529
        %v2558 = vpack.c.b16 %v2534, %v2530
        %v2559 = vpack.c.b16 %v2535, %v2531
        %v2560 = vpack.c.b16 %v2540, %v2536
        %v2561 = vpack.c.b16 %v2541, %v2537
        %v2562 = vpack.c.b16 %v2542, %v2538
        %v2563 = vpack.c.b16 %v2543, %v2539
        %v2564 = vpack.c.b16 %v2548, %v2544
        %v2565 = vpack.c.b16 %v2549, %v2545
        %v2566 = vpack.c.b16 %v2550, %v2546
        %v2567 = vpack.c.b16 %v2551, %v2547
        %v2585 = vsel %vm604, %v2465, 0
        %2587 = vmatprep.subr.bf16.mxu0 %v2553
        %2588 = vmatpush1.bf16.msra.mxu0 %v2552
        %2589 = vmatprep.subr.bf16.mxu0 %v2557
        %2590 = vmatpush1.bf16.msra.mxu0 %v2556
        %2591 = vmatprep.subr.bf16.mxu0 %v2561
        %2592 = vmatpush1.bf16.msra.mxu0 %v2560
        %2593 = vmatprep.subr.bf16.mxu0 %v2565
        %2594 = vmatpush1.bf16.msra.mxu0 %v2564
        %2595 = vmatprep.subr.bf16.mxu0 0
        %2596 = vmatpush1.bf16.msra.mxu0 0
        %2597 = vmatprep.subr.bf16.mxu0 0
        %2598 = vmatpush1.bf16.msra.mxu0 0
        %2599 = vmatprep.subr.bf16.mxu0 0
        %2600 = vmatpush1.bf16.msra.mxu0 0
        %2601 = vmatprep.subr.bf16.mxu0 0
        %2602 = vmatpush1.bf16.msra.mxu0 0
        %2603 = vmatprep.subr.bf16.mxu0 0
        %2604 = vmatpush1.bf16.msra.mxu0 0
        %2605 = vmatprep.subr.bf16.mxu0 0
        %2606 = vmatpush1.bf16.msra.mxu0 0
        %2607 = vmatprep.subr.bf16.mxu0 0
        %2608 = vmatpush1.bf16.msra.mxu0 0
        %2609 = vmatprep.subr.bf16.mxu0 0
        %2610 = vmatpush1.bf16.msra.mxu0 0
        %2611 = vmatprep.subr.bf16.mxu0 0
        %2612 = vmatpush1.bf16.msra.mxu0 0
        %2613 = vmatprep.subr.bf16.mxu0 0
        %2614 = vmatpush1.bf16.msra.mxu0 0
        %2615 = vmatprep.subr.bf16.mxu0 0
        %2616 = vmatpush1.bf16.msra.mxu0 0
        %2617 = vmatprep.subr.bf16.mxu0 0
        %2618 = vmatpush1.bf16.msra.mxu0 0
        %2619 = vmatprep.mubr.bf16.mxu0 0
        %2620 = vmatmul.mubr.bf16.gmra.mrb[0].mxu0 %v2585
        %v2621 = vpop.f32.mrb[0].mxu0
        %v2622 = vadd.f32 %v2487, %v2621
        %v2623 = vpop.f32.mrb[0].mxu0
        %v2624 = vadd.f32 %v2491, %v2623
        %v2625 = vpop.f32.mrb[0].mxu0
        %v2626 = vpop.f32.mrb[0].mxu0
        %2627 = vdwg.mxu0
        %2628 = vmatprep.subr.bf16.mxu0 %v2555
        %2629 = vmatpush1.bf16.msra.mxu0 %v2554
        %2630 = vmatprep.subr.bf16.mxu0 %v2559
        %2631 = vmatpush1.bf16.msra.mxu0 %v2558
        %2632 = vmatprep.subr.bf16.mxu0 %v2563
        %2633 = vmatpush1.bf16.msra.mxu0 %v2562
        %2634 = vmatprep.subr.bf16.mxu0 %v2567
        %2635 = vmatpush1.bf16.msra.mxu0 %v2566
        %2636 = vmatprep.subr.bf16.mxu0 0
        %2637 = vmatpush1.bf16.msra.mxu0 0
        %2638 = vmatprep.subr.bf16.mxu0 0
        %2639 = vmatpush1.bf16.msra.mxu0 0
        %2640 = vmatprep.subr.bf16.mxu0 0
        %2641 = vmatpush1.bf16.msra.mxu0 0
        %2642 = vmatprep.subr.bf16.mxu0 0
        %2643 = vmatpush1.bf16.msra.mxu0 0
        %2644 = vmatprep.subr.bf16.mxu0 0
        %2645 = vmatpush1.bf16.msra.mxu0 0
        %2646 = vmatprep.subr.bf16.mxu0 0
        %2647 = vmatpush1.bf16.msra.mxu0 0
        %2648 = vmatprep.subr.bf16.mxu0 0
        %2649 = vmatpush1.bf16.msra.mxu0 0
        %2650 = vmatprep.subr.bf16.mxu0 0
        %2651 = vmatpush1.bf16.msra.mxu0 0
        %2652 = vmatprep.subr.bf16.mxu0 0
        %2653 = vmatpush1.bf16.msra.mxu0 0
        %2654 = vmatprep.subr.bf16.mxu0 0
        %2655 = vmatpush1.bf16.msra.mxu0 0
        %2656 = vmatprep.subr.bf16.mxu0 0
        %2657 = vmatpush1.bf16.msra.mxu0 0
        %2658 = vmatprep.subr.bf16.mxu0 0
        %2659 = vmatpush1.bf16.msra.mxu0 0
        %2660 = vmatprep.mubr.bf16.mxu0 0
        %2661 = vmatmul.mubr.bf16.gmra.mrb[0].mxu0 %v2585
        %v2662 = vpop.f32.mrb[0].mxu0
        %v2663 = vadd.f32 %v2495, %v2662
        %v2664 = vpop.f32.mrb[0].mxu0
        %v2665 = vadd.f32 %v2499, %v2664
        %v2666 = vpop.f32.mrb[0].mxu0
        %v2667 = vpop.f32.mrb[0].mxu0
        %2668 = vdwg.mxu0
        %2669 = vst [vmem:[%s592] sm:$0xff] %v2622
        %2670 = vst [vmem:[%s592 + $0x8] sm:$0xff] %v2624
        %2671 = vst [vmem:[%s592 + $0x10] sm:$0xff] %v2663
        %2672 = vst [vmem:[%s592 + $0x18] sm:$0xff] %v2665
        %s2673 = sand.u32 %s405, 1
        %s2674 = scalar_lea.sflag [#allocation4], %s2673
        %s2675 = sand.u32 %s405, 1
        %s2676 = smul.addr %s2675, 32
        %s2677 = scalar_lea.vmem [#allocation8], %s2676
        // Predicated region
        $region101: #{tpu_custom_call.1} parent=87 // pred_check
          %p2678 = pneg %p415
        $region102: #{tpu_custom_call.1} parent=87 // pred_check_branch
          %2680 = sbr.rel (%p2678) target = $region104
        $region103: #{tpu_custom_call.1} parent=87 // pred_region
          %s2682 = ssub.s32 512, 512
          %2683 = vsyncadd %s2674, %s2682
          %s2684 = smul.addr %s35, 4
          %s2685 = smul.addr %s2684, 128
          %s2686 = scalar_lea.hbm %s17, %s2685
          %s2688 = sshll.u32 %s2677, 4
          %s2689 = int_to_ptr.vmem [resolvable:$true] %s2688
          %2691 = dma.vmem_to_hbm [thread:$0]  %s2689, 512, %s2686, %s2674
        $region104: #{tpu_custom_call.1} parent=87 // pred_fallthru
          _
      $region88: #{tpu_custom_call.1} parent=5 // pred_fallthru
        _
      %p2692 = scmp.le.s32.totalorder 2, %s30
      // Predicated region
      $region105: #{tpu_custom_call.1} parent=5 // pred_check
        %p2693 = pneg %p2692
      $region106: #{tpu_custom_call.1} parent=5 // pred_check_branch
        %2695 = sbr.rel (%p2693) target = $region108
      $region107: #{tpu_custom_call.1} parent=5 // pred_region
        %s2696 = ssub.s32 %s30, 2
        // Predicated region
        $region109: #{tpu_custom_call.1} parent=107 // pred_check
          %p2697 = pneg %p421
        $region110: #{tpu_custom_call.1} parent=107 // pred_check_branch
          %2699 = sbr.rel (%p2697) target = $region112
        $region111: #{tpu_custom_call.1} parent=107 // pred_region
          %s2700 = sand.u32 %s406, 1
          %s2701 = scalar_lea.sflag [#allocation4], %s2700
          %s2702 = sand.u32 %s406, 1
          %s2703 = smul.addr %s2702, 32
          %s2704 = scalar_lea.vmem [#allocation8], %s2703
          %2705 = dma.done %s2701, 512
        $region112: #{tpu_custom_call.1} parent=107 // pred_fallthru
          _
      $region108: #{tpu_custom_call.1} parent=5 // pred_fallthru
        _
    $region6: #{tpu_custom_call.1} parent=1 // loop_footer
      %s34 = sadd.s32 1, %s30
    $region7: #{tpu_custom_call.1} parent=1 // loop_footer_branch
      %29 = sbr.rel target = $region3
    $region8: #{tpu_custom_call.1} parent=1 // loop_exit
      _
    %2706 = vsyncpa [#allocation3], 1
    %s2707 = scalar_lea.sflag [#allocation3], 1
    %2708 = vsyncpa %s2707, 1
    %2709 = vsyncpa [#allocation6], 1
    %2710 = vsyncpa [#allocation4], 1
    %s2711 = scalar_lea.sflag [#allocation4], 1
    %2712 = vsyncpa %s2711, 1

</llo_original>
